<compile_context>
chip_gen: v7x
topology: tpu7x:2x2x1
jax: 0.10.0
libtpu: 0.0.40
codegen_flags: <defaults>
</compile_context>

<pallas_src>
import functools

import jax
import jax.numpy as jnp
from jax import lax
from jax.experimental import pallas as pl
from jax.experimental.pallas import tpu as pltpu


def _conv_out_len(lin, k, s):
    return (lin - k) // s + 1


def _round_up(x, m):
    return (x + m - 1) // m * m


def _nanopore_kernel(Gt, G, GH, pitches, L6,
                     x_ref, w1_ref, wc_ref, b_ref, lw_ref, lb_ref,
                     out_ref, buf_a, buf_b):
    B1, B2, B3, B4, B5, B6 = pitches
    f32 = jnp.float32

    # Zero the guard rows just past each buffer's live region: the taps of the
    # very last (padded) output row of layers 2/3 peek one row past it.  Done
    # every grid step so it also holds per-core under "parallel" semantics.
    # Deeper layers only ever peek into rows freshly written by layer 1 /
    # layer 2 earlier in the SAME step (finite), and the max-pool masks every
    # padded row to -inf, so padding can never leak into valid outputs.
    buf_a[Gt * B1:Gt * B1 + 8, :] = jnp.zeros((8, GH), f32)
    buf_b[Gt * B2:Gt * B2 + 8, :] = jnp.zeros((8, GH), f32)

    # ---- layer 1: Conv1d(1, H, k=3, s=1) + ReLU, one f32 MXU matmul ----------
    # Normalization (x-90)/40 is folded into w1/b1 at trace time.  LHS holds
    # the 3 signal taps of every sample in the tile: (Gt*B1, 3*G); the RHS is
    # block-diagonal (3*G, G*H) so each lane-packed sample only sees its own
    # taps.  Kept in f32 (K is tiny) to preserve raw-signal accuracy.
    xfull = x_ref[...]                                           # (Gt, Lxp, G)
    x3 = jnp.concatenate([xfull[:, t:t + B1, :] for t in range(3)], axis=2)
    lhs1 = x3.reshape(Gt * B1, 3 * G)
    y1 = jnp.dot(lhs1, w1_ref[...], preferred_element_type=f32) + b_ref[0]
    buf_a[0:Gt * B1, :] = jnp.maximum(y1, 0.0)

    # ---- layers 2..6: fused-tap, lane-packed bf16 MXU matmuls ----------------
    # Activations live flat as (Gt * pitch_l, G*H): G samples side by side in
    # lanes, Gt lane-groups stacked along sublanes with per-sample row pitches
    # obeying pitch_{l-1} = stride_l * pitch_l, so one (possibly strided)
    # sublane slice yields a conv tap for the whole batch tile.
    def fused_conv(in_buf, stride, n_out, li):
        taps = []
        for t in range(3):
            if stride == 1:
                xt = in_buf[t:t + n_out, :]
            else:
                xt = in_buf[pl.ds(t, n_out, stride), :]          # strided slice
            taps.append(xt.astype(jnp.bfloat16))                 # cast pre-concat
        lhs = jnp.concatenate(taps, axis=1)                      # (n, 3*G*H) bf16
        y = jnp.dot(lhs, wc_ref[li], preferred_element_type=jnp.float32)
        return y + b_ref[li + 1]                                 # (n, G*H) f32

    y = fused_conv(buf_a, 2, Gt * B2, 0)                         # layer 2 (s=2)
    buf_b[0:Gt * B2, :] = jnp.maximum(y, 0.0)
    y = fused_conv(buf_b, 2, Gt * B3, 1)                         # layer 3 (s=2)
    buf_a[0:Gt * B3, :] = jnp.maximum(y, 0.0)
    y = fused_conv(buf_a, 2, Gt * B4, 2)                         # layer 4 (s=2)
    buf_b[0:Gt * B4, :] = jnp.maximum(y, 0.0)
    y = fused_conv(buf_b, 2, Gt * B5, 3)                         # layer 5 (s=2)
    buf_a[0:Gt * B5, :] = jnp.maximum(y, 0.0)
    y6 = fused_conv(buf_a, 1, Gt * B6, 4)                        # layer 6 (s=1)

    # ---- masked global max-pool over time + Linear(H, 1) ---------------------
    # One XLU reduction for the whole tile; padded rows masked to -inf.
    y6r = y6.reshape(Gt, B6, GH)
    row = lax.broadcasted_iota(jnp.int32, (Gt, B6, GH), 1)
    pooled = jnp.max(jnp.where(row < L6, y6r, -jnp.inf), axis=1)  # (Gt, GH)
    label = jnp.dot(pooled, lw_ref[...], preferred_element_type=f32)
    out_ref[...] = (label + lb_ref[...]).reshape(1, Gt, G)


def nanopore_convnet(x, params, hidden_size, *, batch_tile=8):
    """x: (B, L0, 1) float32 raw signal; params: tuple of 14 arrays. -> (B, 1)."""
    (w1, b1, w2, b2, w3, b3, w4, b4, w5, b5, w6, b6, lw, lb) = params
    B, L0, _ = x.shape
    H = hidden_size

    # Lane packing: G = 128//H samples side by side in lanes (G=1 if H >= 128).
    G = 128 // H if (H < 128 and 128 % H == 0) else 1
    GH = G * H

    # Batch tile: a multiple of G; pad B up to a multiple of Bt (never degrade
    # to Bt=1 for awkward B).  Keep the grid >= 2 where possible so both v7x
    # TensorCores get work under dimension_semantics=("parallel",).
    Bt = max(G, (max(batch_tile, G) // G) * G)
    if _round_up(B, Bt) // Bt < 2 and Bt >= 2 * G:
        Bt = max(G, (Bt // 2 // G) * G)
    B_pad = _round_up(B, Bt)
    nsteps = B_pad // Bt
    Gt = Bt // G

    # Per-layer valid lengths and padded per-sample row pitches.  Pitches obey
    # pitch_{l-1} = stride_l * pitch_l so one flat (strided) sublane slice
    # yields a conv tap for the whole batch tile.
    L1 = _conv_out_len(L0, 3, 1)
    L2 = _conv_out_len(L1, 3, 2)
    L3 = _conv_out_len(L2, 3, 2)
    L4 = _conv_out_len(L3, 3, 2)
    L5 = _conv_out_len(L4, 3, 2)
    L6 = _conv_out_len(L5, 3, 1)
    assert L6 >= 1, "input too short for NanoporeConvNet"
    p = max(-(-L1 // 16), -(-L2 // 8), -(-L3 // 4), -(-L4 // 2), L5, L6)
    p = _round_up(p, 8)
    B6 = B5 = p
    B4, B3, B2, B1 = 2 * p, 4 * p, 8 * p, 16 * p
    Lxp = B1 + 2                                          # >= L0 + 2 always

    eye = jnp.eye(G, dtype=jnp.float32)

    # Trace-time parameter packing (free):
    #  * fold (x-90)/40 into layer-1 weights/bias,
    #  * replicate every weight block-diagonally over the G lane-packed samples,
    #  * tap-fuse each (3,H,H) conv weight into a (3*G*H, G*H) bf16 matrix.
    w1n = (w1 / 40.0).astype(jnp.float32)                                 # (3,1,H)
    b1n = (b1 - (90.0 / 40.0) * jnp.sum(w1, axis=0)).astype(jnp.float32)  # (1,H)
    w1p = jnp.einsum("gk,tc->tgkc", eye, w1n[:, 0, :]).reshape(3 * G, GH)
    w1p = w1p.astype(jnp.float32)
    wl = jnp.stack([w2, w3, w4, w5, w6], axis=0)                          # (5,3,H,H)
    wcp = jnp.einsum("gk,lthc->ltghkc", eye, wl).reshape(5, 3 * GH, GH)
    wcp = wcp.astype(jnp.bfloat16)                                        # (5,3GH,GH)
    bs = jnp.stack([b1n, b2, b3, b4, b5, b6], axis=0)                     # (6,1,H)
    bsp = jnp.tile(bs, (1, 1, G)).astype(jnp.float32)                     # (6,1,GH)
    lwp = jnp.einsum("gk,c->gck", eye, lw[0]).reshape(GH, G).astype(jnp.float32)

    # Input packing: pad batch & time with zeros, put G samples in lanes.
    xf = x.astype(jnp.float32).reshape(B, L0)
    xf = jnp.pad(xf, ((0, B_pad - B), (0, Lxp - L0)))
    xp = xf.reshape(nsteps * Gt, G, Lxp).transpose(0, 2, 1)   # (steps*Gt, Lxp, G)

    # Rough VMEM budget -> explicit scoped-VMEM limit (v5e default scoped limit
    # is only 16 MiB; v7x has only 64 MiB physical per core; stay inside both).
    lane = 128
    scratch_bytes = ((Gt * B1 + 8) + (Gt * B2 + 8)) * _round_up(GH, lane) * 4
    blk_bytes = (
        Gt * _round_up(Lxp, 8) * _round_up(G, lane) * 4           # signal tile
        + _round_up(3 * G, 8) * _round_up(GH, lane) * 4           # w1 packed
        + 5 * _round_up(3 * GH, 8) * _round_up(GH, lane) * 2      # conv packed
        + 6 * 8 * _round_up(GH, lane) * 4                         # biases
        + _round_up(GH, 8) * _round_up(G, lane) * 4               # linear w
        + 8 * lane * 4                                            # linear b
        + _round_up(Gt, 8) * _round_up(G, lane) * 4)              # output tile
    est = scratch_bytes + 2 * blk_bytes                           # double-buffered
    vmem_limit = int(min(max(2 * est, 32 * 2 ** 20), 60 * 2 ** 20))

    kernel = functools.partial(_nanopore_kernel, Gt, G, GH,
                               (B1, B2, B3, B4, B5, B6), L6)

    out = pl.pallas_call(
        kernel,
        out_shape=jax.ShapeDtypeStruct((nsteps, Gt, G), jnp.float32),
        grid_spec=pltpu.PrefetchScalarGridSpec(
            num_scalar_prefetch=0,
            grid=(nsteps,),
            in_specs=[
                pl.BlockSpec((Gt, Lxp, G), lambda g: (g, 0, 0)),      # signal
                pl.BlockSpec((3 * G, GH), lambda g: (0, 0)),          # w1 packed
                pl.BlockSpec((5, 3 * GH, GH), lambda g: (0, 0, 0)),   # conv packed
                pl.BlockSpec((6, 1, GH), lambda g: (0, 0, 0)),        # biases
                pl.BlockSpec((GH, G), lambda g: (0, 0)),              # linear w
                pl.BlockSpec((1, 1), lambda g: (0, 0)),               # linear b
            ],
            out_specs=pl.BlockSpec((1, Gt, G), lambda g: (g, 0, 0)),
            scratch_shapes=[pltpu.VMEM((Gt * B1 + 8, GH), jnp.float32),
                            pltpu.VMEM((Gt * B2 + 8, GH), jnp.float32)],
        ),
        compiler_params=pltpu.CompilerParams(
            dimension_semantics=("parallel",),
            vmem_limit_bytes=vmem_limit),
    )(xp, w1p, wcp, bsp, lwp, lb)
    return out.reshape(B_pad, 1)[:B]


def reference_forward(x, params):
    """Pure-JAX reference mirroring the PyTorch module (NCW convs)."""
    (w1, b1, w2, b2, w3, b3, w4, b4, w5, b5, w6, b6, lw, lb) = params
    h = jnp.transpose((x - 90.0) / 40.0, (0, 2, 1))       # (B, 1, L)

    def conv(h, w, bias, stride):
        wk = jnp.transpose(w, (2, 1, 0))                  # (Cout, Cin, K)
        y = lax.conv_general_dilated(
            h, wk, window_strides=(stride,), padding="VALID",
            dimension_numbers=("NCH", "OIH", "NCH"))
        return y + bias.reshape(1, -1, 1)

    h = jax.nn.relu(conv(h, w1, b1, 1))
    h = jax.nn.relu(conv(h, w2, b2, 2))
    h = jax.nn.relu(conv(h, w3, b3, 2))
    h = jax.nn.relu(conv(h, w4, b4, 2))
    h = jax.nn.relu(conv(h, w5, b5, 2))
    h = conv(h, w6, b6, 1)
    pool = jnp.max(h, axis=-1)                            # (B, H)
    return pool @ lw.T + lb                               # (B, 1)


if __name__ == "__main__":
    B, L0, H = 16, 128, 32          # small demo shapes; torch input is (B, 1, L0)
    key = jax.random.PRNGKey(0)
    k = jax.random.split(key, 16)

    def nrm(kk, shape, scale):
        return (scale * jax.random.normal(kk, shape)).astype(jnp.float32)

    # Weights as (K, Cin, Cout); biases as (1, Cout); linear as (1, H)/(1, 1).
    params = (
        nrm(k[0], (3, 1, H), 0.4),   nrm(k[1], (1, H), 0.1),
        nrm(k[2], (3, H, H), 0.1),   nrm(k[3], (1, H), 0.1),
        nrm(k[4], (3, H, H), 0.1),   nrm(k[5], (1, H), 0.1),
        nrm(k[6], (3, H, H), 0.1),   nrm(k[7], (1, H), 0.1),
        nrm(k[8], (3, H, H), 0.1),   nrm(k[9], (1, H), 0.1),
        nrm(k[10], (3, H, H), 0.1),  nrm(k[11], (1, H), 0.1),
        nrm(k[12], (1, H), 0.2),     nrm(k[13], (1, 1), 0.1),
    )
    # Synthetic nanopore-like signal (mean ~90, std ~40), layout (B, L, 1).
    x = (90.0 + 40.0 * jax.random.normal(k[14], (B, L0, 1))).astype(jnp.float32)

    out = jax.block_until_ready(nanopore_convnet(x, params, H, batch_tile=8))

    # Reference uses the same bf16-rounded conv weights the kernel feeds the
    # MXU, so the only divergence is the bf16 rounding of the matmul LHS.
    def rnd(w):
        return w.astype(jnp.bfloat16).astype(jnp.float32)
    pr = list(params)
    for i in (2, 4, 6, 8, 10):      # w2..w6
        pr[i] = rnd(pr[i])
    ref = reference_forward(x, tuple(pr))

    assert out.shape == (B, 1)
    # bf16 MXU operands (f32 accumulation) -> slightly looser tolerance than f32.
    assert bool(jnp.allclose(out, ref, rtol=2e-2, atol=2e-2)), (out, ref)
    print("KERNEL_OK")
</pallas_src>

<mosaic_0001>
module attributes {stable_mosaic.version = 11 : i64} {
  func.func @_nanopore_kernel(%arg0: i32, %arg1: memref<2x130x4xf32, #tpu.memory_space<vmem>>, %arg2: memref<12x128xf32, #tpu.memory_space<vmem>>, %arg3: memref<5x384x128xbf16, #tpu.memory_space<vmem>>, %arg4: memref<6x1x128xf32, #tpu.memory_space<vmem>>, %arg5: memref<128x4xf32, #tpu.memory_space<vmem>>, %arg6: memref<1x1xf32, #tpu.memory_space<vmem>>, %arg7: memref<1x2x4xf32, #tpu.memory_space<vmem>>, %arg8: memref<264x128xf32, #tpu.memory_space<vmem>>, %arg9: memref<136x128xf32, #tpu.memory_space<vmem>>) attributes {dimension_semantics = [#tpu.dimension_semantics<parallel>], iteration_bounds = array<i64: 2>, scalar_prefetch = 0 : i64, scratch_operands = 2 : i64, tpu.core_type = #tpu.core_type<tc>, window_params = [{transform_indices = @transform_0, window_bounds = array<i64: 2, 130, 4>}, {pipeline_mode = #tpu.pipeline_mode<synchronous>, transform_indices = @transform_1, window_bounds = array<i64: 12, 128>}, {pipeline_mode = #tpu.pipeline_mode<synchronous>, transform_indices = @transform_2, window_bounds = array<i64: 5, 384, 128>}, {pipeline_mode = #tpu.pipeline_mode<synchronous>, transform_indices = @transform_3, window_bounds = array<i64: 6, 1, 128>}, {pipeline_mode = #tpu.pipeline_mode<synchronous>, transform_indices = @transform_4, window_bounds = array<i64: 128, 4>}, {pipeline_mode = #tpu.pipeline_mode<synchronous>, transform_indices = @transform_5, window_bounds = array<i64: 1, 1>}, {transform_indices = @transform_6, window_bounds = array<i64: 1, 2, 4>}]} {
    %cst = arith.constant 0.000000e+00 : f32
    %0 = vector.broadcast %cst : f32 to vector<8x128xf32>
    %c256 = arith.constant 256 : index
    %c0 = arith.constant 0 : index
    %1 = vector.load %arg8[%c256, %c0] : memref<264x128xf32, #tpu.memory_space<vmem>>, vector<8x128xf32>
    tpu.vector_store %arg8[%c256, %c0], %0 {strides = array<i32>} : memref<264x128xf32, #tpu.memory_space<vmem>>, vector<8x128xf32>,
    %cst_0 = arith.constant 0.000000e+00 : f32
    %2 = vector.broadcast %cst_0 : f32 to vector<8x128xf32>
    %c128 = arith.constant 128 : index
    %c0_1 = arith.constant 0 : index
    %3 = vector.load %arg9[%c128, %c0_1] : memref<136x128xf32, #tpu.memory_space<vmem>>, vector<8x128xf32>
    tpu.vector_store %arg9[%c128, %c0_1], %2 {strides = array<i32>} : memref<136x128xf32, #tpu.memory_space<vmem>>, vector<8x128xf32>,
    %c0_2 = arith.constant 0 : index
    %c0_3 = arith.constant 0 : index
    %c0_4 = arith.constant 0 : index
    %4 = vector.load %arg1[%c0_2, %c0_3, %c0_4] : memref<2x130x4xf32, #tpu.memory_space<vmem>>, vector<2x130x4xf32>
    %5 = vector.extract_strided_slice %4 {offsets = [0, 0, 0], sizes = [2, 128, 4], strides = [1, 1, 1]} : vector<2x130x4xf32> to vector<2x128x4xf32>
    %6 = vector.extract_strided_slice %4 {offsets = [0, 1, 0], sizes = [2, 128, 4], strides = [1, 1, 1]} : vector<2x130x4xf32> to vector<2x128x4xf32>
    %7 = vector.extract_strided_slice %4 {offsets = [0, 2, 0], sizes = [2, 128, 4], strides = [1, 1, 1]} : vector<2x130x4xf32> to vector<2x128x4xf32>
    %8 = tpu.concatenate %5, %6, %7 in 2 : vector<2x128x4xf32>, vector<2x128x4xf32>, vector<2x128x4xf32> -> vector<2x128x12xf32>
    %9 = vector.shape_cast %8 : vector<2x128x12xf32> to vector<256x12xf32>
    %c0_5 = arith.constant 0 : index
    %c0_6 = arith.constant 0 : index
    %10 = vector.load %arg2[%c0_5, %c0_6] : memref<12x128xf32, #tpu.memory_space<vmem>>, vector<12x128xf32>
    %cst_7 = arith.constant dense<0.000000e+00> : vector<256x128xf32>
    %11 = tpu.matmul %9, %10, %cst_7 {dimension_numbers = #tpu.dot_dimension_numbers<[1], [0], [0], [1], [0, 0, 1, 1], [], []>} : vector<256x12xf32>, vector<12x128xf32>, vector<256x128xf32> -> vector<256x128xf32>
    %c0_8 = arith.constant 0 : index
    %c0_9 = arith.constant 0 : index
    %c0_10 = arith.constant 0 : index
    %12 = vector.load %arg4[%c0_8, %c0_9, %c0_10] : memref<6x1x128xf32, #tpu.memory_space<vmem>>, vector<1x1x128xf32>
    %13 = vector.shape_cast %12 : vector<1x1x128xf32> to vector<1x128xf32>
    %14 = vector.broadcast %13 : vector<1x128xf32> to vector<256x128xf32>
    %15 = arith.addf %11, %14 : vector<256x128xf32>
    %cst_11 = arith.constant 0.000000e+00 : f32
    %16 = vector.broadcast %cst_11 : f32 to vector<256x128xf32>
    %17 = arith.maximumf %15, %16 : vector<256x128xf32>
    %c0_12 = arith.constant 0 : index
    %c0_13 = arith.constant 0 : index
    %18 = vector.load %arg8[%c0_12, %c0_13] : memref<264x128xf32, #tpu.memory_space<vmem>>, vector<256x128xf32>
    tpu.vector_store %arg8[%c0_12, %c0_13], %17 {strides = array<i32>} : memref<264x128xf32, #tpu.memory_space<vmem>>, vector<256x128xf32>,
    %c0_14 = arith.constant 0 : index
    %c0_15 = arith.constant 0 : index
    %19 = tpu.strided_load %arg8[%c0_14, %c0_15] {strides = array<i32: 2, 1>} : memref<264x128xf32, #tpu.memory_space<vmem>>, vector<128x128xf32>
    %20 = arith.truncf %19 : vector<128x128xf32> to vector<128x128xbf16>
    %c1 = arith.constant 1 : index
    %c0_16 = arith.constant 0 : index
    %21 = tpu.strided_load %arg8[%c1, %c0_16] {strides = array<i32: 2, 1>} : memref<264x128xf32, #tpu.memory_space<vmem>>, vector<128x128xf32>
    %22 = arith.truncf %21 : vector<128x128xf32> to vector<128x128xbf16>
    %c2 = arith.constant 2 : index
    %c0_17 = arith.constant 0 : index
    %23 = tpu.strided_load %arg8[%c2, %c0_17] {strides = array<i32: 2, 1>} : memref<264x128xf32, #tpu.memory_space<vmem>>, vector<128x128xf32>
    %24 = arith.truncf %23 : vector<128x128xf32> to vector<128x128xbf16>
    %25 = tpu.concatenate %20, %22, %24 in 1 : vector<128x128xbf16>, vector<128x128xbf16>, vector<128x128xbf16> -> vector<128x384xbf16>
    %c0_18 = arith.constant 0 : index
    %c0_19 = arith.constant 0 : index
    %c0_20 = arith.constant 0 : index
    %26 = vector.load %arg3[%c0_18, %c0_19, %c0_20] : memref<5x384x128xbf16, #tpu.memory_space<vmem>>, vector<1x384x128xbf16>
    %27 = vector.shape_cast %26 : vector<1x384x128xbf16> to vector<384x128xbf16>
    %cst_21 = arith.constant dense<0.000000e+00> : vector<128x128xf32>
    %28 = tpu.matmul %25, %27, %cst_21 {dimension_numbers = #tpu.dot_dimension_numbers<[1], [0], [0], [1], [0, 0, 1, 1], [], []>} : vector<128x384xbf16>, vector<384x128xbf16>, vector<128x128xf32> -> vector<128x128xf32>
    %c1_22 = arith.constant 1 : index
    %c0_23 = arith.constant 0 : index
    %c0_24 = arith.constant 0 : index
    %29 = vector.load %arg4[%c1_22, %c0_23, %c0_24] : memref<6x1x128xf32, #tpu.memory_space<vmem>>, vector<1x1x128xf32>
    %30 = vector.shape_cast %29 : vector<1x1x128xf32> to vector<1x128xf32>
    %31 = vector.broadcast %30 : vector<1x128xf32> to vector<128x128xf32>
    %32 = arith.addf %28, %31 : vector<128x128xf32>
    %cst_25 = arith.constant 0.000000e+00 : f32
    %33 = vector.broadcast %cst_25 : f32 to vector<128x128xf32>
    %34 = arith.maximumf %32, %33 : vector<128x128xf32>
    %c0_26 = arith.constant 0 : index
    %c0_27 = arith.constant 0 : index
    %35 = vector.load %arg9[%c0_26, %c0_27] : memref<136x128xf32, #tpu.memory_space<vmem>>, vector<128x128xf32>
    tpu.vector_store %arg9[%c0_26, %c0_27], %34 {strides = array<i32>} : memref<136x128xf32, #tpu.memory_space<vmem>>, vector<128x128xf32>,
    %c0_28 = arith.constant 0 : index
    %c0_29 = arith.constant 0 : index
    %36 = tpu.strided_load %arg9[%c0_28, %c0_29] {strides = array<i32: 2, 1>} : memref<136x128xf32, #tpu.memory_space<vmem>>, vector<64x128xf32>
    %37 = arith.truncf %36 : vector<64x128xf32> to vector<64x128xbf16>
    %c1_30 = arith.constant 1 : index
    %c0_31 = arith.constant 0 : index
    %38 = tpu.strided_load %arg9[%c1_30, %c0_31] {strides = array<i32: 2, 1>} : memref<136x128xf32, #tpu.memory_space<vmem>>, vector<64x128xf32>
    %39 = arith.truncf %38 : vector<64x128xf32> to vector<64x128xbf16>
    %c2_32 = arith.constant 2 : index
    %c0_33 = arith.constant 0 : index
    %40 = tpu.strided_load %arg9[%c2_32, %c0_33] {strides = array<i32: 2, 1>} : memref<136x128xf32, #tpu.memory_space<vmem>>, vector<64x128xf32>
    %41 = arith.truncf %40 : vector<64x128xf32> to vector<64x128xbf16>
    %42 = tpu.concatenate %37, %39, %41 in 1 : vector<64x128xbf16>, vector<64x128xbf16>, vector<64x128xbf16> -> vector<64x384xbf16>
    %c1_34 = arith.constant 1 : index
    %c0_35 = arith.constant 0 : index
    %c0_36 = arith.constant 0 : index
    %43 = vector.load %arg3[%c1_34, %c0_35, %c0_36] : memref<5x384x128xbf16, #tpu.memory_space<vmem>>, vector<1x384x128xbf16>
    %44 = vector.shape_cast %43 : vector<1x384x128xbf16> to vector<384x128xbf16>
    %cst_37 = arith.constant dense<0.000000e+00> : vector<64x128xf32>
    %45 = tpu.matmul %42, %44, %cst_37 {dimension_numbers = #tpu.dot_dimension_numbers<[1], [0], [0], [1], [0, 0, 1, 1], [], []>} : vector<64x384xbf16>, vector<384x128xbf16>, vector<64x128xf32> -> vector<64x128xf32>
    %c2_38 = arith.constant 2 : index
    %c0_39 = arith.constant 0 : index
    %c0_40 = arith.constant 0 : index
    %46 = vector.load %arg4[%c2_38, %c0_39, %c0_40] : memref<6x1x128xf32, #tpu.memory_space<vmem>>, vector<1x1x128xf32>
    %47 = vector.shape_cast %46 : vector<1x1x128xf32> to vector<1x128xf32>
    %48 = vector.broadcast %47 : vector<1x128xf32> to vector<64x128xf32>
    %49 = arith.addf %45, %48 : vector<64x128xf32>
    %cst_41 = arith.constant 0.000000e+00 : f32
    %50 = vector.broadcast %cst_41 : f32 to vector<64x128xf32>
    %51 = arith.maximumf %49, %50 : vector<64x128xf32>
    %c0_42 = arith.constant 0 : index
    %c0_43 = arith.constant 0 : index
    %52 = vector.load %arg8[%c0_42, %c0_43] : memref<264x128xf32, #tpu.memory_space<vmem>>, vector<64x128xf32>
    tpu.vector_store %arg8[%c0_42, %c0_43], %51 {strides = array<i32>} : memref<264x128xf32, #tpu.memory_space<vmem>>, vector<64x128xf32>,
    %c0_44 = arith.constant 0 : index
    %c0_45 = arith.constant 0 : index
    %53 = tpu.strided_load %arg8[%c0_44, %c0_45] {strides = array<i32: 2, 1>} : memref<264x128xf32, #tpu.memory_space<vmem>>, vector<32x128xf32>
    %54 = arith.truncf %53 : vector<32x128xf32> to vector<32x128xbf16>
    %c1_46 = arith.constant 1 : index
    %c0_47 = arith.constant 0 : index
    %55 = tpu.strided_load %arg8[%c1_46, %c0_47] {strides = array<i32: 2, 1>} : memref<264x128xf32, #tpu.memory_space<vmem>>, vector<32x128xf32>
    %56 = arith.truncf %55 : vector<32x128xf32> to vector<32x128xbf16>
    %c2_48 = arith.constant 2 : index
    %c0_49 = arith.constant 0 : index
    %57 = tpu.strided_load %arg8[%c2_48, %c0_49] {strides = array<i32: 2, 1>} : memref<264x128xf32, #tpu.memory_space<vmem>>, vector<32x128xf32>
    %58 = arith.truncf %57 : vector<32x128xf32> to vector<32x128xbf16>
    %59 = tpu.concatenate %54, %56, %58 in 1 : vector<32x128xbf16>, vector<32x128xbf16>, vector<32x128xbf16> -> vector<32x384xbf16>
    %c2_50 = arith.constant 2 : index
    %c0_51 = arith.constant 0 : index
    %c0_52 = arith.constant 0 : index
    %60 = vector.load %arg3[%c2_50, %c0_51, %c0_52] : memref<5x384x128xbf16, #tpu.memory_space<vmem>>, vector<1x384x128xbf16>
    %61 = vector.shape_cast %60 : vector<1x384x128xbf16> to vector<384x128xbf16>
    %cst_53 = arith.constant dense<0.000000e+00> : vector<32x128xf32>
    %62 = tpu.matmul %59, %61, %cst_53 {dimension_numbers = #tpu.dot_dimension_numbers<[1], [0], [0], [1], [0, 0, 1, 1], [], []>} : vector<32x384xbf16>, vector<384x128xbf16>, vector<32x128xf32> -> vector<32x128xf32>
    %c3 = arith.constant 3 : index
    %c0_54 = arith.constant 0 : index
    %c0_55 = arith.constant 0 : index
    %63 = vector.load %arg4[%c3, %c0_54, %c0_55] : memref<6x1x128xf32, #tpu.memory_space<vmem>>, vector<1x1x128xf32>
    %64 = vector.shape_cast %63 : vector<1x1x128xf32> to vector<1x128xf32>
    %65 = vector.broadcast %64 : vector<1x128xf32> to vector<32x128xf32>
    %66 = arith.addf %62, %65 : vector<32x128xf32>
    %cst_56 = arith.constant 0.000000e+00 : f32
    %67 = vector.broadcast %cst_56 : f32 to vector<32x128xf32>
    %68 = arith.maximumf %66, %67 : vector<32x128xf32>
    %c0_57 = arith.constant 0 : index
    %c0_58 = arith.constant 0 : index
    %69 = vector.load %arg9[%c0_57, %c0_58] : memref<136x128xf32, #tpu.memory_space<vmem>>, vector<32x128xf32>
    tpu.vector_store %arg9[%c0_57, %c0_58], %68 {strides = array<i32>} : memref<136x128xf32, #tpu.memory_space<vmem>>, vector<32x128xf32>,
    %c0_59 = arith.constant 0 : index
    %c0_60 = arith.constant 0 : index
    %70 = tpu.strided_load %arg9[%c0_59, %c0_60] {strides = array<i32: 2, 1>} : memref<136x128xf32, #tpu.memory_space<vmem>>, vector<16x128xf32>
    %71 = arith.truncf %70 : vector<16x128xf32> to vector<16x128xbf16>
    %c1_61 = arith.constant 1 : index
    %c0_62 = arith.constant 0 : index
    %72 = tpu.strided_load %arg9[%c1_61, %c0_62] {strides = array<i32: 2, 1>} : memref<136x128xf32, #tpu.memory_space<vmem>>, vector<16x128xf32>
    %73 = arith.truncf %72 : vector<16x128xf32> to vector<16x128xbf16>
    %c2_63 = arith.constant 2 : index
    %c0_64 = arith.constant 0 : index
    %74 = tpu.strided_load %arg9[%c2_63, %c0_64] {strides = array<i32: 2, 1>} : memref<136x128xf32, #tpu.memory_space<vmem>>, vector<16x128xf32>
    %75 = arith.truncf %74 : vector<16x128xf32> to vector<16x128xbf16>
    %76 = tpu.concatenate %71, %73, %75 in 1 : vector<16x128xbf16>, vector<16x128xbf16>, vector<16x128xbf16> -> vector<16x384xbf16>
    %c3_65 = arith.constant 3 : index
    %c0_66 = arith.constant 0 : index
    %c0_67 = arith.constant 0 : index
    %77 = vector.load %arg3[%c3_65, %c0_66, %c0_67] : memref<5x384x128xbf16, #tpu.memory_space<vmem>>, vector<1x384x128xbf16>
    %78 = vector.shape_cast %77 : vector<1x384x128xbf16> to vector<384x128xbf16>
    %cst_68 = arith.constant dense<0.000000e+00> : vector<16x128xf32>
    %79 = tpu.matmul %76, %78, %cst_68 {dimension_numbers = #tpu.dot_dimension_numbers<[1], [0], [0], [1], [0, 0, 1, 1], [], []>} : vector<16x384xbf16>, vector<384x128xbf16>, vector<16x128xf32> -> vector<16x128xf32>
    %c4 = arith.constant 4 : index
    %c0_69 = arith.constant 0 : index
    %c0_70 = arith.constant 0 : index
    %80 = vector.load %arg4[%c4, %c0_69, %c0_70] : memref<6x1x128xf32, #tpu.memory_space<vmem>>, vector<1x1x128xf32>
    %81 = vector.shape_cast %80 : vector<1x1x128xf32> to vector<1x128xf32>
    %82 = vector.broadcast %81 : vector<1x128xf32> to vector<16x128xf32>
    %83 = arith.addf %79, %82 : vector<16x128xf32>
    %cst_71 = arith.constant 0.000000e+00 : f32
    %84 = vector.broadcast %cst_71 : f32 to vector<16x128xf32>
    %85 = arith.maximumf %83, %84 : vector<16x128xf32>
    %c0_72 = arith.constant 0 : index
    %c0_73 = arith.constant 0 : index
    %86 = vector.load %arg8[%c0_72, %c0_73] : memref<264x128xf32, #tpu.memory_space<vmem>>, vector<16x128xf32>
    tpu.vector_store %arg8[%c0_72, %c0_73], %85 {strides = array<i32>} : memref<264x128xf32, #tpu.memory_space<vmem>>, vector<16x128xf32>,
    %c0_74 = arith.constant 0 : index
    %c0_75 = arith.constant 0 : index
    %87 = vector.load %arg8[%c0_74, %c0_75] : memref<264x128xf32, #tpu.memory_space<vmem>>, vector<16x128xf32>
    %88 = arith.truncf %87 : vector<16x128xf32> to vector<16x128xbf16>
    %c1_76 = arith.constant 1 : index
    %c0_77 = arith.constant 0 : index
    %89 = vector.load %arg8[%c1_76, %c0_77] : memref<264x128xf32, #tpu.memory_space<vmem>>, vector<16x128xf32>
    %90 = arith.truncf %89 : vector<16x128xf32> to vector<16x128xbf16>
    %c2_78 = arith.constant 2 : index
    %c0_79 = arith.constant 0 : index
    %91 = vector.load %arg8[%c2_78, %c0_79] : memref<264x128xf32, #tpu.memory_space<vmem>>, vector<16x128xf32>
    %92 = arith.truncf %91 : vector<16x128xf32> to vector<16x128xbf16>
    %93 = tpu.concatenate %88, %90, %92 in 1 : vector<16x128xbf16>, vector<16x128xbf16>, vector<16x128xbf16> -> vector<16x384xbf16>
    %c4_80 = arith.constant 4 : index
    %c0_81 = arith.constant 0 : index
    %c0_82 = arith.constant 0 : index
    %94 = vector.load %arg3[%c4_80, %c0_81, %c0_82] : memref<5x384x128xbf16, #tpu.memory_space<vmem>>, vector<1x384x128xbf16>
    %95 = vector.shape_cast %94 : vector<1x384x128xbf16> to vector<384x128xbf16>
    %cst_83 = arith.constant dense<0.000000e+00> : vector<16x128xf32>
    %96 = tpu.matmul %93, %95, %cst_83 {dimension_numbers = #tpu.dot_dimension_numbers<[1], [0], [0], [1], [0, 0, 1, 1], [], []>} : vector<16x384xbf16>, vector<384x128xbf16>, vector<16x128xf32> -> vector<16x128xf32>
    %c5 = arith.constant 5 : index
    %c0_84 = arith.constant 0 : index
    %c0_85 = arith.constant 0 : index
    %97 = vector.load %arg4[%c5, %c0_84, %c0_85] : memref<6x1x128xf32, #tpu.memory_space<vmem>>, vector<1x1x128xf32>
    %98 = vector.shape_cast %97 : vector<1x1x128xf32> to vector<1x128xf32>
    %99 = vector.broadcast %98 : vector<1x128xf32> to vector<16x128xf32>
    %100 = arith.addf %96, %99 : vector<16x128xf32>
    %101 = vector.shape_cast %100 : vector<16x128xf32> to vector<2x8x128xf32>
    %102 = tpu.iota {dimensions = array<i32: 1>} : vector<2x8x128xi32>
    %c4_i32 = arith.constant 4 : i32
    %103 = vector.broadcast %c4_i32 : i32 to vector<2x8x128xi32>
    %104 = arith.cmpi slt, %102, %103 : vector<2x8x128xi32>
    %cst_86 = arith.constant 0xFF800000 : f32
    %105 = vector.broadcast %cst_86 : f32 to vector<2x8x128xf32>
    %106 = arith.select %104, %101, %105 : vector<2x8x128xi1>, vector<2x8x128xf32>
    %cst_87 = arith.constant dense<0xFF800000> : vector<2x128xf32>
    %107 = vector.multi_reduction <maximumf>, %106, %cst_87 [1] : vector<2x8x128xf32> to vector<2x128xf32>
    %c0_88 = arith.constant 0 : index
    %c0_89 = arith.constant 0 : index
    %108 = vector.load %arg5[%c0_88, %c0_89] : memref<128x4xf32, #tpu.memory_space<vmem>>, vector<128x4xf32>
    %cst_90 = arith.constant dense<0.000000e+00> : vector<2x4xf32>
    %109 = tpu.matmul %107, %108, %cst_90 {dimension_numbers = #tpu.dot_dimension_numbers<[1], [0], [0], [1], [0, 0, 1, 1], [], []>} : vector<2x128xf32>, vector<128x4xf32>, vector<2x4xf32> -> vector<2x4xf32>
    %c0_91 = arith.constant 0 : index
    %c0_92 = arith.constant 0 : index
    %110 = vector.load %arg6[%c0_91, %c0_92] : memref<1x1xf32, #tpu.memory_space<vmem>>, vector<1x1xf32>
    %111 = vector.broadcast %110 : vector<1x1xf32> to vector<2x4xf32>
    %112 = arith.addf %109, %111 : vector<2x4xf32>
    %113 = vector.shape_cast %112 : vector<2x4xf32> to vector<1x2x4xf32>
    %c0_93 = arith.constant 0 : index
    %c0_94 = arith.constant 0 : index
    %c0_95 = arith.constant 0 : index
    %114 = vector.load %arg7[%c0_93, %c0_94, %c0_95] : memref<1x2x4xf32, #tpu.memory_space<vmem>>, vector<1x2x4xf32>
    tpu.vector_store %arg7[%c0_93, %c0_94, %c0_95], %113 {strides = array<i32>} : memref<1x2x4xf32, #tpu.memory_space<vmem>>, vector<1x2x4xf32>,
    return
  }
  func.func @transform_0(%arg0: i32) -> (i32, i32, i32) {
    %c0_i32 = arith.constant 0 : i32
    %c0_i32_0 = arith.constant 0 : i32
    %c0_i32_1 = arith.constant 0 : i32
    return %arg0, %c0_i32, %c0_i32_0 : i32, i32, i32
  }
  func.func @transform_1(%arg0: i32) -> (i32, i32) {
    %c0_i32 = arith.constant 0 : i32
    %c0_i32_0 = arith.constant 0 : i32
    %c0_i32_1 = arith.constant 0 : i32
    return %c0_i32, %c0_i32_0 : i32, i32
  }
  func.func @transform_2(%arg0: i32) -> (i32, i32, i32) {
    %c0_i32 = arith.constant 0 : i32
    %c0_i32_0 = arith.constant 0 : i32
    %c0_i32_1 = arith.constant 0 : i32
    %c0_i32_2 = arith.constant 0 : i32
    return %c0_i32, %c0_i32_0, %c0_i32_1 : i32, i32, i32
  }
  func.func @transform_3(%arg0: i32) -> (i32, i32, i32) {
    %c0_i32 = arith.constant 0 : i32
    %c0_i32_0 = arith.constant 0 : i32
    %c0_i32_1 = arith.constant 0 : i32
    %c0_i32_2 = arith.constant 0 : i32
    return %c0_i32, %c0_i32_0, %c0_i32_1 : i32, i32, i32
  }
  func.func @transform_4(%arg0: i32) -> (i32, i32) {
    %c0_i32 = arith.constant 0 : i32
    %c0_i32_0 = arith.constant 0 : i32
    %c0_i32_1 = arith.constant 0 : i32
    return %c0_i32, %c0_i32_0 : i32, i32
  }
  func.func @transform_5(%arg0: i32) -> (i32, i32) {
    %c0_i32 = arith.constant 0 : i32
    %c0_i32_0 = arith.constant 0 : i32
    %c0_i32_1 = arith.constant 0 : i32
    return %c0_i32, %c0_i32_0 : i32, i32
  }
  func.func @transform_6(%arg0: i32) -> (i32, i32, i32) {
    %c0_i32 = arith.constant 0 : i32
    %c0_i32_0 = arith.constant 0 : i32
    %c0_i32_1 = arith.constant 0 : i32
    return %arg0, %c0_i32, %c0_i32_0 : i32, i32, i32
  }
}

</mosaic_0001>

<llo_original>
// kernel: tpu_custom_call.1
$region0: #{tpu_custom_call.1}
  #allocation0 [shape = 'u32[]', space=smem, size = 0x4, offset = 0x4, fixed_abs, tag = 'smem constant byte address 0x4 - core index']
  #allocation1 [shape = 'u32[144,128]{1,0:T(1,128)}', space=vmem, size = 0x12000, scoped, tag = 'internal scratch']
  #allocation2 [shape = 'f32[264,128]{1,0:T(8,128)}', space=vmem, size = 0x21000, scoped, tag = 'scratch operand']
  #allocation3 [shape = 'f32[136,128]{1,0:T(8,128)}', space=vmem, size = 0x11000, scoped, tag = 'scratch operand']
  #allocation4 [shape = 'f32[1,1]{1,0:T(1,128)S(1)}', space=vmem, size = 0x200, scoped, tag = 'scoped memory for tpu_custom_call.1']
  %s0 = inlined_call_operand.vmem [shape: f32[4,130,4], index: 0, kind: input, shape index: {}]
  %s1 = inlined_call_operand.vmem [shape: f32[12,128], index: 1, kind: input, shape index: {}]
  %s2 = inlined_call_operand.hbm [shape: bf16[5,384,128], index: 2, kind: input, shape index: {}]
  %s3 = inlined_call_operand.vmem [shape: f32[6,1,128], index: 3, kind: input, shape index: {}]
  %s4 = inlined_call_operand.vmem [shape: f32[128,4], index: 4, kind: input, shape index: {}]
  %s5 = inlined_call_operand.<no memory space> [shape: f32[1,1], index: 5, kind: input, shape index: {}]
  %s6 = inlined_call_operand.hbm [shape: f32[2,2,4], index: 6, kind: output, shape index: {}]
  %s7 = sld [smem:[#allocation0]]
  $region61: #{tpu_custom_call.1} parent=0
    _
  %s9 = ssub.s32 1, %s7
  %s10 = scalar_select 0, %s9, %s7
  %v11 = vstv %s5
  %12 = vst [vmem:[#allocation4] sm:$0x1] %v11
  $region1: #{tpu_custom_call.1} parent=0
    #allocation5 [shape = 'u8[491520]{0}', space=vmem, size = 0x78000, scoped, tag = 'input window, operand 2, single buffered']
    #allocation6 [shape = 's32[2]{0}', space=sflag, size = 0x8, scoped, tag = 'scoped memory for tpu_custom_call.1']
    #allocation7 [shape = 's32[2]{0}', space=sflag, size = 0x8, scoped, tag = 'scoped memory for tpu_custom_call.1']
    #allocation8 [shape = 'u8[2048]{0}', space=vmem, size = 0x800, scoped, tag = 'output window, operand 0']
    %13 = vsyncpa [#allocation6], 0
    %14 = vsyncpa [#allocation7], 0
    %s15 = scalar_lea.sflag [#allocation7], 1
    %16 = vsyncpa %s15, 0
    loop: start=0, step=1, limit=4
    $region2: #{tpu_custom_call.1} parent=1 // loop_pre_header
      _
    $region3: #{tpu_custom_call.1} parent=1 // loop_header
      %s18 = sphi 0, %s22
      %p19 = scmp.ge.s32.totalorder %s18, 4
      %s28 = sphi 0, %s30
      %s31 = sphi 0, %s28
      %s32 = sphi 0, %s31
      %s48 = sphi 0, %s32
      %s52 = sphi 0, %s52
      %s54 = sphi 0, %s52
      %s55 = sphi 0, %s54
      %s69 = sphi 0, %s55
      %s73 = sphi 0, %s73
      %s75 = sphi 0, %s73
      %s76 = sphi 0, %s75
      %s90 = sphi 0, %s76
      %s94 = sphi 0, %s94
      %s96 = sphi 0, %s94
      %s97 = sphi 0, %s96
      %s111 = sphi 0, %s97
      %s115 = sphi 0, %s115
      %s117 = sphi 0, %s115
      %s118 = sphi 0, %s117
      %s132 = sphi 0, %s118
      %s136 = sphi 0, %s136
      %s138 = sphi 0, %s136
      %s139 = sphi 0, %s138
      %s153 = sphi 0, %s139
      %s159 = sphi 0, %s161
      %s162 = sphi 0, %s159
      %s163 = sphi 0, %s162
      %s179 = sphi 0, %s163
    $region4: #{tpu_custom_call.1} parent=1 // loop_header_branch
      %21 = sbr.rel (%p19) target = $region8
    $region5: #{tpu_custom_call.1} parent=1 // loop_body
      %s23 = ssub.s32 %s18, 1
      %s24 = ssub.s32 %s18, 2
      %s25 = sadd.s32 %s18, 1
      %s26 = ssub.s32 %s18, %s25
      %p27 = scmp.eq.s32.totalorder %s26, 0
      %s29 = sadd.s32 %s28, 1
      %s30 = scalar_select %p27, %s28, %s29
      %p33 = pneg %p27
      %p34 = scmp.eq.s32.totalorder %s18, 1
      %p35 = por %p33, %p34
      %p36 = scmp.ne.s32.totalorder %s28, %s31
      %p37 = scmp.eq.s32.totalorder %s18, 0
      %p38 = por %p36, %p37
      %p39 = scmp.ne.s32.totalorder %s28, %s31
      %p40 = scmp.eq.s32.totalorder %s23, 1
      %p41 = por %p39, %p40
      %p42 = scmp.ne.s32.totalorder %s31, %s32
      %p43 = scmp.eq.s32.totalorder %s23, 0
      %p44 = por %p42, %p43
      %p45 = scmp.ne.s32.totalorder %s31, %s32
      %p46 = scmp.eq.s32.totalorder %s24, 1
      %p47 = por %p45, %p46
      %p49 = scmp.ne.s32.totalorder %s32, %s48
      %p50 = scmp.eq.s32.totalorder %s24, 0
      %p51 = por %p49, %p50
      %s53 = sadd.s32 %s52, 1
      %p56 = scmp.eq.s32.totalorder %s18, 1
      %p57 = scmp.ne.s32.totalorder %s52, %s54
      %p58 = scmp.eq.s32.totalorder %s18, 0
      %p59 = por %p57, %p58
      %p60 = scmp.ne.s32.totalorder %s52, %s54
      %p61 = scmp.eq.s32.totalorder %s23, 1
      %p62 = por %p60, %p61
      %p63 = scmp.ne.s32.totalorder %s54, %s55
      %p64 = scmp.eq.s32.totalorder %s23, 0
      %p65 = por %p63, %p64
      %p66 = scmp.ne.s32.totalorder %s54, %s55
      %p67 = scmp.eq.s32.totalorder %s24, 1
      %p68 = por %p66, %p67
      %p70 = scmp.ne.s32.totalorder %s55, %s69
      %p71 = scmp.eq.s32.totalorder %s24, 0
      %p72 = por %p70, %p71
      %s74 = sadd.s32 %s73, 1
      %p77 = scmp.eq.s32.totalorder %s18, 1
      %p78 = scmp.ne.s32.totalorder %s73, %s75
      %p79 = scmp.eq.s32.totalorder %s18, 0
      %p80 = por %p78, %p79
      %p81 = scmp.ne.s32.totalorder %s73, %s75
      %p82 = scmp.eq.s32.totalorder %s23, 1
      %p83 = por %p81, %p82
      %p84 = scmp.ne.s32.totalorder %s75, %s76
      %p85 = scmp.eq.s32.totalorder %s23, 0
      %p86 = por %p84, %p85
      %p87 = scmp.ne.s32.totalorder %s75, %s76
      %p88 = scmp.eq.s32.totalorder %s24, 1
      %p89 = por %p87, %p88
      %p91 = scmp.ne.s32.totalorder %s76, %s90
      %p92 = scmp.eq.s32.totalorder %s24, 0
      %p93 = por %p91, %p92
      %s95 = sadd.s32 %s94, 1
      %p98 = scmp.eq.s32.totalorder %s18, 1
      %p99 = scmp.ne.s32.totalorder %s94, %s96
      %p100 = scmp.eq.s32.totalorder %s18, 0
      %p101 = por %p99, %p100
      %p102 = scmp.ne.s32.totalorder %s94, %s96
      %p103 = scmp.eq.s32.totalorder %s23, 1
      %p104 = por %p102, %p103
      %p105 = scmp.ne.s32.totalorder %s96, %s97
      %p106 = scmp.eq.s32.totalorder %s23, 0
      %p107 = por %p105, %p106
      %p108 = scmp.ne.s32.totalorder %s96, %s97
      %p109 = scmp.eq.s32.totalorder %s24, 1
      %p110 = por %p108, %p109
      %p112 = scmp.ne.s32.totalorder %s97, %s111
      %p113 = scmp.eq.s32.totalorder %s24, 0
      %p114 = por %p112, %p113
      %s116 = sadd.s32 %s115, 1
      %p119 = scmp.eq.s32.totalorder %s18, 1
      %p120 = scmp.ne.s32.totalorder %s115, %s117
      %p121 = scmp.eq.s32.totalorder %s18, 0
      %p122 = por %p120, %p121
      %p123 = scmp.ne.s32.totalorder %s115, %s117
      %p124 = scmp.eq.s32.totalorder %s23, 1
      %p125 = por %p123, %p124
      %p126 = scmp.ne.s32.totalorder %s117, %s118
      %p127 = scmp.eq.s32.totalorder %s23, 0
      %p128 = por %p126, %p127
      %p129 = scmp.ne.s32.totalorder %s117, %s118
      %p130 = scmp.eq.s32.totalorder %s24, 1
      %p131 = por %p129, %p130
      %p133 = scmp.ne.s32.totalorder %s118, %s132
      %p134 = scmp.eq.s32.totalorder %s24, 0
      %p135 = por %p133, %p134
      %s137 = sadd.s32 %s136, 1
      %p140 = scmp.eq.s32.totalorder %s18, 1
      %p141 = scmp.ne.s32.totalorder %s136, %s138
      %p142 = scmp.eq.s32.totalorder %s18, 0
      %p143 = por %p141, %p142
      %p144 = scmp.ne.s32.totalorder %s136, %s138
      %p145 = scmp.eq.s32.totalorder %s23, 1
      %p146 = por %p144, %p145
      %p147 = scmp.ne.s32.totalorder %s138, %s139
      %p148 = scmp.eq.s32.totalorder %s23, 0
      %p149 = por %p147, %p148
      %p150 = scmp.ne.s32.totalorder %s138, %s139
      %p151 = scmp.eq.s32.totalorder %s24, 1
      %p152 = por %p150, %p151
      %p154 = scmp.ne.s32.totalorder %s139, %s153
      %p155 = scmp.eq.s32.totalorder %s24, 0
      %p156 = por %p154, %p155
      %s157 = ssub.s32 %s18, %s25
      %p158 = scmp.eq.s32.totalorder %s157, 0
      %s160 = sadd.s32 %s159, 1
      %s161 = scalar_select %p158, %s159, %s160
      %p164 = pneg %p158
      %p165 = scmp.eq.s32.totalorder %s18, 1
      %p166 = por %p164, %p165
      %p167 = scmp.ne.s32.totalorder %s159, %s162
      %p168 = scmp.eq.s32.totalorder %s18, 0
      %p169 = por %p167, %p168
      %p170 = scmp.ne.s32.totalorder %s159, %s162
      %p171 = scmp.eq.s32.totalorder %s23, 1
      %p172 = por %p170, %p171
      %p173 = scmp.ne.s32.totalorder %s162, %s163
      %p174 = scmp.eq.s32.totalorder %s23, 0
      %p175 = por %p173, %p174
      %p176 = scmp.ne.s32.totalorder %s162, %s163
      %p177 = scmp.eq.s32.totalorder %s24, 1
      %p178 = por %p176, %p177
      %p180 = scmp.ne.s32.totalorder %s163, %s179
      %p181 = scmp.eq.s32.totalorder %s24, 0
      %p182 = por %p180, %p181
      %p183 = scmp.le.s32.totalorder 1, %s18
      %p184 = scmp.lt.s32.totalorder %s18, 3
      %p185 = pnand %p183, %p184
      %p186 = pneg %p185
      // Predicated region
      $region9: #{tpu_custom_call.1} parent=5 // pred_check
        _
      $region10: #{tpu_custom_call.1} parent=5 // pred_check_branch
        %188 = sbr.rel (%p185) target = $region12
      $region11: #{tpu_custom_call.1} parent=5 // pred_region
        %s189 = ssub.s32 %s18, 1
        // Predicated region
        $region13: #{tpu_custom_call.1} parent=11 // pred_check
          %p190 = pneg %p65
        $region14: #{tpu_custom_call.1} parent=11 // pred_check_branch
          %192 = sbr.rel (%p190) target = $region16
        $region15: #{tpu_custom_call.1} parent=11 // pred_region
          _
        $region16: #{tpu_custom_call.1} parent=11 // pred_fallthru
          _
        // Predicated region
        $region17: #{tpu_custom_call.1} parent=11 // pred_check
          %p193 = pneg %p86
        $region18: #{tpu_custom_call.1} parent=11 // pred_check_branch
          %195 = sbr.rel (%p193) target = $region20
        $region19: #{tpu_custom_call.1} parent=11 // pred_region
          %s197 = ssub.s32 15360, 15360
          %198 = vsyncadd [#allocation6], %s197
          %s199 = sshll.u32 [#allocation5], 4
          %s200 = int_to_ptr.vmem [resolvable:$true] %s199
          %205 = dma.hbm_to_vmem [thread:$0]  %s2, 15360, %s200, [#allocation6], 64, 64, 4
        $region20: #{tpu_custom_call.1} parent=11 // pred_fallthru
          _
        // Predicated region
        $region21: #{tpu_custom_call.1} parent=11 // pred_check
          %p206 = pneg %p107
        $region22: #{tpu_custom_call.1} parent=11 // pred_check_branch
          %208 = sbr.rel (%p206) target = $region24
        $region23: #{tpu_custom_call.1} parent=11 // pred_region
          _
        $region24: #{tpu_custom_call.1} parent=11 // pred_fallthru
          _
        // Predicated region
        $region25: #{tpu_custom_call.1} parent=11 // pred_check
          %p209 = pneg %p128
        $region26: #{tpu_custom_call.1} parent=11 // pred_check_branch
          %211 = sbr.rel (%p209) target = $region28
        $region27: #{tpu_custom_call.1} parent=11 // pred_region
          _
        $region28: #{tpu_custom_call.1} parent=11 // pred_fallthru
          _
        // Predicated region
        $region29: #{tpu_custom_call.1} parent=11 // pred_check
          %p212 = pneg %p149
        $region30: #{tpu_custom_call.1} parent=11 // pred_check_branch
          %214 = sbr.rel (%p212) target = $region32
        $region31: #{tpu_custom_call.1} parent=11 // pred_region
          _
        $region32: #{tpu_custom_call.1} parent=11 // pred_fallthru
          _
      $region12: #{tpu_custom_call.1} parent=5 // pred_fallthru
        _
      %p215 = scmp.lt.s32.totalorder %s18, 2
      // Predicated region
      $region33: #{tpu_custom_call.1} parent=5 // pred_check
        %p216 = pneg %p215
      $region34: #{tpu_custom_call.1} parent=5 // pred_check_branch
        %218 = sbr.rel (%p216) target = $region36
      $region35: #{tpu_custom_call.1} parent=5 // pred_region
        // Predicated region
        $region37: #{tpu_custom_call.1} parent=35 // pred_check
          %p219 = pneg %p38
        $region38: #{tpu_custom_call.1} parent=35 // pred_check_branch
          %221 = sbr.rel (%p219) target = $region40
        $region39: #{tpu_custom_call.1} parent=35 // pred_region
          %s222 = smul.u32 2, %s18
          %p223 = scmp.lt.s32.totalorder %s222, 3
          %s224 = scalar_select %p223, %s222, 3
          %s225 = smul.addr %s224, 17
          %s226 = smul.addr %s225, 8
          %s227 = scalar_lea.vmem %s0, %s226
          %s228 = smul.u32 2, %s18
        $region40: #{tpu_custom_call.1} parent=35 // pred_fallthru
          _
      $region36: #{tpu_custom_call.1} parent=5 // pred_fallthru
        _
      %p229 = scmp.le.s32.totalorder 1, %s18
      %p230 = scmp.lt.s32.totalorder %s18, 3
      %p231 = pnand %p229, %p230
      %p232 = pneg %p231
      // Predicated region
      $region41: #{tpu_custom_call.1} parent=5 // pred_check
        _
      $region42: #{tpu_custom_call.1} parent=5 // pred_check_branch
        %234 = sbr.rel (%p231) target = $region44
      $region43: #{tpu_custom_call.1} parent=5 // pred_region
        %s235 = ssub.s32 %s18, 1
        // Predicated region
        $region45: #{tpu_custom_call.1} parent=43 // pred_check
          %p236 = pneg %p86
        $region46: #{tpu_custom_call.1} parent=43 // pred_check_branch
          %238 = sbr.rel (%p236) target = $region48
        $region47: #{tpu_custom_call.1} parent=43 // pred_region
          %239 = dma.done [#allocation6], 15360
        $region48: #{tpu_custom_call.1} parent=43 // pred_fallthru
          _
        %s240 = smul.u32 2, %s23
        %p241 = scmp.lt.s32.totalorder %s240, 3
        %s242 = scalar_select %p241, %s240, 3
        %s243 = smul.addr %s242, 17
        %s244 = smul.addr %s243, 8
        %s245 = scalar_lea.vmem %s0, %s244
        %p246 = pneg %p44
        %p247 = pneg %p41
        %p248 = pneg %p65
        %p249 = pneg %p62
        %p250 = pneg %p86
        %p251 = pneg %p83
        %p252 = pneg %p107
        %p253 = pneg %p104
        %p254 = pneg %p128
        %p255 = pneg %p125
        %p256 = pneg %p149
        %p257 = pneg %p146
        %p258 = pneg %p175
        %p259 = pneg %p172
        %s260 = sand.u32 %s162, 1
        %s261 = scalar_lea.sflag [#allocation7], %s260
        %s262 = sand.u32 %s162, 1
        %s263 = smul.addr %s262, 2
        %s264 = scalar_lea.vmem [#allocation8], %s263
        %s265 = smul.u32 2, %s23
        %p266 = scmp.lt.s32.totalorder %s265, 3
        %s267 = scalar_select %p266, %s265, 3
        %s268 = smul.addr %s267, 17
        %s269 = smul.addr %s268, 8
        %s270 = scalar_lea.vmem %s0, %s269
        %s271 = smul.u32 2, %s23
        %273 = vst [vmem:[#allocation2 + $0x100] sm:$0xff] 0.0
        %274 = vst [vmem:[#allocation3 + $0x80] sm:$0xff] 0.0
        %v275 = vld [vmem:[%s270] sm:$0xff]
        %v276 = vld [vmem:[%s270 + $0x8] sm:$0xff]
        %v277 = vld [vmem:[%s270 + $0x10] sm:$0xff]
        %v278 = vld [vmem:[%s270 + $0x18] sm:$0xff]
        %v279 = vld [vmem:[%s270 + $0x20] sm:$0xff]
        %v280 = vld [vmem:[%s270 + $0x28] sm:$0xff]
        %v281 = vld [vmem:[%s270 + $0x30] sm:$0xff]
        %v282 = vld [vmem:[%s270 + $0x38] sm:$0xff]
        %v283 = vld [vmem:[%s270 + $0x40] sm:$0xff]
        %v284 = vld [vmem:[%s270 + $0x48] sm:$0xff]
        %v285 = vld [vmem:[%s270 + $0x50] sm:$0xff]
        %v286 = vld [vmem:[%s270 + $0x58] sm:$0xff]
        %v287 = vld [vmem:[%s270 + $0x60] sm:$0xff]
        %v288 = vld [vmem:[%s270 + $0x68] sm:$0xff]
        %v289 = vld [vmem:[%s270 + $0x70] sm:$0xff]
        %v290 = vld [vmem:[%s270 + $0x78] sm:$0xff]
        %v291 = vld [vmem:[%s270 + $0x80] sm:$0x3]
        %v292 = vld [vmem:[%s270 + $0x88] sm:$0xff]
        %v293 = vld [vmem:[%s270 + $0x90] sm:$0xff]
        %v294 = vld [vmem:[%s270 + $0x98] sm:$0xff]
        %v295 = vld [vmem:[%s270 + $0xa0] sm:$0xff]
        %v296 = vld [vmem:[%s270 + $0xa8] sm:$0xff]
        %v297 = vld [vmem:[%s270 + $0xb0] sm:$0xff]
        %v298 = vld [vmem:[%s270 + $0xb8] sm:$0xff]
        %v299 = vld [vmem:[%s270 + $0xc0] sm:$0xff]
        %v300 = vld [vmem:[%s270 + $0xc8] sm:$0xff]
        %v301 = vld [vmem:[%s270 + $0xd0] sm:$0xff]
        %v302 = vld [vmem:[%s270 + $0xd8] sm:$0xff]
        %v303 = vld [vmem:[%s270 + $0xe0] sm:$0xff]
        %v304 = vld [vmem:[%s270 + $0xe8] sm:$0xff]
        %v305 = vld [vmem:[%s270 + $0xf0] sm:$0xff]
        %v306 = vld [vmem:[%s270 + $0xf8] sm:$0xff]
        %v307 = vld [vmem:[%s270 + $0x100] sm:$0xff]
        %v308 = vld [vmem:[%s270 + $0x108] sm:$0x3]
        %vm343 = vcmask 1046528
        %v344 = vrot.slane %v275, 1
        %v345 = vrot.slane %v276, 1
        %v346 = vsel %vm343, %v344, %v345
        %v347 = vrot.slane %v277, 1
        %v348 = vsel %vm343, %v345, %v347
        %v349 = vrot.slane %v278, 1
        %v350 = vsel %vm343, %v347, %v349
        %v351 = vrot.slane %v279, 1
        %v352 = vsel %vm343, %v349, %v351
        %v353 = vrot.slane %v280, 1
        %v354 = vsel %vm343, %v351, %v353
        %v355 = vrot.slane %v281, 1
        %v356 = vsel %vm343, %v353, %v355
        %v357 = vrot.slane %v282, 1
        %v358 = vsel %vm343, %v355, %v357
        %v359 = vrot.slane %v283, 1
        %v360 = vsel %vm343, %v357, %v359
        %v361 = vrot.slane %v284, 1
        %v362 = vsel %vm343, %v359, %v361
        %v363 = vrot.slane %v285, 1
        %v364 = vsel %vm343, %v361, %v363
        %v365 = vrot.slane %v286, 1
        %v366 = vsel %vm343, %v363, %v365
        %v367 = vrot.slane %v287, 1
        %v368 = vsel %vm343, %v365, %v367
        %v369 = vrot.slane %v288, 1
        %v370 = vsel %vm343, %v367, %v369
        %v371 = vrot.slane %v289, 1
        %v372 = vsel %vm343, %v369, %v371
        %v373 = vrot.slane %v290, 1
        %v374 = vsel %vm343, %v371, %v373
        %v375 = vrot.slane %v291, 1
        %v376 = vsel %vm343, %v373, %v375
        %v377 = vrot.slane %v292, 1
        %v378 = vrot.slane %v293, 1
        %v379 = vsel %vm343, %v377, %v378
        %v380 = vrot.slane %v294, 1
        %v381 = vsel %vm343, %v378, %v380
        %v382 = vrot.slane %v295, 1
        %v383 = vsel %vm343, %v380, %v382
        %v384 = vrot.slane %v296, 1
        %v385 = vsel %vm343, %v382, %v384
        %v386 = vrot.slane %v297, 1
        %v387 = vsel %vm343, %v384, %v386
        %v388 = vrot.slane %v298, 1
        %v389 = vsel %vm343, %v386, %v388
        %v390 = vrot.slane %v299, 1
        %v391 = vsel %vm343, %v388, %v390
        %v392 = vrot.slane %v300, 1
        %v393 = vsel %vm343, %v390, %v392
        %v394 = vrot.slane %v301, 1
        %v395 = vsel %vm343, %v392, %v394
        %v396 = vrot.slane %v302, 1
        %v397 = vsel %vm343, %v394, %v396
        %v398 = vrot.slane %v303, 1
        %v399 = vsel %vm343, %v396, %v398
        %v400 = vrot.slane %v304, 1
        %v401 = vsel %vm343, %v398, %v400
        %v402 = vrot.slane %v305, 1
        %v403 = vsel %vm343, %v400, %v402
        %v404 = vrot.slane %v306, 1
        %v405 = vsel %vm343, %v402, %v404
        %v406 = vrot.slane %v307, 1
        %v407 = vsel %vm343, %v404, %v406
        %v408 = vrot.slane %v308, 1
        %v409 = vsel %vm343, %v406, %v408
        %410 = vrot.lane.b32.xlu0 %v346, 4
        %v411 = vpop.permute.xlu0 %410
        %412 = vrot.lane.b32.xlu0 %v348, 4
        %v413 = vpop.permute.xlu0 %412
        %414 = vrot.lane.b32.xlu0 %v350, 4
        %v415 = vpop.permute.xlu0 %414
        %416 = vrot.lane.b32.xlu0 %v352, 4
        %v417 = vpop.permute.xlu0 %416
        %418 = vrot.lane.b32.xlu0 %v354, 4
        %v419 = vpop.permute.xlu0 %418
        %420 = vrot.lane.b32.xlu0 %v356, 4
        %v421 = vpop.permute.xlu0 %420
        %422 = vrot.lane.b32.xlu0 %v358, 4
        %v423 = vpop.permute.xlu0 %422
        %424 = vrot.lane.b32.xlu0 %v360, 4
        %v425 = vpop.permute.xlu0 %424
        %426 = vrot.lane.b32.xlu0 %v362, 4
        %v427 = vpop.permute.xlu0 %426
        %428 = vrot.lane.b32.xlu0 %v364, 4
        %v429 = vpop.permute.xlu0 %428
        %430 = vrot.lane.b32.xlu0 %v366, 4
        %v431 = vpop.permute.xlu0 %430
        %432 = vrot.lane.b32.xlu0 %v368, 4
        %v433 = vpop.permute.xlu0 %432
        %434 = vrot.lane.b32.xlu0 %v370, 4
        %v435 = vpop.permute.xlu0 %434
        %436 = vrot.lane.b32.xlu0 %v372, 4
        %v437 = vpop.permute.xlu0 %436
        %438 = vrot.lane.b32.xlu0 %v374, 4
        %v439 = vpop.permute.xlu0 %438
        %440 = vrot.lane.b32.xlu0 %v376, 4
        %v441 = vpop.permute.xlu0 %440
        %442 = vrot.lane.b32.xlu0 %v379, 4
        %v443 = vpop.permute.xlu0 %442
        %444 = vrot.lane.b32.xlu0 %v381, 4
        %v445 = vpop.permute.xlu0 %444
        %446 = vrot.lane.b32.xlu0 %v383, 4
        %v447 = vpop.permute.xlu0 %446
        %448 = vrot.lane.b32.xlu0 %v385, 4
        %v449 = vpop.permute.xlu0 %448
        %450 = vrot.lane.b32.xlu0 %v387, 4
        %v451 = vpop.permute.xlu0 %450
        %452 = vrot.lane.b32.xlu0 %v389, 4
        %v453 = vpop.permute.xlu0 %452
        %454 = vrot.lane.b32.xlu0 %v391, 4
        %v455 = vpop.permute.xlu0 %454
        %456 = vrot.lane.b32.xlu0 %v393, 4
        %v457 = vpop.permute.xlu0 %456
        %458 = vrot.lane.b32.xlu0 %v395, 4
        %v459 = vpop.permute.xlu0 %458
        %460 = vrot.lane.b32.xlu0 %v397, 4
        %v461 = vpop.permute.xlu0 %460
        %462 = vrot.lane.b32.xlu0 %v399, 4
        %v463 = vpop.permute.xlu0 %462
        %464 = vrot.lane.b32.xlu0 %v401, 4
        %v465 = vpop.permute.xlu0 %464
        %466 = vrot.lane.b32.xlu0 %v403, 4
        %v467 = vpop.permute.xlu0 %466
        %468 = vrot.lane.b32.xlu0 %v405, 4
        %v469 = vpop.permute.xlu0 %468
        %470 = vrot.lane.b32.xlu0 %v407, 4
        %v471 = vpop.permute.xlu0 %470
        %472 = vrot.lane.b32.xlu0 %v409, 4
        %v473 = vpop.permute.xlu0 %472
        %vm506 = vcmask 1045504
        %v507 = vrot.slane %v275, 2
        %v508 = vrot.slane %v276, 2
        %v509 = vsel %vm506, %v507, %v508
        %v510 = vrot.slane %v277, 2
        %v511 = vsel %vm506, %v508, %v510
        %v512 = vrot.slane %v278, 2
        %v513 = vsel %vm506, %v510, %v512
        %v514 = vrot.slane %v279, 2
        %v515 = vsel %vm506, %v512, %v514
        %v516 = vrot.slane %v280, 2
        %v517 = vsel %vm506, %v514, %v516
        %v518 = vrot.slane %v281, 2
        %v519 = vsel %vm506, %v516, %v518
        %v520 = vrot.slane %v282, 2
        %v521 = vsel %vm506, %v518, %v520
        %v522 = vrot.slane %v283, 2
        %v523 = vsel %vm506, %v520, %v522
        %v524 = vrot.slane %v284, 2
        %v525 = vsel %vm506, %v522, %v524
        %v526 = vrot.slane %v285, 2
        %v527 = vsel %vm506, %v524, %v526
        %v528 = vrot.slane %v286, 2
        %v529 = vsel %vm506, %v526, %v528
        %v530 = vrot.slane %v287, 2
        %v531 = vsel %vm506, %v528, %v530
        %v532 = vrot.slane %v288, 2
        %v533 = vsel %vm506, %v530, %v532
        %v534 = vrot.slane %v289, 2
        %v535 = vsel %vm506, %v532, %v534
        %v536 = vrot.slane %v290, 2
        %v537 = vsel %vm506, %v534, %v536
        %v538 = vrot.slane %v291, 2
        %v539 = vsel %vm506, %v536, %v538
        %v540 = vrot.slane %v292, 2
        %v541 = vrot.slane %v293, 2
        %v542 = vsel %vm506, %v540, %v541
        %v543 = vrot.slane %v294, 2
        %v544 = vsel %vm506, %v541, %v543
        %v545 = vrot.slane %v295, 2
        %v546 = vsel %vm506, %v543, %v545
        %v547 = vrot.slane %v296, 2
        %v548 = vsel %vm506, %v545, %v547
        %v549 = vrot.slane %v297, 2
        %v550 = vsel %vm506, %v547, %v549
        %v551 = vrot.slane %v298, 2
        %v552 = vsel %vm506, %v549, %v551
        %v553 = vrot.slane %v299, 2
        %v554 = vsel %vm506, %v551, %v553
        %v555 = vrot.slane %v300, 2
        %v556 = vsel %vm506, %v553, %v555
        %v557 = vrot.slane %v301, 2
        %v558 = vsel %vm506, %v555, %v557
        %v559 = vrot.slane %v302, 2
        %v560 = vsel %vm506, %v557, %v559
        %v561 = vrot.slane %v303, 2
        %v562 = vsel %vm506, %v559, %v561
        %v563 = vrot.slane %v304, 2
        %v564 = vsel %vm506, %v561, %v563
        %v565 = vrot.slane %v305, 2
        %v566 = vsel %vm506, %v563, %v565
        %v567 = vrot.slane %v306, 2
        %v568 = vsel %vm506, %v565, %v567
        %v569 = vrot.slane %v307, 2
        %v570 = vsel %vm506, %v567, %v569
        %v571 = vrot.slane %v308, 2
        %v572 = vsel %vm506, %v569, %v571
        %573 = vrot.lane.b32.xlu0 %v509, 8
        %v574 = vpop.permute.xlu0 %573
        %575 = vrot.lane.b32.xlu0 %v511, 8
        %v576 = vpop.permute.xlu0 %575
        %577 = vrot.lane.b32.xlu0 %v513, 8
        %v578 = vpop.permute.xlu0 %577
        %579 = vrot.lane.b32.xlu0 %v515, 8
        %v580 = vpop.permute.xlu0 %579
        %581 = vrot.lane.b32.xlu0 %v517, 8
        %v582 = vpop.permute.xlu0 %581
        %583 = vrot.lane.b32.xlu0 %v519, 8
        %v584 = vpop.permute.xlu0 %583
        %585 = vrot.lane.b32.xlu0 %v521, 8
        %v586 = vpop.permute.xlu0 %585
        %587 = vrot.lane.b32.xlu0 %v523, 8
        %v588 = vpop.permute.xlu0 %587
        %589 = vrot.lane.b32.xlu0 %v525, 8
        %v590 = vpop.permute.xlu0 %589
        %591 = vrot.lane.b32.xlu0 %v527, 8
        %v592 = vpop.permute.xlu0 %591
        %593 = vrot.lane.b32.xlu0 %v529, 8
        %v594 = vpop.permute.xlu0 %593
        %595 = vrot.lane.b32.xlu0 %v531, 8
        %v596 = vpop.permute.xlu0 %595
        %597 = vrot.lane.b32.xlu0 %v533, 8
        %v598 = vpop.permute.xlu0 %597
        %599 = vrot.lane.b32.xlu0 %v535, 8
        %v600 = vpop.permute.xlu0 %599
        %601 = vrot.lane.b32.xlu0 %v537, 8
        %v602 = vpop.permute.xlu0 %601
        %603 = vrot.lane.b32.xlu0 %v539, 8
        %v604 = vpop.permute.xlu0 %603
        %605 = vrot.lane.b32.xlu0 %v542, 8
        %v606 = vpop.permute.xlu0 %605
        %607 = vrot.lane.b32.xlu0 %v544, 8
        %v608 = vpop.permute.xlu0 %607
        %609 = vrot.lane.b32.xlu0 %v546, 8
        %v610 = vpop.permute.xlu0 %609
        %611 = vrot.lane.b32.xlu0 %v548, 8
        %v612 = vpop.permute.xlu0 %611
        %613 = vrot.lane.b32.xlu0 %v550, 8
        %v614 = vpop.permute.xlu0 %613
        %615 = vrot.lane.b32.xlu0 %v552, 8
        %v616 = vpop.permute.xlu0 %615
        %617 = vrot.lane.b32.xlu0 %v554, 8
        %v618 = vpop.permute.xlu0 %617
        %619 = vrot.lane.b32.xlu0 %v556, 8
        %v620 = vpop.permute.xlu0 %619
        %621 = vrot.lane.b32.xlu0 %v558, 8
        %v622 = vpop.permute.xlu0 %621
        %623 = vrot.lane.b32.xlu0 %v560, 8
        %v624 = vpop.permute.xlu0 %623
        %625 = vrot.lane.b32.xlu0 %v562, 8
        %v626 = vpop.permute.xlu0 %625
        %627 = vrot.lane.b32.xlu0 %v564, 8
        %v628 = vpop.permute.xlu0 %627
        %629 = vrot.lane.b32.xlu0 %v566, 8
        %v630 = vpop.permute.xlu0 %629
        %631 = vrot.lane.b32.xlu0 %v568, 8
        %v632 = vpop.permute.xlu0 %631
        %633 = vrot.lane.b32.xlu0 %v570, 8
        %v634 = vpop.permute.xlu0 %633
        %635 = vrot.lane.b32.xlu0 %v572, 8
        %v636 = vpop.permute.xlu0 %635
        %vm669 = vcmask 31744
        %v670 = vsel %vm669, %v275, %v411
        %v671 = vsel %vm669, %v276, %v413
        %v672 = vsel %vm669, %v277, %v415
        %v673 = vsel %vm669, %v278, %v417
        %v674 = vsel %vm669, %v279, %v419
        %v675 = vsel %vm669, %v280, %v421
        %v676 = vsel %vm669, %v281, %v423
        %v677 = vsel %vm669, %v282, %v425
        %v678 = vsel %vm669, %v283, %v427
        %v679 = vsel %vm669, %v284, %v429
        %v680 = vsel %vm669, %v285, %v431
        %v681 = vsel %vm669, %v286, %v433
        %v682 = vsel %vm669, %v287, %v435
        %v683 = vsel %vm669, %v288, %v437
        %v684 = vsel %vm669, %v289, %v439
        %v685 = vsel %vm669, %v290, %v441
        %v686 = vsel %vm669, %v292, %v443
        %v687 = vsel %vm669, %v293, %v445
        %v688 = vsel %vm669, %v294, %v447
        %v689 = vsel %vm669, %v295, %v449
        %v690 = vsel %vm669, %v296, %v451
        %v691 = vsel %vm669, %v297, %v453
        %v692 = vsel %vm669, %v298, %v455
        %v693 = vsel %vm669, %v299, %v457
        %v694 = vsel %vm669, %v300, %v459
        %v695 = vsel %vm669, %v301, %v461
        %v696 = vsel %vm669, %v302, %v463
        %v697 = vsel %vm669, %v303, %v465
        %v698 = vsel %vm669, %v304, %v467
        %v699 = vsel %vm669, %v305, %v469
        %v700 = vsel %vm669, %v306, %v471
        %v701 = vsel %vm669, %v307, %v473
        %vm702 = vcmask 64512
        %v703 = vsel %vm702, %v670, %v574
        %v704 = vsel %vm702, %v671, %v576
        %v705 = vsel %vm702, %v672, %v578
        %v706 = vsel %vm702, %v673, %v580
        %v707 = vsel %vm702, %v674, %v582
        %v708 = vsel %vm702, %v675, %v584
        %v709 = vsel %vm702, %v676, %v586
        %v710 = vsel %vm702, %v677, %v588
        %v711 = vsel %vm702, %v678, %v590
        %v712 = vsel %vm702, %v679, %v592
        %v713 = vsel %vm702, %v680, %v594
        %v714 = vsel %vm702, %v681, %v596
        %v715 = vsel %vm702, %v682, %v598
        %v716 = vsel %vm702, %v683, %v600
        %v717 = vsel %vm702, %v684, %v602
        %v718 = vsel %vm702, %v685, %v604
        %v719 = vsel %vm702, %v686, %v606
        %v720 = vsel %vm702, %v687, %v608
        %v721 = vsel %vm702, %v688, %v610
        %v722 = vsel %vm702, %v689, %v612
        %v723 = vsel %vm702, %v690, %v614
        %v724 = vsel %vm702, %v691, %v616
        %v725 = vsel %vm702, %v692, %v618
        %v726 = vsel %vm702, %v693, %v620
        %v727 = vsel %vm702, %v694, %v622
        %v728 = vsel %vm702, %v695, %v624
        %v729 = vsel %vm702, %v696, %v626
        %v730 = vsel %vm702, %v697, %v628
        %v731 = vsel %vm702, %v698, %v630
        %v732 = vsel %vm702, %v699, %v632
        %v733 = vsel %vm702, %v700, %v634
        %v734 = vsel %vm702, %v701, %v636
        %v735 = vld [vmem:[%s1] sm:$0xff]
        %v736 = vld [vmem:[%s1 + $0x8] sm:$0xf]
        %v737 = vld [vmem:[%s3] sm:$0x1]
        %v739 = vlaneseq
        %v740 = vshrl.u32 %v739, 7
        %v741 = vsub.s32 0, %v740
        %v742 = vrot.slane %v737, %v741
        %vm744 = vcmask 97280
        %v746 = vsel %vm744, %v703, 0
        %v749 = vsel %vm744, %v704, 0
        %v752 = vsel %vm744, %v705, 0
        %v755 = vsel %vm744, %v706, 0
        %v758 = vsel %vm744, %v707, 0
        %v761 = vsel %vm744, %v708, 0
        %v764 = vsel %vm744, %v709, 0
        %v767 = vsel %vm744, %v710, 0
        %v770 = vsel %vm744, %v711, 0
        %v773 = vsel %vm744, %v712, 0
        %v776 = vsel %vm744, %v713, 0
        %v779 = vsel %vm744, %v714, 0
        %v782 = vsel %vm744, %v715, 0
        %v785 = vsel %vm744, %v716, 0
        %v788 = vsel %vm744, %v717, 0
        %v791 = vsel %vm744, %v718, 0
        %v794 = vsel %vm744, %v719, 0
        %v797 = vsel %vm744, %v720, 0
        %v800 = vsel %vm744, %v721, 0
        %v803 = vsel %vm744, %v722, 0
        %v806 = vsel %vm744, %v723, 0
        %v809 = vsel %vm744, %v724, 0
        %v812 = vsel %vm744, %v725, 0
        %v815 = vsel %vm744, %v726, 0
        %v818 = vsel %vm744, %v727, 0
        %v821 = vsel %vm744, %v728, 0
        %v824 = vsel %vm744, %v729, 0
        %v827 = vsel %vm744, %v730, 0
        %v830 = vsel %vm744, %v731, 0
        %v833 = vsel %vm744, %v732, 0
        %v836 = vsel %vm744, %v733, 0
        %v839 = vsel %vm744, %v734, 0
        %vm841 = vcmask 1043456
        %v843 = vsel %vm841, %v736, 0
        %845 = vmatprep.subr.mxu0 0.0
        %846 = vmatpush1.msra.mxu0 %v735
        %847 = vmatprep.subr.mxu0 0.0
        %848 = vmatpush1.msra.mxu0 %v843
        %849 = vmatprep.subr.mxu0 0.0
        %850 = vmatpush1.msra.mxu0 0.0
        %851 = vmatprep.subr.mxu0 0.0
        %852 = vmatpush1.msra.mxu0 0.0
        %853 = vmatprep.subr.mxu0 0.0
        %854 = vmatpush1.msra.mxu0 0.0
        %855 = vmatprep.subr.mxu0 0.0
        %856 = vmatpush1.msra.mxu0 0.0
        %857 = vmatprep.subr.mxu0 0.0
        %858 = vmatpush1.msra.mxu0 0.0
        %859 = vmatprep.subr.mxu0 0.0
        %860 = vmatpush1.msra.mxu0 0.0
        %861 = vmatprep.subr.mxu0 0.0
        %862 = vmatpush1.msra.mxu0 0.0
        %863 = vmatprep.subr.mxu0 0.0
        %864 = vmatpush1.msra.mxu0 0.0
        %865 = vmatprep.subr.mxu0 0.0
        %866 = vmatpush1.msra.mxu0 0.0
        %867 = vmatprep.subr.mxu0 0.0
        %868 = vmatpush1.msra.mxu0 0.0
        %869 = vmatprep.subr.mxu0 0.0
        %870 = vmatpush1.msra.mxu0 0.0
        %871 = vmatprep.subr.mxu0 0.0
        %872 = vmatpush1.msra.mxu0 0.0
        %873 = vmatprep.subr.mxu0 0.0
        %874 = vmatpush1.msra.mxu0 0.0
        %875 = vmatprep.subr.mxu0 0.0
        %876 = vmatpush1.msra.mxu0 0.0
        %877 = vmatprep.subr.mxu0 0.0
        %878 = vmatpush1.msra.mxu0 0.0
        %879 = vmatprep.subr.mxu0 0.0
        %880 = vmatpush1.msra.mxu0 0.0
        %881 = vmatprep.subr.mxu0 0.0
        %882 = vmatpush1.msra.mxu0 0.0
        %883 = vmatprep.subr.mxu0 0.0
        %884 = vmatpush1.msra.mxu0 0.0
        %885 = vmatprep.subr.mxu0 0.0
        %886 = vmatpush1.msra.mxu0 0.0
        %887 = vmatprep.subr.mxu0 0.0
        %888 = vmatpush1.msra.mxu0 0.0
        %889 = vmatprep.subr.mxu0 0.0
        %890 = vmatpush1.msra.mxu0 0.0
        %891 = vmatprep.subr.mxu0 0.0
        %892 = vmatpush1.msra.mxu0 0.0
        %893 = vmatprep.subr.mxu0 0.0
        %894 = vmatpush1.msra.mxu0 0.0
        %895 = vmatprep.subr.mxu0 0.0
        %896 = vmatpush1.msra.mxu0 0.0
        %897 = vmatprep.subr.mxu0 0.0
        %898 = vmatpush1.msra.mxu0 0.0
        %899 = vmatprep.subr.mxu0 0.0
        %900 = vmatpush1.msra.mxu0 0.0
        %901 = vmatprep.subr.mxu0 0.0
        %902 = vmatpush1.msra.mxu0 0.0
        %903 = vmatprep.subr.mxu0 0.0
        %904 = vmatpush1.msra.mxu0 0.0
        %905 = vmatprep.subr.mxu0 0.0
        %906 = vmatpush1.msra.mxu0 0.0
        %907 = vmatprep.subr.mxu0 0.0
        %908 = vmatpush1.msra.mxu0 0.0
        %909 = vmatprep.mubr.f32.mxu0 0.0
        %910 = vmatmul.mubr.f32.gmra.mrb[0].mxu0 %v746
        %v911 = vpop.f32.mrb[0].mxu0
        %v912 = vadd.f32 %v742, %v911
        %v913 = vpop.f32.mrb[0].mxu0
        %914 = vmatprep.mubr.f32.mxu0 0.0
        %915 = vmatmul.mubr.f32.gmra.mrb[0].mxu0 %v749
        %v916 = vpop.f32.mrb[0].mxu0
        %v917 = vadd.f32 %v742, %v916
        %v918 = vpop.f32.mrb[0].mxu0
        %919 = vmatprep.mubr.f32.mxu0 0.0
        %920 = vmatmul.mubr.f32.gmra.mrb[0].mxu0 %v752
        %v921 = vpop.f32.mrb[0].mxu0
        %v922 = vadd.f32 %v742, %v921
        %v923 = vpop.f32.mrb[0].mxu0
        %924 = vmatprep.mubr.f32.mxu0 0.0
        %925 = vmatmul.mubr.f32.gmra.mrb[0].mxu0 %v755
        %v926 = vpop.f32.mrb[0].mxu0
        %v927 = vadd.f32 %v742, %v926
        %v928 = vpop.f32.mrb[0].mxu0
        %929 = vmatprep.mubr.f32.mxu0 0.0
        %930 = vmatmul.mubr.f32.gmra.mrb[0].mxu0 %v758
        %v931 = vpop.f32.mrb[0].mxu0
        %v932 = vadd.f32 %v742, %v931
        %v933 = vpop.f32.mrb[0].mxu0
        %934 = vmatprep.mubr.f32.mxu0 0.0
        %935 = vmatmul.mubr.f32.gmra.mrb[0].mxu0 %v761
        %v936 = vpop.f32.mrb[0].mxu0
        %v937 = vadd.f32 %v742, %v936
        %v938 = vpop.f32.mrb[0].mxu0
        %939 = vmatprep.mubr.f32.mxu0 0.0
        %940 = vmatmul.mubr.f32.gmra.mrb[0].mxu0 %v764
        %v941 = vpop.f32.mrb[0].mxu0
        %v942 = vadd.f32 %v742, %v941
        %v943 = vpop.f32.mrb[0].mxu0
        %944 = vmatprep.mubr.f32.mxu0 0.0
        %945 = vmatmul.mubr.f32.gmra.mrb[0].mxu0 %v767
        %v946 = vpop.f32.mrb[0].mxu0
        %v947 = vadd.f32 %v742, %v946
        %v948 = vpop.f32.mrb[0].mxu0
        %949 = vmatprep.mubr.f32.mxu0 0.0
        %950 = vmatmul.mubr.f32.gmra.mrb[0].mxu0 %v770
        %v951 = vpop.f32.mrb[0].mxu0
        %v952 = vadd.f32 %v742, %v951
        %v953 = vpop.f32.mrb[0].mxu0
        %954 = vmatprep.mubr.f32.mxu0 0.0
        %955 = vmatmul.mubr.f32.gmra.mrb[0].mxu0 %v773
        %v956 = vpop.f32.mrb[0].mxu0
        %v957 = vadd.f32 %v742, %v956
        %v958 = vpop.f32.mrb[0].mxu0
        %959 = vmatprep.mubr.f32.mxu0 0.0
        %960 = vmatmul.mubr.f32.gmra.mrb[0].mxu0 %v776
        %v961 = vpop.f32.mrb[0].mxu0
        %v962 = vadd.f32 %v742, %v961
        %v963 = vpop.f32.mrb[0].mxu0
        %964 = vmatprep.mubr.f32.mxu0 0.0
        %965 = vmatmul.mubr.f32.gmra.mrb[0].mxu0 %v779
        %v966 = vpop.f32.mrb[0].mxu0
        %v967 = vadd.f32 %v742, %v966
        %v968 = vpop.f32.mrb[0].mxu0
        %969 = vmatprep.mubr.f32.mxu0 0.0
        %970 = vmatmul.mubr.f32.gmra.mrb[0].mxu0 %v782
        %v971 = vpop.f32.mrb[0].mxu0
        %v972 = vadd.f32 %v742, %v971
        %v973 = vpop.f32.mrb[0].mxu0
        %974 = vmatprep.mubr.f32.mxu0 0.0
        %975 = vmatmul.mubr.f32.gmra.mrb[0].mxu0 %v785
        %v976 = vpop.f32.mrb[0].mxu0
        %v977 = vadd.f32 %v742, %v976
        %v978 = vpop.f32.mrb[0].mxu0
        %979 = vmatprep.mubr.f32.mxu0 0.0
        %980 = vmatmul.mubr.f32.gmra.mrb[0].mxu0 %v788
        %v981 = vpop.f32.mrb[0].mxu0
        %v982 = vadd.f32 %v742, %v981
        %v983 = vpop.f32.mrb[0].mxu0
        %984 = vmatprep.mubr.f32.mxu0 0.0
        %985 = vmatmul.mubr.f32.gmra.mrb[0].mxu0 %v791
        %v986 = vpop.f32.mrb[0].mxu0
        %v987 = vadd.f32 %v742, %v986
        %v988 = vpop.f32.mrb[0].mxu0
        %989 = vmatprep.mubr.f32.mxu0 0.0
        %990 = vmatmul.mubr.f32.gmra.mrb[0].mxu0 %v794
        %v991 = vpop.f32.mrb[0].mxu0
        %v992 = vadd.f32 %v742, %v991
        %v993 = vpop.f32.mrb[0].mxu0
        %994 = vmatprep.mubr.f32.mxu0 0.0
        %995 = vmatmul.mubr.f32.gmra.mrb[0].mxu0 %v797
        %v996 = vpop.f32.mrb[0].mxu0
        %v997 = vadd.f32 %v742, %v996
        %v998 = vpop.f32.mrb[0].mxu0
        %999 = vmatprep.mubr.f32.mxu0 0.0
        %1000 = vmatmul.mubr.f32.gmra.mrb[0].mxu0 %v800
        %v1001 = vpop.f32.mrb[0].mxu0
        %v1002 = vadd.f32 %v742, %v1001
        %v1003 = vpop.f32.mrb[0].mxu0
        %1004 = vmatprep.mubr.f32.mxu0 0.0
        %1005 = vmatmul.mubr.f32.gmra.mrb[0].mxu0 %v803
        %v1006 = vpop.f32.mrb[0].mxu0
        %v1007 = vadd.f32 %v742, %v1006
        %v1008 = vpop.f32.mrb[0].mxu0
        %1009 = vmatprep.mubr.f32.mxu0 0.0
        %1010 = vmatmul.mubr.f32.gmra.mrb[0].mxu0 %v806
        %v1011 = vpop.f32.mrb[0].mxu0
        %v1012 = vadd.f32 %v742, %v1011
        %v1013 = vpop.f32.mrb[0].mxu0
        %1014 = vmatprep.mubr.f32.mxu0 0.0
        %1015 = vmatmul.mubr.f32.gmra.mrb[0].mxu0 %v809
        %v1016 = vpop.f32.mrb[0].mxu0
        %v1017 = vadd.f32 %v742, %v1016
        %v1018 = vpop.f32.mrb[0].mxu0
        %1019 = vmatprep.mubr.f32.mxu0 0.0
        %1020 = vmatmul.mubr.f32.gmra.mrb[0].mxu0 %v812
        %v1021 = vpop.f32.mrb[0].mxu0
        %v1022 = vadd.f32 %v742, %v1021
        %v1023 = vpop.f32.mrb[0].mxu0
        %1024 = vmatprep.mubr.f32.mxu0 0.0
        %1025 = vmatmul.mubr.f32.gmra.mrb[0].mxu0 %v815
        %v1026 = vpop.f32.mrb[0].mxu0
        %v1027 = vadd.f32 %v742, %v1026
        %v1028 = vpop.f32.mrb[0].mxu0
        %1029 = vmatprep.mubr.f32.mxu0 0.0
        %1030 = vmatmul.mubr.f32.gmra.mrb[0].mxu0 %v818
        %v1031 = vpop.f32.mrb[0].mxu0
        %v1032 = vadd.f32 %v742, %v1031
        %v1033 = vpop.f32.mrb[0].mxu0
        %1034 = vmatprep.mubr.f32.mxu0 0.0
        %1035 = vmatmul.mubr.f32.gmra.mrb[0].mxu0 %v821
        %v1036 = vpop.f32.mrb[0].mxu0
        %v1037 = vadd.f32 %v742, %v1036
        %v1038 = vpop.f32.mrb[0].mxu0
        %1039 = vmatprep.mubr.f32.mxu0 0.0
        %1040 = vmatmul.mubr.f32.gmra.mrb[0].mxu0 %v824
        %v1041 = vpop.f32.mrb[0].mxu0
        %v1042 = vadd.f32 %v742, %v1041
        %v1043 = vpop.f32.mrb[0].mxu0
        %1044 = vmatprep.mubr.f32.mxu0 0.0
        %1045 = vmatmul.mubr.f32.gmra.mrb[0].mxu0 %v827
        %v1046 = vpop.f32.mrb[0].mxu0
        %v1047 = vadd.f32 %v742, %v1046
        %v1048 = vpop.f32.mrb[0].mxu0
        %1049 = vmatprep.mubr.f32.mxu0 0.0
        %1050 = vmatmul.mubr.f32.gmra.mrb[0].mxu0 %v830
        %v1051 = vpop.f32.mrb[0].mxu0
        %v1052 = vadd.f32 %v742, %v1051
        %v1053 = vpop.f32.mrb[0].mxu0
        %1054 = vmatprep.mubr.f32.mxu0 0.0
        %1055 = vmatmul.mubr.f32.gmra.mrb[0].mxu0 %v833
        %v1056 = vpop.f32.mrb[0].mxu0
        %v1057 = vadd.f32 %v742, %v1056
        %v1058 = vpop.f32.mrb[0].mxu0
        %1059 = vmatprep.mubr.f32.mxu0 0.0
        %1060 = vmatmul.mubr.f32.gmra.mrb[0].mxu0 %v836
        %v1061 = vpop.f32.mrb[0].mxu0
        %v1062 = vadd.f32 %v742, %v1061
        %v1063 = vpop.f32.mrb[0].mxu0
        %1064 = vmatprep.mubr.f32.mxu0 0.0
        %1065 = vmatmul.mubr.f32.gmra.mrb[0].mxu0 %v839
        %v1066 = vpop.f32.mrb[0].mxu0
        %v1067 = vadd.f32 %v742, %v1066
        %v1068 = vpop.f32.mrb[0].mxu0
        %1069 = vdwg.mxu0
        %v1070 = vmax.f32 %v912, 0.0
        %v1071 = vmax.f32 %v917, 0.0
        %v1072 = vmax.f32 %v922, 0.0
        %v1073 = vmax.f32 %v927, 0.0
        %v1074 = vmax.f32 %v932, 0.0
        %v1075 = vmax.f32 %v937, 0.0
        %v1076 = vmax.f32 %v942, 0.0
        %v1077 = vmax.f32 %v947, 0.0
        %v1078 = vmax.f32 %v952, 0.0
        %v1079 = vmax.f32 %v957, 0.0
        %v1080 = vmax.f32 %v962, 0.0
        %v1081 = vmax.f32 %v967, 0.0
        %v1082 = vmax.f32 %v972, 0.0
        %v1083 = vmax.f32 %v977, 0.0
        %v1084 = vmax.f32 %v982, 0.0
        %v1085 = vmax.f32 %v987, 0.0
        %v1086 = vmax.f32 %v992, 0.0
        %v1087 = vmax.f32 %v997, 0.0
        %v1088 = vmax.f32 %v1002, 0.0
        %v1089 = vmax.f32 %v1007, 0.0
        %v1090 = vmax.f32 %v1012, 0.0
        %v1091 = vmax.f32 %v1017, 0.0
        %v1092 = vmax.f32 %v1022, 0.0
        %v1093 = vmax.f32 %v1027, 0.0
        %v1094 = vmax.f32 %v1032, 0.0
        %v1095 = vmax.f32 %v1037, 0.0
        %v1096 = vmax.f32 %v1042, 0.0
        %v1097 = vmax.f32 %v1047, 0.0
        %v1098 = vmax.f32 %v1052, 0.0
        %v1099 = vmax.f32 %v1057, 0.0
        %v1100 = vmax.f32 %v1062, 0.0
        %v1101 = vmax.f32 %v1067, 0.0
        %1102 = vst [vmem:[#allocation2] sm:$0xff] %v1070
        %1103 = vst [vmem:[#allocation2 + $0x8] sm:$0xff] %v1071
        %1104 = vst [vmem:[#allocation2 + $0x10] sm:$0xff] %v1072
        %1105 = vst [vmem:[#allocation2 + $0x18] sm:$0xff] %v1073
        %1106 = vst [vmem:[#allocation2 + $0x20] sm:$0xff] %v1074
        %1107 = vst [vmem:[#allocation2 + $0x28] sm:$0xff] %v1075
        %1108 = vst [vmem:[#allocation2 + $0x30] sm:$0xff] %v1076
        %1109 = vst [vmem:[#allocation2 + $0x38] sm:$0xff] %v1077
        %1110 = vst [vmem:[#allocation2 + $0x40] sm:$0xff] %v1078
        %1111 = vst [vmem:[#allocation2 + $0x48] sm:$0xff] %v1079
        %1112 = vst [vmem:[#allocation2 + $0x50] sm:$0xff] %v1080
        %1113 = vst [vmem:[#allocation2 + $0x58] sm:$0xff] %v1081
        %1114 = vst [vmem:[#allocation2 + $0x60] sm:$0xff] %v1082
        %1115 = vst [vmem:[#allocation2 + $0x68] sm:$0xff] %v1083
        %1116 = vst [vmem:[#allocation2 + $0x70] sm:$0xff] %v1084
        %1117 = vst [vmem:[#allocation2 + $0x78] sm:$0xff] %v1085
        %1118 = vst [vmem:[#allocation2 + $0x80] sm:$0xff] %v1086
        %1119 = vst [vmem:[#allocation2 + $0x88] sm:$0xff] %v1087
        %1120 = vst [vmem:[#allocation2 + $0x90] sm:$0xff] %v1088
        %1121 = vst [vmem:[#allocation2 + $0x98] sm:$0xff] %v1089
        %1122 = vst [vmem:[#allocation2 + $0xa0] sm:$0xff] %v1090
        %1123 = vst [vmem:[#allocation2 + $0xa8] sm:$0xff] %v1091
        %1124 = vst [vmem:[#allocation2 + $0xb0] sm:$0xff] %v1092
        %1125 = vst [vmem:[#allocation2 + $0xb8] sm:$0xff] %v1093
        %1126 = vst [vmem:[#allocation2 + $0xc0] sm:$0xff] %v1094
        %1127 = vst [vmem:[#allocation2 + $0xc8] sm:$0xff] %v1095
        %1128 = vst [vmem:[#allocation2 + $0xd0] sm:$0xff] %v1096
        %1129 = vst [vmem:[#allocation2 + $0xd8] sm:$0xff] %v1097
        %1130 = vst [vmem:[#allocation2 + $0xe0] sm:$0xff] %v1098
        %1131 = vst [vmem:[#allocation2 + $0xe8] sm:$0xff] %v1099
        %1132 = vst [vmem:[#allocation2 + $0xf0] sm:$0xff] %v1100
        %1133 = vst [vmem:[#allocation2 + $0xf8] sm:$0xff] %v1101
        %v1134 = vld [vmem:[#allocation2] ss:$2 sm:$0xff]
        %s1135 = scalar_lea.vmem [#allocation2], 16
        %v1136 = vld [vmem:[%s1135] ss:$2 sm:$0xff]
        %s1137 = scalar_lea.vmem [#allocation2], 32
        %v1138 = vld [vmem:[%s1137] ss:$2 sm:$0xff]
        %s1139 = scalar_lea.vmem [#allocation2], 48
        %v1140 = vld [vmem:[%s1139] ss:$2 sm:$0xff]
        %s1141 = scalar_lea.vmem [#allocation2], 64
        %v1142 = vld [vmem:[%s1141] ss:$2 sm:$0xff]
        %s1143 = scalar_lea.vmem [#allocation2], 80
        %v1144 = vld [vmem:[%s1143] ss:$2 sm:$0xff]
        %s1145 = scalar_lea.vmem [#allocation2], 96
        %v1146 = vld [vmem:[%s1145] ss:$2 sm:$0xff]
        %s1147 = scalar_lea.vmem [#allocation2], 112
        %v1148 = vld [vmem:[%s1147] ss:$2 sm:$0xff]
        %s1149 = scalar_lea.vmem [#allocation2], 128
        %v1150 = vld [vmem:[%s1149] ss:$2 sm:$0xff]
        %s1151 = scalar_lea.vmem [#allocation2], 144
        %v1152 = vld [vmem:[%s1151] ss:$2 sm:$0xff]
        %s1153 = scalar_lea.vmem [#allocation2], 160
        %v1154 = vld [vmem:[%s1153] ss:$2 sm:$0xff]
        %s1155 = scalar_lea.vmem [#allocation2], 176
        %v1156 = vld [vmem:[%s1155] ss:$2 sm:$0xff]
        %s1157 = scalar_lea.vmem [#allocation2], 192
        %v1158 = vld [vmem:[%s1157] ss:$2 sm:$0xff]
        %s1159 = scalar_lea.vmem [#allocation2], 208
        %v1160 = vld [vmem:[%s1159] ss:$2 sm:$0xff]
        %s1161 = scalar_lea.vmem [#allocation2], 224
        %v1162 = vld [vmem:[%s1161] ss:$2 sm:$0xff]
        %s1163 = scalar_lea.vmem [#allocation2], 240
        %v1164 = vld [vmem:[%s1163] ss:$2 sm:$0xff]
        %v1165 = vpack.c.bf16 %v1136, %v1134
        %v1166 = vpack.c.bf16 %v1140, %v1138
        %v1167 = vpack.c.bf16 %v1144, %v1142
        %v1168 = vpack.c.bf16 %v1148, %v1146
        %v1169 = vpack.c.bf16 %v1152, %v1150
        %v1170 = vpack.c.bf16 %v1156, %v1154
        %v1171 = vpack.c.bf16 %v1160, %v1158
        %v1172 = vpack.c.bf16 %v1164, %v1162
        %s1173 = scalar_lea.vmem [#allocation2], 1
        %v1174 = vld [vmem:[%s1173] ss:$2 sm:$0xff]
        %s1175 = scalar_lea.vmem [#allocation2], 17
        %v1176 = vld [vmem:[%s1175] ss:$2 sm:$0xff]
        %s1177 = scalar_lea.vmem [#allocation2], 33
        %v1178 = vld [vmem:[%s1177] ss:$2 sm:$0xff]
        %s1179 = scalar_lea.vmem [#allocation2], 49
        %v1180 = vld [vmem:[%s1179] ss:$2 sm:$0xff]
        %s1181 = scalar_lea.vmem [#allocation2], 65
        %v1182 = vld [vmem:[%s1181] ss:$2 sm:$0xff]
        %s1183 = scalar_lea.vmem [#allocation2], 81
        %v1184 = vld [vmem:[%s1183] ss:$2 sm:$0xff]
        %s1185 = scalar_lea.vmem [#allocation2], 97
        %v1186 = vld [vmem:[%s1185] ss:$2 sm:$0xff]
        %s1187 = scalar_lea.vmem [#allocation2], 113
        %v1188 = vld [vmem:[%s1187] ss:$2 sm:$0xff]
        %s1189 = scalar_lea.vmem [#allocation2], 129
        %v1190 = vld [vmem:[%s1189] ss:$2 sm:$0xff]
        %s1191 = scalar_lea.vmem [#allocation2], 145
        %v1192 = vld [vmem:[%s1191] ss:$2 sm:$0xff]
        %s1193 = scalar_lea.vmem [#allocation2], 161
        %v1194 = vld [vmem:[%s1193] ss:$2 sm:$0xff]
        %s1195 = scalar_lea.vmem [#allocation2], 177
        %v1196 = vld [vmem:[%s1195] ss:$2 sm:$0xff]
        %s1197 = scalar_lea.vmem [#allocation2], 193
        %v1198 = vld [vmem:[%s1197] ss:$2 sm:$0xff]
        %s1199 = scalar_lea.vmem [#allocation2], 209
        %v1200 = vld [vmem:[%s1199] ss:$2 sm:$0xff]
        %s1201 = scalar_lea.vmem [#allocation2], 225
        %v1202 = vld [vmem:[%s1201] ss:$2 sm:$0xff]
        %s1203 = scalar_lea.vmem [#allocation2], 241
        %v1204 = vld [vmem:[%s1203] ss:$2 sm:$0xff]
        %v1205 = vpack.c.bf16 %v1176, %v1174
        %v1206 = vpack.c.bf16 %v1180, %v1178
        %v1207 = vpack.c.bf16 %v1184, %v1182
        %v1208 = vpack.c.bf16 %v1188, %v1186
        %v1209 = vpack.c.bf16 %v1192, %v1190
        %v1210 = vpack.c.bf16 %v1196, %v1194
        %v1211 = vpack.c.bf16 %v1200, %v1198
        %v1212 = vpack.c.bf16 %v1204, %v1202
        %s1213 = scalar_lea.vmem [#allocation2], 2
        %v1214 = vld [vmem:[%s1213] ss:$2 sm:$0xff]
        %s1215 = scalar_lea.vmem [#allocation2], 18
        %v1216 = vld [vmem:[%s1215] ss:$2 sm:$0xff]
        %s1217 = scalar_lea.vmem [#allocation2], 34
        %v1218 = vld [vmem:[%s1217] ss:$2 sm:$0xff]
        %s1219 = scalar_lea.vmem [#allocation2], 50
        %v1220 = vld [vmem:[%s1219] ss:$2 sm:$0xff]
        %s1221 = scalar_lea.vmem [#allocation2], 66
        %v1222 = vld [vmem:[%s1221] ss:$2 sm:$0xff]
        %s1223 = scalar_lea.vmem [#allocation2], 82
        %v1224 = vld [vmem:[%s1223] ss:$2 sm:$0xff]
        %s1225 = scalar_lea.vmem [#allocation2], 98
        %v1226 = vld [vmem:[%s1225] ss:$2 sm:$0xff]
        %s1227 = scalar_lea.vmem [#allocation2], 114
        %v1228 = vld [vmem:[%s1227] ss:$2 sm:$0xff]
        %s1229 = scalar_lea.vmem [#allocation2], 130
        %v1230 = vld [vmem:[%s1229] ss:$2 sm:$0xff]
        %s1231 = scalar_lea.vmem [#allocation2], 146
        %v1232 = vld [vmem:[%s1231] ss:$2 sm:$0xff]
        %s1233 = scalar_lea.vmem [#allocation2], 162
        %v1234 = vld [vmem:[%s1233] ss:$2 sm:$0xff]
        %s1235 = scalar_lea.vmem [#allocation2], 178
        %v1236 = vld [vmem:[%s1235] ss:$2 sm:$0xff]
        %s1237 = scalar_lea.vmem [#allocation2], 194
        %v1238 = vld [vmem:[%s1237] ss:$2 sm:$0xff]
        %s1239 = scalar_lea.vmem [#allocation2], 210
        %v1240 = vld [vmem:[%s1239] ss:$2 sm:$0xff]
        %s1241 = scalar_lea.vmem [#allocation2], 226
        %v1242 = vld [vmem:[%s1241] ss:$2 sm:$0xff]
        %s1243 = scalar_lea.vmem [#allocation2], 242
        %v1244 = vld [vmem:[%s1243] ss:$2 sm:$0xff]
        %v1245 = vpack.c.bf16 %v1216, %v1214
        %v1246 = vpack.c.bf16 %v1220, %v1218
        %v1247 = vpack.c.bf16 %v1224, %v1222
        %v1248 = vpack.c.bf16 %v1228, %v1226
        %v1249 = vpack.c.bf16 %v1232, %v1230
        %v1250 = vpack.c.bf16 %v1236, %v1234
        %v1251 = vpack.c.bf16 %v1240, %v1238
        %v1252 = vpack.c.bf16 %v1244, %v1242
        %v1253 = vld [vmem:[#allocation5] sm:$0xf]
        %v1254 = vld [vmem:[#allocation5 + $0x4] sm:$0xf]
        %v1255 = vld [vmem:[#allocation5 + $0x8] sm:$0xf]
        %v1256 = vld [vmem:[#allocation5 + $0xc] sm:$0xf]
        %v1257 = vld [vmem:[#allocation5 + $0x10] sm:$0xf]
        %v1258 = vld [vmem:[#allocation5 + $0x14] sm:$0xf]
        %v1259 = vld [vmem:[#allocation5 + $0x18] sm:$0xf]
        %v1260 = vld [vmem:[#allocation5 + $0x1c] sm:$0xf]
        %v1261 = vld [vmem:[#allocation5 + $0x20] sm:$0xf]
        %v1262 = vld [vmem:[#allocation5 + $0x24] sm:$0xf]
        %v1263 = vld [vmem:[#allocation5 + $0x28] sm:$0xf]
        %v1264 = vld [vmem:[#allocation5 + $0x2c] sm:$0xf]
        %v1265 = vld [vmem:[#allocation5 + $0x30] sm:$0xf]
        %v1266 = vld [vmem:[#allocation5 + $0x34] sm:$0xf]
        %v1267 = vld [vmem:[#allocation5 + $0x38] sm:$0xf]
        %v1268 = vld [vmem:[#allocation5 + $0x3c] sm:$0xf]
        %v1269 = vld [vmem:[#allocation5 + $0x40] sm:$0xf]
        %v1270 = vld [vmem:[#allocation5 + $0x44] sm:$0xf]
        %v1271 = vld [vmem:[#allocation5 + $0x48] sm:$0xf]
        %v1272 = vld [vmem:[#allocation5 + $0x4c] sm:$0xf]
        %v1273 = vld [vmem:[#allocation5 + $0x50] sm:$0xf]
        %v1274 = vld [vmem:[#allocation5 + $0x54] sm:$0xf]
        %v1275 = vld [vmem:[#allocation5 + $0x58] sm:$0xf]
        %v1276 = vld [vmem:[#allocation5 + $0x5c] sm:$0xf]
        %v1277 = vld [vmem:[#allocation5 + $0x60] sm:$0xf]
        %v1278 = vld [vmem:[#allocation5 + $0x64] sm:$0xf]
        %v1279 = vld [vmem:[#allocation5 + $0x68] sm:$0xf]
        %v1280 = vld [vmem:[#allocation5 + $0x6c] sm:$0xf]
        %v1281 = vld [vmem:[#allocation5 + $0x70] sm:$0xf]
        %v1282 = vld [vmem:[#allocation5 + $0x74] sm:$0xf]
        %v1283 = vld [vmem:[#allocation5 + $0x78] sm:$0xf]
        %v1284 = vld [vmem:[#allocation5 + $0x7c] sm:$0xf]
        %v1285 = vld [vmem:[#allocation5 + $0x80] sm:$0xf]
        %v1286 = vld [vmem:[#allocation5 + $0x84] sm:$0xf]
        %v1287 = vld [vmem:[#allocation5 + $0x88] sm:$0xf]
        %v1288 = vld [vmem:[#allocation5 + $0x8c] sm:$0xf]
        %v1289 = vld [vmem:[#allocation5 + $0x90] sm:$0xf]
        %v1290 = vld [vmem:[#allocation5 + $0x94] sm:$0xf]
        %v1291 = vld [vmem:[#allocation5 + $0x98] sm:$0xf]
        %v1292 = vld [vmem:[#allocation5 + $0x9c] sm:$0xf]
        %v1293 = vld [vmem:[#allocation5 + $0xa0] sm:$0xf]
        %v1294 = vld [vmem:[#allocation5 + $0xa4] sm:$0xf]
        %v1295 = vld [vmem:[#allocation5 + $0xa8] sm:$0xf]
        %v1296 = vld [vmem:[#allocation5 + $0xac] sm:$0xf]
        %v1297 = vld [vmem:[#allocation5 + $0xb0] sm:$0xf]
        %v1298 = vld [vmem:[#allocation5 + $0xb4] sm:$0xf]
        %v1299 = vld [vmem:[#allocation5 + $0xb8] sm:$0xf]
        %v1300 = vld [vmem:[#allocation5 + $0xbc] sm:$0xf]
        %s1301 = scalar_lea.vmem %s3, 1
        %v1302 = vld [vmem:[%s1301] sm:$0x1]
        %v1304 = vlaneseq
        %v1305 = vshrl.u32 %v1304, 7
        %v1306 = vsub.s32 0, %v1305
        %v1307 = vrot.slane %v1302, %v1306
        %v1357 = vunpack.c.l.b16 %v1253
        %v1358 = vunpack.c.l.b16 %v1254
        %v1359 = vunpack.c.l.b16 %v1255
        %v1360 = vunpack.c.l.b16 %v1256
        %v1361 = vunpack.c.l.b16 %v1257
        %v1362 = vunpack.c.l.b16 %v1258
        %v1363 = vunpack.c.l.b16 %v1259
        %v1364 = vunpack.c.l.b16 %v1260
        %v1365 = vunpack.c.l.b16 %v1261
        %v1366 = vunpack.c.l.b16 %v1262
        %v1367 = vunpack.c.l.b16 %v1263
        %v1368 = vunpack.c.l.b16 %v1264
        %v1369 = vunpack.c.l.b16 %v1265
        %v1370 = vunpack.c.l.b16 %v1266
        %v1371 = vunpack.c.l.b16 %v1267
        %v1372 = vunpack.c.l.b16 %v1268
        %v1373 = vunpack.c.l.b16 %v1269
        %v1374 = vunpack.c.l.b16 %v1270
        %v1375 = vunpack.c.l.b16 %v1271
        %v1376 = vunpack.c.l.b16 %v1272
        %v1377 = vunpack.c.l.b16 %v1273
        %v1378 = vunpack.c.l.b16 %v1274
        %v1379 = vunpack.c.l.b16 %v1275
        %v1380 = vunpack.c.l.b16 %v1276
        %v1381 = vunpack.c.l.b16 %v1277
        %v1382 = vunpack.c.l.b16 %v1278
        %v1383 = vunpack.c.l.b16 %v1279
        %v1384 = vunpack.c.l.b16 %v1280
        %v1385 = vunpack.c.l.b16 %v1281
        %v1386 = vunpack.c.l.b16 %v1282
        %v1387 = vunpack.c.l.b16 %v1283
        %v1388 = vunpack.c.l.b16 %v1284
        %v1389 = vunpack.c.l.b16 %v1285
        %v1390 = vunpack.c.l.b16 %v1286
        %v1391 = vunpack.c.l.b16 %v1287
        %v1392 = vunpack.c.l.b16 %v1288
        %v1393 = vunpack.c.l.b16 %v1289
        %v1394 = vunpack.c.l.b16 %v1290
        %v1395 = vunpack.c.l.b16 %v1291
        %v1396 = vunpack.c.l.b16 %v1292
        %v1397 = vunpack.c.l.b16 %v1293
        %v1398 = vunpack.c.l.b16 %v1294
        %v1399 = vunpack.c.l.b16 %v1295
        %v1400 = vunpack.c.l.b16 %v1296
        %v1401 = vunpack.c.l.b16 %v1297
        %v1402 = vunpack.c.l.b16 %v1298
        %v1403 = vunpack.c.l.b16 %v1299
        %v1404 = vunpack.c.l.b16 %v1300
        %v1405 = vpack.c.b16 %v1358, %v1357
        %v1406 = vpack.c.b16 %v1360, %v1359
        %v1407 = vpack.c.b16 %v1362, %v1361
        %v1408 = vpack.c.b16 %v1364, %v1363
        %v1409 = vpack.c.b16 %v1366, %v1365
        %v1410 = vpack.c.b16 %v1368, %v1367
        %v1411 = vpack.c.b16 %v1370, %v1369
        %v1412 = vpack.c.b16 %v1372, %v1371
        %v1413 = vpack.c.b16 %v1374, %v1373
        %v1414 = vpack.c.b16 %v1376, %v1375
        %v1415 = vpack.c.b16 %v1378, %v1377
        %v1416 = vpack.c.b16 %v1380, %v1379
        %v1417 = vpack.c.b16 %v1382, %v1381
        %v1418 = vpack.c.b16 %v1384, %v1383
        %v1419 = vpack.c.b16 %v1386, %v1385
        %v1420 = vpack.c.b16 %v1388, %v1387
        %v1421 = vpack.c.b16 %v1390, %v1389
        %v1422 = vpack.c.b16 %v1392, %v1391
        %v1423 = vpack.c.b16 %v1394, %v1393
        %v1424 = vpack.c.b16 %v1396, %v1395
        %v1425 = vpack.c.b16 %v1398, %v1397
        %v1426 = vpack.c.b16 %v1400, %v1399
        %v1427 = vpack.c.b16 %v1402, %v1401
        %v1428 = vpack.c.b16 %v1404, %v1403
        %1453 = vmatprep.subr.bf16.mxu0 0
        %1454 = vmatpush1.bf16.msra.mxu0 %v1405
        %1455 = vmatprep.subr.bf16.mxu0 0
        %1456 = vmatpush1.bf16.msra.mxu0 %v1406
        %1457 = vmatprep.subr.bf16.mxu0 0
        %1458 = vmatpush1.bf16.msra.mxu0 %v1407
        %1459 = vmatprep.subr.bf16.mxu0 0
        %1460 = vmatpush1.bf16.msra.mxu0 %v1408
        %1461 = vmatprep.subr.bf16.mxu0 0
        %1462 = vmatpush1.bf16.msra.mxu0 %v1409
        %1463 = vmatprep.subr.bf16.mxu0 0
        %1464 = vmatpush1.bf16.msra.mxu0 %v1410
        %1465 = vmatprep.subr.bf16.mxu0 0
        %1466 = vmatpush1.bf16.msra.mxu0 %v1411
        %1467 = vmatprep.subr.bf16.mxu0 0
        %1468 = vmatpush1.bf16.msra.mxu0 %v1412
        %1469 = vmatprep.subr.bf16.mxu0 0
        %1470 = vmatpush1.bf16.msra.mxu0 %v1413
        %1471 = vmatprep.subr.bf16.mxu0 0
        %1472 = vmatpush1.bf16.msra.mxu0 %v1414
        %1473 = vmatprep.subr.bf16.mxu0 0
        %1474 = vmatpush1.bf16.msra.mxu0 %v1415
        %1475 = vmatprep.subr.bf16.mxu0 0
        %1476 = vmatpush1.bf16.msra.mxu0 %v1416
        %1477 = vmatprep.subr.bf16.mxu0 0
        %1478 = vmatpush1.bf16.msra.mxu0 %v1417
        %1479 = vmatprep.subr.bf16.mxu0 0
        %1480 = vmatpush1.bf16.msra.mxu0 %v1418
        %1481 = vmatprep.subr.bf16.mxu0 0
        %1482 = vmatpush1.bf16.msra.mxu0 %v1419
        %1483 = vmatprep.subr.bf16.mxu0 0
        %1484 = vmatpush1.bf16.msra.mxu0 %v1420
        %1485 = vmatprep.mubr.bf16.mxu0 %v1205
        %1486 = vmatmul.mubr.bf16.gmra.mrb[0].mxu0 %v1165
        %v1487 = vpop.f32.mrb[0].mxu0
        %v1488 = vadd.f32 %v1307, %v1487
        %v1489 = vpop.f32.mrb[0].mxu0
        %v1490 = vpop.f32.mrb[0].mxu0
        %v1491 = vadd.f32 %v1307, %v1490
        %v1492 = vpop.f32.mrb[0].mxu0
        %1493 = vmatprep.mubr.bf16.mxu0 %v1206
        %1494 = vmatmul.mubr.bf16.gmra.mrb[0].mxu0 %v1166
        %v1495 = vpop.f32.mrb[0].mxu0
        %v1496 = vadd.f32 %v1307, %v1495
        %v1497 = vpop.f32.mrb[0].mxu0
        %v1498 = vpop.f32.mrb[0].mxu0
        %v1499 = vadd.f32 %v1307, %v1498
        %v1500 = vpop.f32.mrb[0].mxu0
        %1501 = vmatprep.mubr.bf16.mxu0 %v1207
        %1502 = vmatmul.mubr.bf16.gmra.mrb[0].mxu0 %v1167
        %v1503 = vpop.f32.mrb[0].mxu0
        %v1504 = vadd.f32 %v1307, %v1503
        %v1505 = vpop.f32.mrb[0].mxu0
        %v1506 = vpop.f32.mrb[0].mxu0
        %v1507 = vadd.f32 %v1307, %v1506
        %v1508 = vpop.f32.mrb[0].mxu0
        %1509 = vmatprep.mubr.bf16.mxu0 %v1208
        %1510 = vmatmul.mubr.bf16.gmra.mrb[0].mxu0 %v1168
        %v1511 = vpop.f32.mrb[0].mxu0
        %v1512 = vadd.f32 %v1307, %v1511
        %v1513 = vpop.f32.mrb[0].mxu0
        %v1514 = vpop.f32.mrb[0].mxu0
        %v1515 = vadd.f32 %v1307, %v1514
        %v1516 = vpop.f32.mrb[0].mxu0
        %1517 = vmatprep.mubr.bf16.mxu0 %v1209
        %1518 = vmatmul.mubr.bf16.gmra.mrb[0].mxu0 %v1169
        %v1519 = vpop.f32.mrb[0].mxu0
        %v1520 = vadd.f32 %v1307, %v1519
        %v1521 = vpop.f32.mrb[0].mxu0
        %v1522 = vpop.f32.mrb[0].mxu0
        %v1523 = vadd.f32 %v1307, %v1522
        %v1524 = vpop.f32.mrb[0].mxu0
        %1525 = vmatprep.mubr.bf16.mxu0 %v1210
        %1526 = vmatmul.mubr.bf16.gmra.mrb[0].mxu0 %v1170
        %v1527 = vpop.f32.mrb[0].mxu0
        %v1528 = vadd.f32 %v1307, %v1527
        %v1529 = vpop.f32.mrb[0].mxu0
        %v1530 = vpop.f32.mrb[0].mxu0
        %v1531 = vadd.f32 %v1307, %v1530
        %v1532 = vpop.f32.mrb[0].mxu0
        %1533 = vmatprep.mubr.bf16.mxu0 %v1211
        %1534 = vmatmul.mubr.bf16.gmra.mrb[0].mxu0 %v1171
        %v1535 = vpop.f32.mrb[0].mxu0
        %v1536 = vadd.f32 %v1307, %v1535
        %v1537 = vpop.f32.mrb[0].mxu0
        %v1538 = vpop.f32.mrb[0].mxu0
        %v1539 = vadd.f32 %v1307, %v1538
        %v1540 = vpop.f32.mrb[0].mxu0
        %1541 = vmatprep.mubr.bf16.mxu0 %v1212
        %1542 = vmatmul.mubr.bf16.gmra.mrb[0].mxu0 %v1172
        %v1543 = vpop.f32.mrb[0].mxu0
        %v1544 = vadd.f32 %v1307, %v1543
        %v1545 = vpop.f32.mrb[0].mxu0
        %v1546 = vpop.f32.mrb[0].mxu0
        %v1547 = vadd.f32 %v1307, %v1546
        %v1548 = vpop.f32.mrb[0].mxu0
        %1549 = vdwg.mxu0
        %1550 = vmatprep.subr.bf16.mxu0 0
        %1551 = vmatpush1.bf16.msra.mxu0 %v1421
        %1552 = vmatprep.subr.bf16.mxu0 0
        %1553 = vmatpush1.bf16.msra.mxu0 %v1422
        %1554 = vmatprep.subr.bf16.mxu0 0
        %1555 = vmatpush1.bf16.msra.mxu0 %v1423
        %1556 = vmatprep.subr.bf16.mxu0 0
        %1557 = vmatpush1.bf16.msra.mxu0 %v1424
        %1558 = vmatprep.subr.bf16.mxu0 0
        %1559 = vmatpush1.bf16.msra.mxu0 %v1425
        %1560 = vmatprep.subr.bf16.mxu0 0
        %1561 = vmatpush1.bf16.msra.mxu0 %v1426
        %1562 = vmatprep.subr.bf16.mxu0 0
        %1563 = vmatpush1.bf16.msra.mxu0 %v1427
        %1564 = vmatprep.subr.bf16.mxu0 0
        %1565 = vmatpush1.bf16.msra.mxu0 %v1428
        %1566 = vmatprep.subr.bf16.mxu0 0
        %1567 = vmatpush1.bf16.msra.mxu0 0
        %1568 = vmatprep.subr.bf16.mxu0 0
        %1569 = vmatpush1.bf16.msra.mxu0 0
        %1570 = vmatprep.subr.bf16.mxu0 0
        %1571 = vmatpush1.bf16.msra.mxu0 0
        %1572 = vmatprep.subr.bf16.mxu0 0
        %1573 = vmatpush1.bf16.msra.mxu0 0
        %1574 = vmatprep.subr.bf16.mxu0 0
        %1575 = vmatpush1.bf16.msra.mxu0 0
        %1576 = vmatprep.subr.bf16.mxu0 0
        %1577 = vmatpush1.bf16.msra.mxu0 0
        %1578 = vmatprep.subr.bf16.mxu0 0
        %1579 = vmatpush1.bf16.msra.mxu0 0
        %1580 = vmatprep.subr.bf16.mxu0 0
        %1581 = vmatpush1.bf16.msra.mxu0 0
        %1582 = vmatprep.mubr.bf16.mxu0 0
        %1583 = vmatmul.mubr.bf16.gmra.mrb[0].mxu0 %v1245
        %v1584 = vpop.f32.mrb[0].mxu0
        %v1585 = vadd.f32 %v1488, %v1584
        %v1586 = vpop.f32.mrb[0].mxu0
        %v1587 = vpop.f32.mrb[0].mxu0
        %v1588 = vadd.f32 %v1491, %v1587
        %v1589 = vpop.f32.mrb[0].mxu0
        %1590 = vmatprep.mubr.bf16.mxu0 0
        %1591 = vmatmul.mubr.bf16.gmra.mrb[0].mxu0 %v1246
        %v1592 = vpop.f32.mrb[0].mxu0
        %v1593 = vadd.f32 %v1496, %v1592
        %v1594 = vpop.f32.mrb[0].mxu0
        %v1595 = vpop.f32.mrb[0].mxu0
        %v1596 = vadd.f32 %v1499, %v1595
        %v1597 = vpop.f32.mrb[0].mxu0
        %1598 = vmatprep.mubr.bf16.mxu0 0
        %1599 = vmatmul.mubr.bf16.gmra.mrb[0].mxu0 %v1247
        %v1600 = vpop.f32.mrb[0].mxu0
        %v1601 = vadd.f32 %v1504, %v1600
        %v1602 = vpop.f32.mrb[0].mxu0
        %v1603 = vpop.f32.mrb[0].mxu0
        %v1604 = vadd.f32 %v1507, %v1603
        %v1605 = vpop.f32.mrb[0].mxu0
        %1606 = vmatprep.mubr.bf16.mxu0 0
        %1607 = vmatmul.mubr.bf16.gmra.mrb[0].mxu0 %v1248
        %v1608 = vpop.f32.mrb[0].mxu0
        %v1609 = vadd.f32 %v1512, %v1608
        %v1610 = vpop.f32.mrb[0].mxu0
        %v1611 = vpop.f32.mrb[0].mxu0
        %v1612 = vadd.f32 %v1515, %v1611
        %v1613 = vpop.f32.mrb[0].mxu0
        %1614 = vmatprep.mubr.bf16.mxu0 0
        %1615 = vmatmul.mubr.bf16.gmra.mrb[0].mxu0 %v1249
        %v1616 = vpop.f32.mrb[0].mxu0
        %v1617 = vadd.f32 %v1520, %v1616
        %v1618 = vpop.f32.mrb[0].mxu0
        %v1619 = vpop.f32.mrb[0].mxu0
        %v1620 = vadd.f32 %v1523, %v1619
        %v1621 = vpop.f32.mrb[0].mxu0
        %1622 = vmatprep.mubr.bf16.mxu0 0
        %1623 = vmatmul.mubr.bf16.gmra.mrb[0].mxu0 %v1250
        %v1624 = vpop.f32.mrb[0].mxu0
        %v1625 = vadd.f32 %v1528, %v1624
        %v1626 = vpop.f32.mrb[0].mxu0
        %v1627 = vpop.f32.mrb[0].mxu0
        %v1628 = vadd.f32 %v1531, %v1627
        %v1629 = vpop.f32.mrb[0].mxu0
        %1630 = vmatprep.mubr.bf16.mxu0 0
        %1631 = vmatmul.mubr.bf16.gmra.mrb[0].mxu0 %v1251
        %v1632 = vpop.f32.mrb[0].mxu0
        %v1633 = vadd.f32 %v1536, %v1632
        %v1634 = vpop.f32.mrb[0].mxu0
        %v1635 = vpop.f32.mrb[0].mxu0
        %v1636 = vadd.f32 %v1539, %v1635
        %v1637 = vpop.f32.mrb[0].mxu0
        %1638 = vmatprep.mubr.bf16.mxu0 0
        %1639 = vmatmul.mubr.bf16.gmra.mrb[0].mxu0 %v1252
        %v1640 = vpop.f32.mrb[0].mxu0
        %v1641 = vadd.f32 %v1544, %v1640
        %v1642 = vpop.f32.mrb[0].mxu0
        %v1643 = vpop.f32.mrb[0].mxu0
        %v1644 = vadd.f32 %v1547, %v1643
        %v1645 = vpop.f32.mrb[0].mxu0
        %1646 = vdwg.mxu0
        %v1647 = vmax.f32 %v1585, 0.0
        %v1648 = vmax.f32 %v1588, 0.0
        %v1649 = vmax.f32 %v1593, 0.0
        %v1650 = vmax.f32 %v1596, 0.0
        %v1651 = vmax.f32 %v1601, 0.0
        %v1652 = vmax.f32 %v1604, 0.0
        %v1653 = vmax.f32 %v1609, 0.0
        %v1654 = vmax.f32 %v1612, 0.0
        %v1655 = vmax.f32 %v1617, 0.0
        %v1656 = vmax.f32 %v1620, 0.0
        %v1657 = vmax.f32 %v1625, 0.0
        %v1658 = vmax.f32 %v1628, 0.0
        %v1659 = vmax.f32 %v1633, 0.0
        %v1660 = vmax.f32 %v1636, 0.0
        %v1661 = vmax.f32 %v1641, 0.0
        %v1662 = vmax.f32 %v1644, 0.0
        %1663 = vst [vmem:[#allocation3] sm:$0xff] %v1647
        %1664 = vst [vmem:[#allocation3 + $0x8] sm:$0xff] %v1648
        %1665 = vst [vmem:[#allocation3 + $0x10] sm:$0xff] %v1649
        %1666 = vst [vmem:[#allocation3 + $0x18] sm:$0xff] %v1650
        %1667 = vst [vmem:[#allocation3 + $0x20] sm:$0xff] %v1651
        %1668 = vst [vmem:[#allocation3 + $0x28] sm:$0xff] %v1652
        %1669 = vst [vmem:[#allocation3 + $0x30] sm:$0xff] %v1653
        %1670 = vst [vmem:[#allocation3 + $0x38] sm:$0xff] %v1654
        %1671 = vst [vmem:[#allocation3 + $0x40] sm:$0xff] %v1655
        %1672 = vst [vmem:[#allocation3 + $0x48] sm:$0xff] %v1656
        %1673 = vst [vmem:[#allocation3 + $0x50] sm:$0xff] %v1657
        %1674 = vst [vmem:[#allocation3 + $0x58] sm:$0xff] %v1658
        %1675 = vst [vmem:[#allocation3 + $0x60] sm:$0xff] %v1659
        %1676 = vst [vmem:[#allocation3 + $0x68] sm:$0xff] %v1660
        %1677 = vst [vmem:[#allocation3 + $0x70] sm:$0xff] %v1661
        %1678 = vst [vmem:[#allocation3 + $0x78] sm:$0xff] %v1662
        %v1679 = vld [vmem:[#allocation3] ss:$2 sm:$0xff]
        %s1680 = scalar_lea.vmem [#allocation3], 16
        %v1681 = vld [vmem:[%s1680] ss:$2 sm:$0xff]
        %s1682 = scalar_lea.vmem [#allocation3], 32
        %v1683 = vld [vmem:[%s1682] ss:$2 sm:$0xff]
        %s1684 = scalar_lea.vmem [#allocation3], 48
        %v1685 = vld [vmem:[%s1684] ss:$2 sm:$0xff]
        %s1686 = scalar_lea.vmem [#allocation3], 64
        %v1687 = vld [vmem:[%s1686] ss:$2 sm:$0xff]
        %s1688 = scalar_lea.vmem [#allocation3], 80
        %v1689 = vld [vmem:[%s1688] ss:$2 sm:$0xff]
        %s1690 = scalar_lea.vmem [#allocation3], 96
        %v1691 = vld [vmem:[%s1690] ss:$2 sm:$0xff]
        %s1692 = scalar_lea.vmem [#allocation3], 112
        %v1693 = vld [vmem:[%s1692] ss:$2 sm:$0xff]
        %v1694 = vpack.c.bf16 %v1681, %v1679
        %v1695 = vpack.c.bf16 %v1685, %v1683
        %v1696 = vpack.c.bf16 %v1689, %v1687
        %v1697 = vpack.c.bf16 %v1693, %v1691
        %s1698 = scalar_lea.vmem [#allocation3], 1
        %v1699 = vld [vmem:[%s1698] ss:$2 sm:$0xff]
        %s1700 = scalar_lea.vmem [#allocation3], 17
        %v1701 = vld [vmem:[%s1700] ss:$2 sm:$0xff]
        %s1702 = scalar_lea.vmem [#allocation3], 33
        %v1703 = vld [vmem:[%s1702] ss:$2 sm:$0xff]
        %s1704 = scalar_lea.vmem [#allocation3], 49
        %v1705 = vld [vmem:[%s1704] ss:$2 sm:$0xff]
        %s1706 = scalar_lea.vmem [#allocation3], 65
        %v1707 = vld [vmem:[%s1706] ss:$2 sm:$0xff]
        %s1708 = scalar_lea.vmem [#allocation3], 81
        %v1709 = vld [vmem:[%s1708] ss:$2 sm:$0xff]
        %s1710 = scalar_lea.vmem [#allocation3], 97
        %v1711 = vld [vmem:[%s1710] ss:$2 sm:$0xff]
        %s1712 = scalar_lea.vmem [#allocation3], 113
        %v1713 = vld [vmem:[%s1712] ss:$2 sm:$0xff]
        %v1714 = vpack.c.bf16 %v1701, %v1699
        %v1715 = vpack.c.bf16 %v1705, %v1703
        %v1716 = vpack.c.bf16 %v1709, %v1707
        %v1717 = vpack.c.bf16 %v1713, %v1711
        %s1718 = scalar_lea.vmem [#allocation3], 2
        %v1719 = vld [vmem:[%s1718] ss:$2 sm:$0xff]
        %s1720 = scalar_lea.vmem [#allocation3], 18
        %v1721 = vld [vmem:[%s1720] ss:$2 sm:$0xff]
        %s1722 = scalar_lea.vmem [#allocation3], 34
        %v1723 = vld [vmem:[%s1722] ss:$2 sm:$0xff]
        %s1724 = scalar_lea.vmem [#allocation3], 50
        %v1725 = vld [vmem:[%s1724] ss:$2 sm:$0xff]
        %s1726 = scalar_lea.vmem [#allocation3], 66
        %v1727 = vld [vmem:[%s1726] ss:$2 sm:$0xff]
        %s1728 = scalar_lea.vmem [#allocation3], 82
        %v1729 = vld [vmem:[%s1728] ss:$2 sm:$0xff]
        %s1730 = scalar_lea.vmem [#allocation3], 98
        %v1731 = vld [vmem:[%s1730] ss:$2 sm:$0xff]
        %s1732 = scalar_lea.vmem [#allocation3], 114
        %v1733 = vld [vmem:[%s1732] ss:$2 sm:$0xff]
        %v1734 = vpack.c.bf16 %v1721, %v1719
        %v1735 = vpack.c.bf16 %v1725, %v1723
        %v1736 = vpack.c.bf16 %v1729, %v1727
        %v1737 = vpack.c.bf16 %v1733, %v1731
        %s1738 = scalar_lea.vmem [#allocation5], 192
        %v1739 = vld [vmem:[%s1738] sm:$0xf]
        %v1740 = vld [vmem:[%s1738 + $0x4] sm:$0xf]
        %v1741 = vld [vmem:[%s1738 + $0x8] sm:$0xf]
        %v1742 = vld [vmem:[%s1738 + $0xc] sm:$0xf]
        %v1743 = vld [vmem:[%s1738 + $0x10] sm:$0xf]
        %v1744 = vld [vmem:[%s1738 + $0x14] sm:$0xf]
        %v1745 = vld [vmem:[%s1738 + $0x18] sm:$0xf]
        %v1746 = vld [vmem:[%s1738 + $0x1c] sm:$0xf]
        %v1747 = vld [vmem:[%s1738 + $0x20] sm:$0xf]
        %v1748 = vld [vmem:[%s1738 + $0x24] sm:$0xf]
        %v1749 = vld [vmem:[%s1738 + $0x28] sm:$0xf]
        %v1750 = vld [vmem:[%s1738 + $0x2c] sm:$0xf]
        %v1751 = vld [vmem:[%s1738 + $0x30] sm:$0xf]
        %v1752 = vld [vmem:[%s1738 + $0x34] sm:$0xf]
        %v1753 = vld [vmem:[%s1738 + $0x38] sm:$0xf]
        %v1754 = vld [vmem:[%s1738 + $0x3c] sm:$0xf]
        %v1755 = vld [vmem:[%s1738 + $0x40] sm:$0xf]
        %v1756 = vld [vmem:[%s1738 + $0x44] sm:$0xf]
        %v1757 = vld [vmem:[%s1738 + $0x48] sm:$0xf]
        %v1758 = vld [vmem:[%s1738 + $0x4c] sm:$0xf]
        %v1759 = vld [vmem:[%s1738 + $0x50] sm:$0xf]
        %v1760 = vld [vmem:[%s1738 + $0x54] sm:$0xf]
        %v1761 = vld [vmem:[%s1738 + $0x58] sm:$0xf]
        %v1762 = vld [vmem:[%s1738 + $0x5c] sm:$0xf]
        %v1763 = vld [vmem:[%s1738 + $0x60] sm:$0xf]
        %v1764 = vld [vmem:[%s1738 + $0x64] sm:$0xf]
        %v1765 = vld [vmem:[%s1738 + $0x68] sm:$0xf]
        %v1766 = vld [vmem:[%s1738 + $0x6c] sm:$0xf]
        %v1767 = vld [vmem:[%s1738 + $0x70] sm:$0xf]
        %v1768 = vld [vmem:[%s1738 + $0x74] sm:$0xf]
        %v1769 = vld [vmem:[%s1738 + $0x78] sm:$0xf]
        %v1770 = vld [vmem:[%s1738 + $0x7c] sm:$0xf]
        %v1771 = vld [vmem:[%s1738 + $0x80] sm:$0xf]
        %v1772 = vld [vmem:[%s1738 + $0x84] sm:$0xf]
        %v1773 = vld [vmem:[%s1738 + $0x88] sm:$0xf]
        %v1774 = vld [vmem:[%s1738 + $0x8c] sm:$0xf]
        %v1775 = vld [vmem:[%s1738 + $0x90] sm:$0xf]
        %v1776 = vld [vmem:[%s1738 + $0x94] sm:$0xf]
        %v1777 = vld [vmem:[%s1738 + $0x98] sm:$0xf]
        %v1778 = vld [vmem:[%s1738 + $0x9c] sm:$0xf]
        %v1779 = vld [vmem:[%s1738 + $0xa0] sm:$0xf]
        %v1780 = vld [vmem:[%s1738 + $0xa4] sm:$0xf]
        %v1781 = vld [vmem:[%s1738 + $0xa8] sm:$0xf]
        %v1782 = vld [vmem:[%s1738 + $0xac] sm:$0xf]
        %v1783 = vld [vmem:[%s1738 + $0xb0] sm:$0xf]
        %v1784 = vld [vmem:[%s1738 + $0xb4] sm:$0xf]
        %v1785 = vld [vmem:[%s1738 + $0xb8] sm:$0xf]
        %v1786 = vld [vmem:[%s1738 + $0xbc] sm:$0xf]
        %s1787 = scalar_lea.vmem %s3, 2
        %v1788 = vld [vmem:[%s1787] sm:$0x1]
        %v1790 = vlaneseq
        %v1791 = vshrl.u32 %v1790, 7
        %v1792 = vsub.s32 0, %v1791
        %v1793 = vrot.slane %v1788, %v1792
        %v1843 = vunpack.c.l.b16 %v1739
        %v1844 = vunpack.c.l.b16 %v1740
        %v1845 = vunpack.c.l.b16 %v1741
        %v1846 = vunpack.c.l.b16 %v1742
        %v1847 = vunpack.c.l.b16 %v1743
        %v1848 = vunpack.c.l.b16 %v1744
        %v1849 = vunpack.c.l.b16 %v1745
        %v1850 = vunpack.c.l.b16 %v1746
        %v1851 = vunpack.c.l.b16 %v1747
        %v1852 = vunpack.c.l.b16 %v1748
        %v1853 = vunpack.c.l.b16 %v1749
        %v1854 = vunpack.c.l.b16 %v1750
        %v1855 = vunpack.c.l.b16 %v1751
        %v1856 = vunpack.c.l.b16 %v1752
        %v1857 = vunpack.c.l.b16 %v1753
        %v1858 = vunpack.c.l.b16 %v1754
        %v1859 = vunpack.c.l.b16 %v1755
        %v1860 = vunpack.c.l.b16 %v1756
        %v1861 = vunpack.c.l.b16 %v1757
        %v1862 = vunpack.c.l.b16 %v1758
        %v1863 = vunpack.c.l.b16 %v1759
        %v1864 = vunpack.c.l.b16 %v1760
        %v1865 = vunpack.c.l.b16 %v1761
        %v1866 = vunpack.c.l.b16 %v1762
        %v1867 = vunpack.c.l.b16 %v1763
        %v1868 = vunpack.c.l.b16 %v1764
        %v1869 = vunpack.c.l.b16 %v1765
        %v1870 = vunpack.c.l.b16 %v1766
        %v1871 = vunpack.c.l.b16 %v1767
        %v1872 = vunpack.c.l.b16 %v1768
        %v1873 = vunpack.c.l.b16 %v1769
        %v1874 = vunpack.c.l.b16 %v1770
        %v1875 = vunpack.c.l.b16 %v1771
        %v1876 = vunpack.c.l.b16 %v1772
        %v1877 = vunpack.c.l.b16 %v1773
        %v1878 = vunpack.c.l.b16 %v1774
        %v1879 = vunpack.c.l.b16 %v1775
        %v1880 = vunpack.c.l.b16 %v1776
        %v1881 = vunpack.c.l.b16 %v1777
        %v1882 = vunpack.c.l.b16 %v1778
        %v1883 = vunpack.c.l.b16 %v1779
        %v1884 = vunpack.c.l.b16 %v1780
        %v1885 = vunpack.c.l.b16 %v1781
        %v1886 = vunpack.c.l.b16 %v1782
        %v1887 = vunpack.c.l.b16 %v1783
        %v1888 = vunpack.c.l.b16 %v1784
        %v1889 = vunpack.c.l.b16 %v1785
        %v1890 = vunpack.c.l.b16 %v1786
        %v1891 = vpack.c.b16 %v1844, %v1843
        %v1892 = vpack.c.b16 %v1846, %v1845
        %v1893 = vpack.c.b16 %v1848, %v1847
        %v1894 = vpack.c.b16 %v1850, %v1849
        %v1895 = vpack.c.b16 %v1852, %v1851
        %v1896 = vpack.c.b16 %v1854, %v1853
        %v1897 = vpack.c.b16 %v1856, %v1855
        %v1898 = vpack.c.b16 %v1858, %v1857
        %v1899 = vpack.c.b16 %v1860, %v1859
        %v1900 = vpack.c.b16 %v1862, %v1861
        %v1901 = vpack.c.b16 %v1864, %v1863
        %v1902 = vpack.c.b16 %v1866, %v1865
        %v1903 = vpack.c.b16 %v1868, %v1867
        %v1904 = vpack.c.b16 %v1870, %v1869
        %v1905 = vpack.c.b16 %v1872, %v1871
        %v1906 = vpack.c.b16 %v1874, %v1873
        %v1907 = vpack.c.b16 %v1876, %v1875
        %v1908 = vpack.c.b16 %v1878, %v1877
        %v1909 = vpack.c.b16 %v1880, %v1879
        %v1910 = vpack.c.b16 %v1882, %v1881
        %v1911 = vpack.c.b16 %v1884, %v1883
        %v1912 = vpack.c.b16 %v1886, %v1885
        %v1913 = vpack.c.b16 %v1888, %v1887
        %v1914 = vpack.c.b16 %v1890, %v1889
        %1939 = vmatprep.subr.bf16.mxu0 0
        %1940 = vmatpush1.bf16.msra.mxu0 %v1891
        %1941 = vmatprep.subr.bf16.mxu0 0
        %1942 = vmatpush1.bf16.msra.mxu0 %v1892
        %1943 = vmatprep.subr.bf16.mxu0 0
        %1944 = vmatpush1.bf16.msra.mxu0 %v1893
        %1945 = vmatprep.subr.bf16.mxu0 0
        %1946 = vmatpush1.bf16.msra.mxu0 %v1894
        %1947 = vmatprep.subr.bf16.mxu0 0
        %1948 = vmatpush1.bf16.msra.mxu0 %v1895
        %1949 = vmatprep.subr.bf16.mxu0 0
        %1950 = vmatpush1.bf16.msra.mxu0 %v1896
        %1951 = vmatprep.subr.bf16.mxu0 0
        %1952 = vmatpush1.bf16.msra.mxu0 %v1897
        %1953 = vmatprep.subr.bf16.mxu0 0
        %1954 = vmatpush1.bf16.msra.mxu0 %v1898
        %1955 = vmatprep.subr.bf16.mxu0 0
        %1956 = vmatpush1.bf16.msra.mxu0 %v1899
        %1957 = vmatprep.subr.bf16.mxu0 0
        %1958 = vmatpush1.bf16.msra.mxu0 %v1900
        %1959 = vmatprep.subr.bf16.mxu0 0
        %1960 = vmatpush1.bf16.msra.mxu0 %v1901
        %1961 = vmatprep.subr.bf16.mxu0 0
        %1962 = vmatpush1.bf16.msra.mxu0 %v1902
        %1963 = vmatprep.subr.bf16.mxu0 0
        %1964 = vmatpush1.bf16.msra.mxu0 %v1903
        %1965 = vmatprep.subr.bf16.mxu0 0
        %1966 = vmatpush1.bf16.msra.mxu0 %v1904
        %1967 = vmatprep.subr.bf16.mxu0 0
        %1968 = vmatpush1.bf16.msra.mxu0 %v1905
        %1969 = vmatprep.subr.bf16.mxu0 0
        %1970 = vmatpush1.bf16.msra.mxu0 %v1906
        %1971 = vmatprep.mubr.bf16.mxu0 %v1714
        %1972 = vmatmul.mubr.bf16.gmra.mrb[0].mxu0 %v1694
        %v1973 = vpop.f32.mrb[0].mxu0
        %v1974 = vadd.f32 %v1793, %v1973
        %v1975 = vpop.f32.mrb[0].mxu0
        %v1976 = vpop.f32.mrb[0].mxu0
        %v1977 = vadd.f32 %v1793, %v1976
        %v1978 = vpop.f32.mrb[0].mxu0
        %1979 = vmatprep.mubr.bf16.mxu0 %v1715
        %1980 = vmatmul.mubr.bf16.gmra.mrb[0].mxu0 %v1695
        %v1981 = vpop.f32.mrb[0].mxu0
        %v1982 = vadd.f32 %v1793, %v1981
        %v1983 = vpop.f32.mrb[0].mxu0
        %v1984 = vpop.f32.mrb[0].mxu0
        %v1985 = vadd.f32 %v1793, %v1984
        %v1986 = vpop.f32.mrb[0].mxu0
        %1987 = vmatprep.mubr.bf16.mxu0 %v1716
        %1988 = vmatmul.mubr.bf16.gmra.mrb[0].mxu0 %v1696
        %v1989 = vpop.f32.mrb[0].mxu0
        %v1990 = vadd.f32 %v1793, %v1989
        %v1991 = vpop.f32.mrb[0].mxu0
        %v1992 = vpop.f32.mrb[0].mxu0
        %v1993 = vadd.f32 %v1793, %v1992
        %v1994 = vpop.f32.mrb[0].mxu0
        %1995 = vmatprep.mubr.bf16.mxu0 %v1717
        %1996 = vmatmul.mubr.bf16.gmra.mrb[0].mxu0 %v1697
        %v1997 = vpop.f32.mrb[0].mxu0
        %v1998 = vadd.f32 %v1793, %v1997
        %v1999 = vpop.f32.mrb[0].mxu0
        %v2000 = vpop.f32.mrb[0].mxu0
        %v2001 = vadd.f32 %v1793, %v2000
        %v2002 = vpop.f32.mrb[0].mxu0
        %2003 = vdwg.mxu0
        %2004 = vmatprep.subr.bf16.mxu0 0
        %2005 = vmatpush1.bf16.msra.mxu0 %v1907
        %2006 = vmatprep.subr.bf16.mxu0 0
        %2007 = vmatpush1.bf16.msra.mxu0 %v1908
        %2008 = vmatprep.subr.bf16.mxu0 0
        %2009 = vmatpush1.bf16.msra.mxu0 %v1909
        %2010 = vmatprep.subr.bf16.mxu0 0
        %2011 = vmatpush1.bf16.msra.mxu0 %v1910
        %2012 = vmatprep.subr.bf16.mxu0 0
        %2013 = vmatpush1.bf16.msra.mxu0 %v1911
        %2014 = vmatprep.subr.bf16.mxu0 0
        %2015 = vmatpush1.bf16.msra.mxu0 %v1912
        %2016 = vmatprep.subr.bf16.mxu0 0
        %2017 = vmatpush1.bf16.msra.mxu0 %v1913
        %2018 = vmatprep.subr.bf16.mxu0 0
        %2019 = vmatpush1.bf16.msra.mxu0 %v1914
        %2020 = vmatprep.subr.bf16.mxu0 0
        %2021 = vmatpush1.bf16.msra.mxu0 0
        %2022 = vmatprep.subr.bf16.mxu0 0
        %2023 = vmatpush1.bf16.msra.mxu0 0
        %2024 = vmatprep.subr.bf16.mxu0 0
        %2025 = vmatpush1.bf16.msra.mxu0 0
        %2026 = vmatprep.subr.bf16.mxu0 0
        %2027 = vmatpush1.bf16.msra.mxu0 0
        %2028 = vmatprep.subr.bf16.mxu0 0
        %2029 = vmatpush1.bf16.msra.mxu0 0
        %2030 = vmatprep.subr.bf16.mxu0 0
        %2031 = vmatpush1.bf16.msra.mxu0 0
        %2032 = vmatprep.subr.bf16.mxu0 0
        %2033 = vmatpush1.bf16.msra.mxu0 0
        %2034 = vmatprep.subr.bf16.mxu0 0
        %2035 = vmatpush1.bf16.msra.mxu0 0
        %2036 = vmatprep.mubr.bf16.mxu0 0
        %2037 = vmatmul.mubr.bf16.gmra.mrb[0].mxu0 %v1734
        %v2038 = vpop.f32.mrb[0].mxu0
        %v2039 = vadd.f32 %v1974, %v2038
        %v2040 = vpop.f32.mrb[0].mxu0
        %v2041 = vpop.f32.mrb[0].mxu0
        %v2042 = vadd.f32 %v1977, %v2041
        %v2043 = vpop.f32.mrb[0].mxu0
        %2044 = vmatprep.mubr.bf16.mxu0 0
        %2045 = vmatmul.mubr.bf16.gmra.mrb[0].mxu0 %v1735
        %v2046 = vpop.f32.mrb[0].mxu0
        %v2047 = vadd.f32 %v1982, %v2046
        %v2048 = vpop.f32.mrb[0].mxu0
        %v2049 = vpop.f32.mrb[0].mxu0
        %v2050 = vadd.f32 %v1985, %v2049
        %v2051 = vpop.f32.mrb[0].mxu0
        %2052 = vmatprep.mubr.bf16.mxu0 0
        %2053 = vmatmul.mubr.bf16.gmra.mrb[0].mxu0 %v1736
        %v2054 = vpop.f32.mrb[0].mxu0
        %v2055 = vadd.f32 %v1990, %v2054
        %v2056 = vpop.f32.mrb[0].mxu0
        %v2057 = vpop.f32.mrb[0].mxu0
        %v2058 = vadd.f32 %v1993, %v2057
        %v2059 = vpop.f32.mrb[0].mxu0
        %2060 = vmatprep.mubr.bf16.mxu0 0
        %2061 = vmatmul.mubr.bf16.gmra.mrb[0].mxu0 %v1737
        %v2062 = vpop.f32.mrb[0].mxu0
        %v2063 = vadd.f32 %v1998, %v2062
        %v2064 = vpop.f32.mrb[0].mxu0
        %v2065 = vpop.f32.mrb[0].mxu0
        %v2066 = vadd.f32 %v2001, %v2065
        %v2067 = vpop.f32.mrb[0].mxu0
        %2068 = vdwg.mxu0
        %v2069 = vmax.f32 %v2039, 0.0
        %v2070 = vmax.f32 %v2042, 0.0
        %v2071 = vmax.f32 %v2047, 0.0
        %v2072 = vmax.f32 %v2050, 0.0
        %v2073 = vmax.f32 %v2055, 0.0
        %v2074 = vmax.f32 %v2058, 0.0
        %v2075 = vmax.f32 %v2063, 0.0
        %v2076 = vmax.f32 %v2066, 0.0
        %2077 = vst [vmem:[#allocation2] sm:$0xff] %v2069
        %2078 = vst [vmem:[#allocation2 + $0x8] sm:$0xff] %v2070
        %2079 = vst [vmem:[#allocation2 + $0x10] sm:$0xff] %v2071
        %2080 = vst [vmem:[#allocation2 + $0x18] sm:$0xff] %v2072
        %2081 = vst [vmem:[#allocation2 + $0x20] sm:$0xff] %v2073
        %2082 = vst [vmem:[#allocation2 + $0x28] sm:$0xff] %v2074
        %2083 = vst [vmem:[#allocation2 + $0x30] sm:$0xff] %v2075
        %2084 = vst [vmem:[#allocation2 + $0x38] sm:$0xff] %v2076
        %v2085 = vld [vmem:[#allocation2] ss:$2 sm:$0xff]
        %v2086 = vld [vmem:[%s1135] ss:$2 sm:$0xff]
        %v2087 = vld [vmem:[%s1137] ss:$2 sm:$0xff]
        %v2088 = vld [vmem:[%s1139] ss:$2 sm:$0xff]
        %v2089 = vpack.c.bf16 %v2086, %v2085
        %v2090 = vpack.c.bf16 %v2088, %v2087
        %v2091 = vld [vmem:[%s1173] ss:$2 sm:$0xff]
        %v2092 = vld [vmem:[%s1175] ss:$2 sm:$0xff]
        %v2093 = vld [vmem:[%s1177] ss:$2 sm:$0xff]
        %v2094 = vld [vmem:[%s1179] ss:$2 sm:$0xff]
        %v2095 = vpack.c.bf16 %v2092, %v2091
        %v2096 = vpack.c.bf16 %v2094, %v2093
        %v2097 = vld [vmem:[%s1213] ss:$2 sm:$0xff]
        %v2098 = vld [vmem:[%s1215] ss:$2 sm:$0xff]
        %v2099 = vld [vmem:[%s1217] ss:$2 sm:$0xff]
        %v2100 = vld [vmem:[%s1219] ss:$2 sm:$0xff]
        %v2101 = vpack.c.bf16 %v2098, %v2097
        %v2102 = vpack.c.bf16 %v2100, %v2099
        %s2103 = scalar_lea.vmem [#allocation5], 384
        %v2104 = vld [vmem:[%s2103] sm:$0xf]
        %v2105 = vld [vmem:[%s2103 + $0x4] sm:$0xf]
        %v2106 = vld [vmem:[%s2103 + $0x8] sm:$0xf]
        %v2107 = vld [vmem:[%s2103 + $0xc] sm:$0xf]
        %v2108 = vld [vmem:[%s2103 + $0x10] sm:$0xf]
        %v2109 = vld [vmem:[%s2103 + $0x14] sm:$0xf]
        %v2110 = vld [vmem:[%s2103 + $0x18] sm:$0xf]
        %v2111 = vld [vmem:[%s2103 + $0x1c] sm:$0xf]
        %v2112 = vld [vmem:[%s2103 + $0x20] sm:$0xf]
        %v2113 = vld [vmem:[%s2103 + $0x24] sm:$0xf]
        %v2114 = vld [vmem:[%s2103 + $0x28] sm:$0xf]
        %v2115 = vld [vmem:[%s2103 + $0x2c] sm:$0xf]
        %v2116 = vld [vmem:[%s2103 + $0x30] sm:$0xf]
        %v2117 = vld [vmem:[%s2103 + $0x34] sm:$0xf]
        %v2118 = vld [vmem:[%s2103 + $0x38] sm:$0xf]
        %v2119 = vld [vmem:[%s2103 + $0x3c] sm:$0xf]
        %v2120 = vld [vmem:[%s2103 + $0x40] sm:$0xf]
        %v2121 = vld [vmem:[%s2103 + $0x44] sm:$0xf]
        %v2122 = vld [vmem:[%s2103 + $0x48] sm:$0xf]
        %v2123 = vld [vmem:[%s2103 + $0x4c] sm:$0xf]
        %v2124 = vld [vmem:[%s2103 + $0x50] sm:$0xf]
        %v2125 = vld [vmem:[%s2103 + $0x54] sm:$0xf]
        %v2126 = vld [vmem:[%s2103 + $0x58] sm:$0xf]
        %v2127 = vld [vmem:[%s2103 + $0x5c] sm:$0xf]
        %v2128 = vld [vmem:[%s2103 + $0x60] sm:$0xf]
        %v2129 = vld [vmem:[%s2103 + $0x64] sm:$0xf]
        %v2130 = vld [vmem:[%s2103 + $0x68] sm:$0xf]
        %v2131 = vld [vmem:[%s2103 + $0x6c] sm:$0xf]
        %v2132 = vld [vmem:[%s2103 + $0x70] sm:$0xf]
        %v2133 = vld [vmem:[%s2103 + $0x74] sm:$0xf]
        %v2134 = vld [vmem:[%s2103 + $0x78] sm:$0xf]
        %v2135 = vld [vmem:[%s2103 + $0x7c] sm:$0xf]
        %v2136 = vld [vmem:[%s2103 + $0x80] sm:$0xf]
        %v2137 = vld [vmem:[%s2103 + $0x84] sm:$0xf]
        %v2138 = vld [vmem:[%s2103 + $0x88] sm:$0xf]
        %v2139 = vld [vmem:[%s2103 + $0x8c] sm:$0xf]
        %v2140 = vld [vmem:[%s2103 + $0x90] sm:$0xf]
        %v2141 = vld [vmem:[%s2103 + $0x94] sm:$0xf]
        %v2142 = vld [vmem:[%s2103 + $0x98] sm:$0xf]
        %v2143 = vld [vmem:[%s2103 + $0x9c] sm:$0xf]
        %v2144 = vld [vmem:[%s2103 + $0xa0] sm:$0xf]
        %v2145 = vld [vmem:[%s2103 + $0xa4] sm:$0xf]
        %v2146 = vld [vmem:[%s2103 + $0xa8] sm:$0xf]
        %v2147 = vld [vmem:[%s2103 + $0xac] sm:$0xf]
        %v2148 = vld [vmem:[%s2103 + $0xb0] sm:$0xf]
        %v2149 = vld [vmem:[%s2103 + $0xb4] sm:$0xf]
        %v2150 = vld [vmem:[%s2103 + $0xb8] sm:$0xf]
        %v2151 = vld [vmem:[%s2103 + $0xbc] sm:$0xf]
        %s2152 = scalar_lea.vmem %s3, 3
        %v2153 = vld [vmem:[%s2152] sm:$0x1]
        %v2155 = vlaneseq
        %v2156 = vshrl.u32 %v2155, 7
        %v2157 = vsub.s32 0, %v2156
        %v2158 = vrot.slane %v2153, %v2157
        %v2208 = vunpack.c.l.b16 %v2104
        %v2209 = vunpack.c.l.b16 %v2105
        %v2210 = vunpack.c.l.b16 %v2106
        %v2211 = vunpack.c.l.b16 %v2107
        %v2212 = vunpack.c.l.b16 %v2108
        %v2213 = vunpack.c.l.b16 %v2109
        %v2214 = vunpack.c.l.b16 %v2110
        %v2215 = vunpack.c.l.b16 %v2111
        %v2216 = vunpack.c.l.b16 %v2112
        %v2217 = vunpack.c.l.b16 %v2113
        %v2218 = vunpack.c.l.b16 %v2114
        %v2219 = vunpack.c.l.b16 %v2115
        %v2220 = vunpack.c.l.b16 %v2116
        %v2221 = vunpack.c.l.b16 %v2117
        %v2222 = vunpack.c.l.b16 %v2118
        %v2223 = vunpack.c.l.b16 %v2119
        %v2224 = vunpack.c.l.b16 %v2120
        %v2225 = vunpack.c.l.b16 %v2121
        %v2226 = vunpack.c.l.b16 %v2122
        %v2227 = vunpack.c.l.b16 %v2123
        %v2228 = vunpack.c.l.b16 %v2124
        %v2229 = vunpack.c.l.b16 %v2125
        %v2230 = vunpack.c.l.b16 %v2126
        %v2231 = vunpack.c.l.b16 %v2127
        %v2232 = vunpack.c.l.b16 %v2128
        %v2233 = vunpack.c.l.b16 %v2129
        %v2234 = vunpack.c.l.b16 %v2130
        %v2235 = vunpack.c.l.b16 %v2131
        %v2236 = vunpack.c.l.b16 %v2132
        %v2237 = vunpack.c.l.b16 %v2133
        %v2238 = vunpack.c.l.b16 %v2134
        %v2239 = vunpack.c.l.b16 %v2135
        %v2240 = vunpack.c.l.b16 %v2136
        %v2241 = vunpack.c.l.b16 %v2137
        %v2242 = vunpack.c.l.b16 %v2138
        %v2243 = vunpack.c.l.b16 %v2139
        %v2244 = vunpack.c.l.b16 %v2140
        %v2245 = vunpack.c.l.b16 %v2141
        %v2246 = vunpack.c.l.b16 %v2142
        %v2247 = vunpack.c.l.b16 %v2143
        %v2248 = vunpack.c.l.b16 %v2144
        %v2249 = vunpack.c.l.b16 %v2145
        %v2250 = vunpack.c.l.b16 %v2146
        %v2251 = vunpack.c.l.b16 %v2147
        %v2252 = vunpack.c.l.b16 %v2148
        %v2253 = vunpack.c.l.b16 %v2149
        %v2254 = vunpack.c.l.b16 %v2150
        %v2255 = vunpack.c.l.b16 %v2151
        %v2256 = vpack.c.b16 %v2209, %v2208
        %v2257 = vpack.c.b16 %v2211, %v2210
        %v2258 = vpack.c.b16 %v2213, %v2212
        %v2259 = vpack.c.b16 %v2215, %v2214
        %v2260 = vpack.c.b16 %v2217, %v2216
        %v2261 = vpack.c.b16 %v2219, %v2218
        %v2262 = vpack.c.b16 %v2221, %v2220
        %v2263 = vpack.c.b16 %v2223, %v2222
        %v2264 = vpack.c.b16 %v2225, %v2224
        %v2265 = vpack.c.b16 %v2227, %v2226
        %v2266 = vpack.c.b16 %v2229, %v2228
        %v2267 = vpack.c.b16 %v2231, %v2230
        %v2268 = vpack.c.b16 %v2233, %v2232
        %v2269 = vpack.c.b16 %v2235, %v2234
        %v2270 = vpack.c.b16 %v2237, %v2236
        %v2271 = vpack.c.b16 %v2239, %v2238
        %v2272 = vpack.c.b16 %v2241, %v2240
        %v2273 = vpack.c.b16 %v2243, %v2242
        %v2274 = vpack.c.b16 %v2245, %v2244
        %v2275 = vpack.c.b16 %v2247, %v2246
        %v2276 = vpack.c.b16 %v2249, %v2248
        %v2277 = vpack.c.b16 %v2251, %v2250
        %v2278 = vpack.c.b16 %v2253, %v2252
        %v2279 = vpack.c.b16 %v2255, %v2254
        %2304 = vmatprep.subr.bf16.mxu0 0
        %2305 = vmatpush1.bf16.msra.mxu0 %v2256
        %2306 = vmatprep.subr.bf16.mxu0 0
        %2307 = vmatpush1.bf16.msra.mxu0 %v2257
        %2308 = vmatprep.subr.bf16.mxu0 0
        %2309 = vmatpush1.bf16.msra.mxu0 %v2258
        %2310 = vmatprep.subr.bf16.mxu0 0
        %2311 = vmatpush1.bf16.msra.mxu0 %v2259
        %2312 = vmatprep.subr.bf16.mxu0 0
        %2313 = vmatpush1.bf16.msra.mxu0 %v2260
        %2314 = vmatprep.subr.bf16.mxu0 0
        %2315 = vmatpush1.bf16.msra.mxu0 %v2261
        %2316 = vmatprep.subr.bf16.mxu0 0
        %2317 = vmatpush1.bf16.msra.mxu0 %v2262
        %2318 = vmatprep.subr.bf16.mxu0 0
        %2319 = vmatpush1.bf16.msra.mxu0 %v2263
        %2320 = vmatprep.subr.bf16.mxu0 0
        %2321 = vmatpush1.bf16.msra.mxu0 %v2264
        %2322 = vmatprep.subr.bf16.mxu0 0
        %2323 = vmatpush1.bf16.msra.mxu0 %v2265
        %2324 = vmatprep.subr.bf16.mxu0 0
        %2325 = vmatpush1.bf16.msra.mxu0 %v2266
        %2326 = vmatprep.subr.bf16.mxu0 0
        %2327 = vmatpush1.bf16.msra.mxu0 %v2267
        %2328 = vmatprep.subr.bf16.mxu0 0
        %2329 = vmatpush1.bf16.msra.mxu0 %v2268
        %2330 = vmatprep.subr.bf16.mxu0 0
        %2331 = vmatpush1.bf16.msra.mxu0 %v2269
        %2332 = vmatprep.subr.bf16.mxu0 0
        %2333 = vmatpush1.bf16.msra.mxu0 %v2270
        %2334 = vmatprep.subr.bf16.mxu0 0
        %2335 = vmatpush1.bf16.msra.mxu0 %v2271
        %2336 = vmatprep.mubr.bf16.mxu0 %v2095
        %2337 = vmatmul.mubr.bf16.gmra.mrb[0].mxu0 %v2089
        %v2338 = vpop.f32.mrb[0].mxu0
        %v2339 = vadd.f32 %v2158, %v2338
        %v2340 = vpop.f32.mrb[0].mxu0
        %v2341 = vpop.f32.mrb[0].mxu0
        %v2342 = vadd.f32 %v2158, %v2341
        %v2343 = vpop.f32.mrb[0].mxu0
        %2344 = vmatprep.mubr.bf16.mxu0 %v2096
        %2345 = vmatmul.mubr.bf16.gmra.mrb[0].mxu0 %v2090
        %v2346 = vpop.f32.mrb[0].mxu0
        %v2347 = vadd.f32 %v2158, %v2346
        %v2348 = vpop.f32.mrb[0].mxu0
        %v2349 = vpop.f32.mrb[0].mxu0
        %v2350 = vadd.f32 %v2158, %v2349
        %v2351 = vpop.f32.mrb[0].mxu0
        %2352 = vdwg.mxu0
        %2353 = vmatprep.subr.bf16.mxu0 0
        %2354 = vmatpush1.bf16.msra.mxu0 %v2272
        %2355 = vmatprep.subr.bf16.mxu0 0
        %2356 = vmatpush1.bf16.msra.mxu0 %v2273
        %2357 = vmatprep.subr.bf16.mxu0 0
        %2358 = vmatpush1.bf16.msra.mxu0 %v2274
        %2359 = vmatprep.subr.bf16.mxu0 0
        %2360 = vmatpush1.bf16.msra.mxu0 %v2275
        %2361 = vmatprep.subr.bf16.mxu0 0
        %2362 = vmatpush1.bf16.msra.mxu0 %v2276
        %2363 = vmatprep.subr.bf16.mxu0 0
        %2364 = vmatpush1.bf16.msra.mxu0 %v2277
        %2365 = vmatprep.subr.bf16.mxu0 0
        %2366 = vmatpush1.bf16.msra.mxu0 %v2278
        %2367 = vmatprep.subr.bf16.mxu0 0
        %2368 = vmatpush1.bf16.msra.mxu0 %v2279
        %2369 = vmatprep.subr.bf16.mxu0 0
        %2370 = vmatpush1.bf16.msra.mxu0 0
        %2371 = vmatprep.subr.bf16.mxu0 0
        %2372 = vmatpush1.bf16.msra.mxu0 0
        %2373 = vmatprep.subr.bf16.mxu0 0
        %2374 = vmatpush1.bf16.msra.mxu0 0
        %2375 = vmatprep.subr.bf16.mxu0 0
        %2376 = vmatpush1.bf16.msra.mxu0 0
        %2377 = vmatprep.subr.bf16.mxu0 0
        %2378 = vmatpush1.bf16.msra.mxu0 0
        %2379 = vmatprep.subr.bf16.mxu0 0
        %2380 = vmatpush1.bf16.msra.mxu0 0
        %2381 = vmatprep.subr.bf16.mxu0 0
        %2382 = vmatpush1.bf16.msra.mxu0 0
        %2383 = vmatprep.subr.bf16.mxu0 0
        %2384 = vmatpush1.bf16.msra.mxu0 0
        %2385 = vmatprep.mubr.bf16.mxu0 0
        %2386 = vmatmul.mubr.bf16.gmra.mrb[0].mxu0 %v2101
        %v2387 = vpop.f32.mrb[0].mxu0
        %v2388 = vadd.f32 %v2339, %v2387
        %v2389 = vpop.f32.mrb[0].mxu0
        %v2390 = vpop.f32.mrb[0].mxu0
        %v2391 = vadd.f32 %v2342, %v2390
        %v2392 = vpop.f32.mrb[0].mxu0
        %2393 = vmatprep.mubr.bf16.mxu0 0
        %2394 = vmatmul.mubr.bf16.gmra.mrb[0].mxu0 %v2102
        %v2395 = vpop.f32.mrb[0].mxu0
        %v2396 = vadd.f32 %v2347, %v2395
        %v2397 = vpop.f32.mrb[0].mxu0
        %v2398 = vpop.f32.mrb[0].mxu0
        %v2399 = vadd.f32 %v2350, %v2398
        %v2400 = vpop.f32.mrb[0].mxu0
        %2401 = vdwg.mxu0
        %v2402 = vmax.f32 %v2388, 0.0
        %v2403 = vmax.f32 %v2391, 0.0
        %v2404 = vmax.f32 %v2396, 0.0
        %v2405 = vmax.f32 %v2399, 0.0
        %2406 = vst [vmem:[#allocation3] sm:$0xff] %v2402
        %2407 = vst [vmem:[#allocation3 + $0x8] sm:$0xff] %v2403
        %2408 = vst [vmem:[#allocation3 + $0x10] sm:$0xff] %v2404
        %2409 = vst [vmem:[#allocation3 + $0x18] sm:$0xff] %v2405
        %v2410 = vld [vmem:[#allocation3] ss:$2 sm:$0xff]
        %v2411 = vld [vmem:[%s1680] ss:$2 sm:$0xff]
        %v2412 = vpack.c.bf16 %v2411, %v2410
        %v2413 = vld [vmem:[%s1698] ss:$2 sm:$0xff]
        %v2414 = vld [vmem:[%s1700] ss:$2 sm:$0xff]
        %v2415 = vpack.c.bf16 %v2414, %v2413
        %v2416 = vld [vmem:[%s1718] ss:$2 sm:$0xff]
        %v2417 = vld [vmem:[%s1720] ss:$2 sm:$0xff]
        %v2418 = vpack.c.bf16 %v2417, %v2416
        %s2419 = scalar_lea.vmem [#allocation5], 576
        %v2420 = vld [vmem:[%s2419] sm:$0xf]
        %v2421 = vld [vmem:[%s2419 + $0x4] sm:$0xf]
        %v2422 = vld [vmem:[%s2419 + $0x8] sm:$0xf]
        %v2423 = vld [vmem:[%s2419 + $0xc] sm:$0xf]
        %v2424 = vld [vmem:[%s2419 + $0x10] sm:$0xf]
        %v2425 = vld [vmem:[%s2419 + $0x14] sm:$0xf]
        %v2426 = vld [vmem:[%s2419 + $0x18] sm:$0xf]
        %v2427 = vld [vmem:[%s2419 + $0x1c] sm:$0xf]
        %v2428 = vld [vmem:[%s2419 + $0x20] sm:$0xf]
        %v2429 = vld [vmem:[%s2419 + $0x24] sm:$0xf]
        %v2430 = vld [vmem:[%s2419 + $0x28] sm:$0xf]
        %v2431 = vld [vmem:[%s2419 + $0x2c] sm:$0xf]
        %v2432 = vld [vmem:[%s2419 + $0x30] sm:$0xf]
        %v2433 = vld [vmem:[%s2419 + $0x34] sm:$0xf]
        %v2434 = vld [vmem:[%s2419 + $0x38] sm:$0xf]
        %v2435 = vld [vmem:[%s2419 + $0x3c] sm:$0xf]
        %v2436 = vld [vmem:[%s2419 + $0x40] sm:$0xf]
        %v2437 = vld [vmem:[%s2419 + $0x44] sm:$0xf]
        %v2438 = vld [vmem:[%s2419 + $0x48] sm:$0xf]
        %v2439 = vld [vmem:[%s2419 + $0x4c] sm:$0xf]
        %v2440 = vld [vmem:[%s2419 + $0x50] sm:$0xf]
        %v2441 = vld [vmem:[%s2419 + $0x54] sm:$0xf]
        %v2442 = vld [vmem:[%s2419 + $0x58] sm:$0xf]
        %v2443 = vld [vmem:[%s2419 + $0x5c] sm:$0xf]
        %v2444 = vld [vmem:[%s2419 + $0x60] sm:$0xf]
        %v2445 = vld [vmem:[%s2419 + $0x64] sm:$0xf]
        %v2446 = vld [vmem:[%s2419 + $0x68] sm:$0xf]
        %v2447 = vld [vmem:[%s2419 + $0x6c] sm:$0xf]
        %v2448 = vld [vmem:[%s2419 + $0x70] sm:$0xf]
        %v2449 = vld [vmem:[%s2419 + $0x74] sm:$0xf]
        %v2450 = vld [vmem:[%s2419 + $0x78] sm:$0xf]
        %v2451 = vld [vmem:[%s2419 + $0x7c] sm:$0xf]
        %v2452 = vld [vmem:[%s2419 + $0x80] sm:$0xf]
        %v2453 = vld [vmem:[%s2419 + $0x84] sm:$0xf]
        %v2454 = vld [vmem:[%s2419 + $0x88] sm:$0xf]
        %v2455 = vld [vmem:[%s2419 + $0x8c] sm:$0xf]
        %v2456 = vld [vmem:[%s2419 + $0x90] sm:$0xf]
        %v2457 = vld [vmem:[%s2419 + $0x94] sm:$0xf]
        %v2458 = vld [vmem:[%s2419 + $0x98] sm:$0xf]
        %v2459 = vld [vmem:[%s2419 + $0x9c] sm:$0xf]
        %v2460 = vld [vmem:[%s2419 + $0xa0] sm:$0xf]
        %v2461 = vld [vmem:[%s2419 + $0xa4] sm:$0xf]
        %v2462 = vld [vmem:[%s2419 + $0xa8] sm:$0xf]
        %v2463 = vld [vmem:[%s2419 + $0xac] sm:$0xf]
        %v2464 = vld [vmem:[%s2419 + $0xb0] sm:$0xf]
        %v2465 = vld [vmem:[%s2419 + $0xb4] sm:$0xf]
        %v2466 = vld [vmem:[%s2419 + $0xb8] sm:$0xf]
        %v2467 = vld [vmem:[%s2419 + $0xbc] sm:$0xf]
        %s2468 = scalar_lea.vmem %s3, 4
        %v2469 = vld [vmem:[%s2468] sm:$0x1]
        %v2471 = vlaneseq
        %v2472 = vshrl.u32 %v2471, 7
        %v2473 = vsub.s32 0, %v2472
        %v2474 = vrot.slane %v2469, %v2473
        %v2524 = vunpack.c.l.b16 %v2420
        %v2525 = vunpack.c.l.b16 %v2421
        %v2526 = vunpack.c.l.b16 %v2422
        %v2527 = vunpack.c.l.b16 %v2423
        %v2528 = vunpack.c.l.b16 %v2424
        %v2529 = vunpack.c.l.b16 %v2425
        %v2530 = vunpack.c.l.b16 %v2426
        %v2531 = vunpack.c.l.b16 %v2427
        %v2532 = vunpack.c.l.b16 %v2428
        %v2533 = vunpack.c.l.b16 %v2429
        %v2534 = vunpack.c.l.b16 %v2430
        %v2535 = vunpack.c.l.b16 %v2431
        %v2536 = vunpack.c.l.b16 %v2432
        %v2537 = vunpack.c.l.b16 %v2433
        %v2538 = vunpack.c.l.b16 %v2434
        %v2539 = vunpack.c.l.b16 %v2435
        %v2540 = vunpack.c.l.b16 %v2436
        %v2541 = vunpack.c.l.b16 %v2437
        %v2542 = vunpack.c.l.b16 %v2438
        %v2543 = vunpack.c.l.b16 %v2439
        %v2544 = vunpack.c.l.b16 %v2440
        %v2545 = vunpack.c.l.b16 %v2441
        %v2546 = vunpack.c.l.b16 %v2442
        %v2547 = vunpack.c.l.b16 %v2443
        %v2548 = vunpack.c.l.b16 %v2444
        %v2549 = vunpack.c.l.b16 %v2445
        %v2550 = vunpack.c.l.b16 %v2446
        %v2551 = vunpack.c.l.b16 %v2447
        %v2552 = vunpack.c.l.b16 %v2448
        %v2553 = vunpack.c.l.b16 %v2449
        %v2554 = vunpack.c.l.b16 %v2450
        %v2555 = vunpack.c.l.b16 %v2451
        %v2556 = vunpack.c.l.b16 %v2452
        %v2557 = vunpack.c.l.b16 %v2453
        %v2558 = vunpack.c.l.b16 %v2454
        %v2559 = vunpack.c.l.b16 %v2455
        %v2560 = vunpack.c.l.b16 %v2456
        %v2561 = vunpack.c.l.b16 %v2457
        %v2562 = vunpack.c.l.b16 %v2458
        %v2563 = vunpack.c.l.b16 %v2459
        %v2564 = vunpack.c.l.b16 %v2460
        %v2565 = vunpack.c.l.b16 %v2461
        %v2566 = vunpack.c.l.b16 %v2462
        %v2567 = vunpack.c.l.b16 %v2463
        %v2568 = vunpack.c.l.b16 %v2464
        %v2569 = vunpack.c.l.b16 %v2465
        %v2570 = vunpack.c.l.b16 %v2466
        %v2571 = vunpack.c.l.b16 %v2467
        %v2572 = vpack.c.b16 %v2525, %v2524
        %v2573 = vpack.c.b16 %v2527, %v2526
        %v2574 = vpack.c.b16 %v2529, %v2528
        %v2575 = vpack.c.b16 %v2531, %v2530
        %v2576 = vpack.c.b16 %v2533, %v2532
        %v2577 = vpack.c.b16 %v2535, %v2534
        %v2578 = vpack.c.b16 %v2537, %v2536
        %v2579 = vpack.c.b16 %v2539, %v2538
        %v2580 = vpack.c.b16 %v2541, %v2540
        %v2581 = vpack.c.b16 %v2543, %v2542
        %v2582 = vpack.c.b16 %v2545, %v2544
        %v2583 = vpack.c.b16 %v2547, %v2546
        %v2584 = vpack.c.b16 %v2549, %v2548
        %v2585 = vpack.c.b16 %v2551, %v2550
        %v2586 = vpack.c.b16 %v2553, %v2552
        %v2587 = vpack.c.b16 %v2555, %v2554
        %v2588 = vpack.c.b16 %v2557, %v2556
        %v2589 = vpack.c.b16 %v2559, %v2558
        %v2590 = vpack.c.b16 %v2561, %v2560
        %v2591 = vpack.c.b16 %v2563, %v2562
        %v2592 = vpack.c.b16 %v2565, %v2564
        %v2593 = vpack.c.b16 %v2567, %v2566
        %v2594 = vpack.c.b16 %v2569, %v2568
        %v2595 = vpack.c.b16 %v2571, %v2570
        %2620 = vmatprep.subr.bf16.mxu0 0
        %2621 = vmatpush1.bf16.msra.mxu0 %v2572
        %2622 = vmatprep.subr.bf16.mxu0 0
        %2623 = vmatpush1.bf16.msra.mxu0 %v2573
        %2624 = vmatprep.subr.bf16.mxu0 0
        %2625 = vmatpush1.bf16.msra.mxu0 %v2574
        %2626 = vmatprep.subr.bf16.mxu0 0
        %2627 = vmatpush1.bf16.msra.mxu0 %v2575
        %2628 = vmatprep.subr.bf16.mxu0 0
        %2629 = vmatpush1.bf16.msra.mxu0 %v2576
        %2630 = vmatprep.subr.bf16.mxu0 0
        %2631 = vmatpush1.bf16.msra.mxu0 %v2577
        %2632 = vmatprep.subr.bf16.mxu0 0
        %2633 = vmatpush1.bf16.msra.mxu0 %v2578
        %2634 = vmatprep.subr.bf16.mxu0 0
        %2635 = vmatpush1.bf16.msra.mxu0 %v2579
        %2636 = vmatprep.subr.bf16.mxu0 0
        %2637 = vmatpush1.bf16.msra.mxu0 %v2580
        %2638 = vmatprep.subr.bf16.mxu0 0
        %2639 = vmatpush1.bf16.msra.mxu0 %v2581
        %2640 = vmatprep.subr.bf16.mxu0 0
        %2641 = vmatpush1.bf16.msra.mxu0 %v2582
        %2642 = vmatprep.subr.bf16.mxu0 0
        %2643 = vmatpush1.bf16.msra.mxu0 %v2583
        %2644 = vmatprep.subr.bf16.mxu0 0
        %2645 = vmatpush1.bf16.msra.mxu0 %v2584
        %2646 = vmatprep.subr.bf16.mxu0 0
        %2647 = vmatpush1.bf16.msra.mxu0 %v2585
        %2648 = vmatprep.subr.bf16.mxu0 0
        %2649 = vmatpush1.bf16.msra.mxu0 %v2586
        %2650 = vmatprep.subr.bf16.mxu0 0
        %2651 = vmatpush1.bf16.msra.mxu0 %v2587
        %2652 = vmatprep.mubr.bf16.mxu0 %v2415
        %2653 = vmatmul.mubr.bf16.gmra.mrb[0].mxu0 %v2412
        %v2654 = vpop.f32.mrb[0].mxu0
        %v2655 = vadd.f32 %v2474, %v2654
        %v2656 = vpop.f32.mrb[0].mxu0
        %v2657 = vpop.f32.mrb[0].mxu0
        %v2658 = vadd.f32 %v2474, %v2657
        %v2659 = vpop.f32.mrb[0].mxu0
        %2660 = vdwg.mxu0
        %2661 = vmatprep.subr.bf16.mxu0 0
        %2662 = vmatpush1.bf16.msra.mxu0 %v2588
        %2663 = vmatprep.subr.bf16.mxu0 0
        %2664 = vmatpush1.bf16.msra.mxu0 %v2589
        %2665 = vmatprep.subr.bf16.mxu0 0
        %2666 = vmatpush1.bf16.msra.mxu0 %v2590
        %2667 = vmatprep.subr.bf16.mxu0 0
        %2668 = vmatpush1.bf16.msra.mxu0 %v2591
        %2669 = vmatprep.subr.bf16.mxu0 0
        %2670 = vmatpush1.bf16.msra.mxu0 %v2592
        %2671 = vmatprep.subr.bf16.mxu0 0
        %2672 = vmatpush1.bf16.msra.mxu0 %v2593
        %2673 = vmatprep.subr.bf16.mxu0 0
        %2674 = vmatpush1.bf16.msra.mxu0 %v2594
        %2675 = vmatprep.subr.bf16.mxu0 0
        %2676 = vmatpush1.bf16.msra.mxu0 %v2595
        %2677 = vmatprep.subr.bf16.mxu0 0
        %2678 = vmatpush1.bf16.msra.mxu0 0
        %2679 = vmatprep.subr.bf16.mxu0 0
        %2680 = vmatpush1.bf16.msra.mxu0 0
        %2681 = vmatprep.subr.bf16.mxu0 0
        %2682 = vmatpush1.bf16.msra.mxu0 0
        %2683 = vmatprep.subr.bf16.mxu0 0
        %2684 = vmatpush1.bf16.msra.mxu0 0
        %2685 = vmatprep.subr.bf16.mxu0 0
        %2686 = vmatpush1.bf16.msra.mxu0 0
        %2687 = vmatprep.subr.bf16.mxu0 0
        %2688 = vmatpush1.bf16.msra.mxu0 0
        %2689 = vmatprep.subr.bf16.mxu0 0
        %2690 = vmatpush1.bf16.msra.mxu0 0
        %2691 = vmatprep.subr.bf16.mxu0 0
        %2692 = vmatpush1.bf16.msra.mxu0 0
        %2693 = vmatprep.mubr.bf16.mxu0 0
        %2694 = vmatmul.mubr.bf16.gmra.mrb[0].mxu0 %v2418
        %v2695 = vpop.f32.mrb[0].mxu0
        %v2696 = vadd.f32 %v2655, %v2695
        %v2697 = vpop.f32.mrb[0].mxu0
        %v2698 = vpop.f32.mrb[0].mxu0
        %v2699 = vadd.f32 %v2658, %v2698
        %v2700 = vpop.f32.mrb[0].mxu0
        %2701 = vdwg.mxu0
        %v2702 = vmax.f32 %v2696, 0.0
        %v2703 = vmax.f32 %v2699, 0.0
        %2704 = vst [vmem:[#allocation2] sm:$0xff] %v2702
        %2705 = vst [vmem:[#allocation2 + $0x8] sm:$0xff] %v2703
        %v2706 = vld [vmem:[#allocation2] sm:$0xff]
        %v2707 = vld [vmem:[#allocation2 + $0x8] sm:$0xff]
        %v2708 = vpack.c.bf16 %v2707, %v2706
        %v2709 = vld [vmem:[#allocation2 + $0x1] sm:$0xff]
        %v2710 = vld [vmem:[#allocation2 + $0x9] sm:$0xff]
        %v2711 = vpack.c.bf16 %v2710, %v2709
        %v2712 = vld [vmem:[#allocation2 + $0x2] sm:$0xff]
        %v2713 = vld [vmem:[#allocation2 + $0xa] sm:$0xff]
        %v2714 = vpack.c.bf16 %v2713, %v2712
        %s2715 = scalar_lea.vmem [#allocation5], 768
        %v2716 = vld [vmem:[%s2715] sm:$0xf]
        %v2717 = vld [vmem:[%s2715 + $0x4] sm:$0xf]
        %v2718 = vld [vmem:[%s2715 + $0x8] sm:$0xf]
        %v2719 = vld [vmem:[%s2715 + $0xc] sm:$0xf]
        %v2720 = vld [vmem:[%s2715 + $0x10] sm:$0xf]
        %v2721 = vld [vmem:[%s2715 + $0x14] sm:$0xf]
        %v2722 = vld [vmem:[%s2715 + $0x18] sm:$0xf]
        %v2723 = vld [vmem:[%s2715 + $0x1c] sm:$0xf]
        %v2724 = vld [vmem:[%s2715 + $0x20] sm:$0xf]
        %v2725 = vld [vmem:[%s2715 + $0x24] sm:$0xf]
        %v2726 = vld [vmem:[%s2715 + $0x28] sm:$0xf]
        %v2727 = vld [vmem:[%s2715 + $0x2c] sm:$0xf]
        %v2728 = vld [vmem:[%s2715 + $0x30] sm:$0xf]
        %v2729 = vld [vmem:[%s2715 + $0x34] sm:$0xf]
        %v2730 = vld [vmem:[%s2715 + $0x38] sm:$0xf]
        %v2731 = vld [vmem:[%s2715 + $0x3c] sm:$0xf]
        %v2732 = vld [vmem:[%s2715 + $0x40] sm:$0xf]
        %v2733 = vld [vmem:[%s2715 + $0x44] sm:$0xf]
        %v2734 = vld [vmem:[%s2715 + $0x48] sm:$0xf]
        %v2735 = vld [vmem:[%s2715 + $0x4c] sm:$0xf]
        %v2736 = vld [vmem:[%s2715 + $0x50] sm:$0xf]
        %v2737 = vld [vmem:[%s2715 + $0x54] sm:$0xf]
        %v2738 = vld [vmem:[%s2715 + $0x58] sm:$0xf]
        %v2739 = vld [vmem:[%s2715 + $0x5c] sm:$0xf]
        %v2740 = vld [vmem:[%s2715 + $0x60] sm:$0xf]
        %v2741 = vld [vmem:[%s2715 + $0x64] sm:$0xf]
        %v2742 = vld [vmem:[%s2715 + $0x68] sm:$0xf]
        %v2743 = vld [vmem:[%s2715 + $0x6c] sm:$0xf]
        %v2744 = vld [vmem:[%s2715 + $0x70] sm:$0xf]
        %v2745 = vld [vmem:[%s2715 + $0x74] sm:$0xf]
        %v2746 = vld [vmem:[%s2715 + $0x78] sm:$0xf]
        %v2747 = vld [vmem:[%s2715 + $0x7c] sm:$0xf]
        %v2748 = vld [vmem:[%s2715 + $0x80] sm:$0xf]
        %v2749 = vld [vmem:[%s2715 + $0x84] sm:$0xf]
        %v2750 = vld [vmem:[%s2715 + $0x88] sm:$0xf]
        %v2751 = vld [vmem:[%s2715 + $0x8c] sm:$0xf]
        %v2752 = vld [vmem:[%s2715 + $0x90] sm:$0xf]
        %v2753 = vld [vmem:[%s2715 + $0x94] sm:$0xf]
        %v2754 = vld [vmem:[%s2715 + $0x98] sm:$0xf]
        %v2755 = vld [vmem:[%s2715 + $0x9c] sm:$0xf]
        %v2756 = vld [vmem:[%s2715 + $0xa0] sm:$0xf]
        %v2757 = vld [vmem:[%s2715 + $0xa4] sm:$0xf]
        %v2758 = vld [vmem:[%s2715 + $0xa8] sm:$0xf]
        %v2759 = vld [vmem:[%s2715 + $0xac] sm:$0xf]
        %v2760 = vld [vmem:[%s2715 + $0xb0] sm:$0xf]
        %v2761 = vld [vmem:[%s2715 + $0xb4] sm:$0xf]
        %v2762 = vld [vmem:[%s2715 + $0xb8] sm:$0xf]
        %v2763 = vld [vmem:[%s2715 + $0xbc] sm:$0xf]
        %s2764 = scalar_lea.vmem %s3, 5
        %v2765 = vld [vmem:[%s2764] sm:$0x1]
        %v2767 = vlaneseq
        %v2768 = vshrl.u32 %v2767, 7
        %v2769 = vsub.s32 0, %v2768
        %v2770 = vrot.slane %v2765, %v2769
        %v2820 = vunpack.c.l.b16 %v2716
        %v2821 = vunpack.c.l.b16 %v2717
        %v2822 = vunpack.c.l.b16 %v2718
        %v2823 = vunpack.c.l.b16 %v2719
        %v2824 = vunpack.c.l.b16 %v2720
        %v2825 = vunpack.c.l.b16 %v2721
        %v2826 = vunpack.c.l.b16 %v2722
        %v2827 = vunpack.c.l.b16 %v2723
        %v2828 = vunpack.c.l.b16 %v2724
        %v2829 = vunpack.c.l.b16 %v2725
        %v2830 = vunpack.c.l.b16 %v2726
        %v2831 = vunpack.c.l.b16 %v2727
        %v2832 = vunpack.c.l.b16 %v2728
        %v2833 = vunpack.c.l.b16 %v2729
        %v2834 = vunpack.c.l.b16 %v2730
        %v2835 = vunpack.c.l.b16 %v2731
        %v2836 = vunpack.c.l.b16 %v2732
        %v2837 = vunpack.c.l.b16 %v2733
        %v2838 = vunpack.c.l.b16 %v2734
        %v2839 = vunpack.c.l.b16 %v2735
        %v2840 = vunpack.c.l.b16 %v2736
        %v2841 = vunpack.c.l.b16 %v2737
        %v2842 = vunpack.c.l.b16 %v2738
        %v2843 = vunpack.c.l.b16 %v2739
        %v2844 = vunpack.c.l.b16 %v2740
        %v2845 = vunpack.c.l.b16 %v2741
        %v2846 = vunpack.c.l.b16 %v2742
        %v2847 = vunpack.c.l.b16 %v2743
        %v2848 = vunpack.c.l.b16 %v2744
        %v2849 = vunpack.c.l.b16 %v2745
        %v2850 = vunpack.c.l.b16 %v2746
        %v2851 = vunpack.c.l.b16 %v2747
        %v2852 = vunpack.c.l.b16 %v2748
        %v2853 = vunpack.c.l.b16 %v2749
        %v2854 = vunpack.c.l.b16 %v2750
        %v2855 = vunpack.c.l.b16 %v2751
        %v2856 = vunpack.c.l.b16 %v2752
        %v2857 = vunpack.c.l.b16 %v2753
        %v2858 = vunpack.c.l.b16 %v2754
        %v2859 = vunpack.c.l.b16 %v2755
        %v2860 = vunpack.c.l.b16 %v2756
        %v2861 = vunpack.c.l.b16 %v2757
        %v2862 = vunpack.c.l.b16 %v2758
        %v2863 = vunpack.c.l.b16 %v2759
        %v2864 = vunpack.c.l.b16 %v2760
        %v2865 = vunpack.c.l.b16 %v2761
        %v2866 = vunpack.c.l.b16 %v2762
        %v2867 = vunpack.c.l.b16 %v2763
        %v2868 = vpack.c.b16 %v2821, %v2820
        %v2869 = vpack.c.b16 %v2823, %v2822
        %v2870 = vpack.c.b16 %v2825, %v2824
        %v2871 = vpack.c.b16 %v2827, %v2826
        %v2872 = vpack.c.b16 %v2829, %v2828
        %v2873 = vpack.c.b16 %v2831, %v2830
        %v2874 = vpack.c.b16 %v2833, %v2832
        %v2875 = vpack.c.b16 %v2835, %v2834
        %v2876 = vpack.c.b16 %v2837, %v2836
        %v2877 = vpack.c.b16 %v2839, %v2838
        %v2878 = vpack.c.b16 %v2841, %v2840
        %v2879 = vpack.c.b16 %v2843, %v2842
        %v2880 = vpack.c.b16 %v2845, %v2844
        %v2881 = vpack.c.b16 %v2847, %v2846
        %v2882 = vpack.c.b16 %v2849, %v2848
        %v2883 = vpack.c.b16 %v2851, %v2850
        %v2884 = vpack.c.b16 %v2853, %v2852
        %v2885 = vpack.c.b16 %v2855, %v2854
        %v2886 = vpack.c.b16 %v2857, %v2856
        %v2887 = vpack.c.b16 %v2859, %v2858
        %v2888 = vpack.c.b16 %v2861, %v2860
        %v2889 = vpack.c.b16 %v2863, %v2862
        %v2890 = vpack.c.b16 %v2865, %v2864
        %v2891 = vpack.c.b16 %v2867, %v2866
        %2916 = vmatprep.subr.bf16.mxu0 0
        %2917 = vmatpush1.bf16.msra.mxu0 %v2868
        %2918 = vmatprep.subr.bf16.mxu0 0
        %2919 = vmatpush1.bf16.msra.mxu0 %v2869
        %2920 = vmatprep.subr.bf16.mxu0 0
        %2921 = vmatpush1.bf16.msra.mxu0 %v2870
        %2922 = vmatprep.subr.bf16.mxu0 0
        %2923 = vmatpush1.bf16.msra.mxu0 %v2871
        %2924 = vmatprep.subr.bf16.mxu0 0
        %2925 = vmatpush1.bf16.msra.mxu0 %v2872
        %2926 = vmatprep.subr.bf16.mxu0 0
        %2927 = vmatpush1.bf16.msra.mxu0 %v2873
        %2928 = vmatprep.subr.bf16.mxu0 0
        %2929 = vmatpush1.bf16.msra.mxu0 %v2874
        %2930 = vmatprep.subr.bf16.mxu0 0
        %2931 = vmatpush1.bf16.msra.mxu0 %v2875
        %2932 = vmatprep.subr.bf16.mxu0 0
        %2933 = vmatpush1.bf16.msra.mxu0 %v2876
        %2934 = vmatprep.subr.bf16.mxu0 0
        %2935 = vmatpush1.bf16.msra.mxu0 %v2877
        %2936 = vmatprep.subr.bf16.mxu0 0
        %2937 = vmatpush1.bf16.msra.mxu0 %v2878
        %2938 = vmatprep.subr.bf16.mxu0 0
        %2939 = vmatpush1.bf16.msra.mxu0 %v2879
        %2940 = vmatprep.subr.bf16.mxu0 0
        %2941 = vmatpush1.bf16.msra.mxu0 %v2880
        %2942 = vmatprep.subr.bf16.mxu0 0
        %2943 = vmatpush1.bf16.msra.mxu0 %v2881
        %2944 = vmatprep.subr.bf16.mxu0 0
        %2945 = vmatpush1.bf16.msra.mxu0 %v2882
        %2946 = vmatprep.subr.bf16.mxu0 0
        %2947 = vmatpush1.bf16.msra.mxu0 %v2883
        %2948 = vmatprep.mubr.bf16.mxu0 %v2711
        %2949 = vmatmul.mubr.bf16.gmra.mrb[0].mxu0 %v2708
        %v2950 = vpop.f32.mrb[0].mxu0
        %v2951 = vadd.f32 %v2770, %v2950
        %v2952 = vpop.f32.mrb[0].mxu0
        %v2953 = vpop.f32.mrb[0].mxu0
        %v2954 = vadd.f32 %v2770, %v2953
        %v2955 = vpop.f32.mrb[0].mxu0
        %2956 = vdwg.mxu0
        %2957 = vmatprep.subr.bf16.mxu0 0
        %2958 = vmatpush1.bf16.msra.mxu0 %v2884
        %2959 = vmatprep.subr.bf16.mxu0 0
        %2960 = vmatpush1.bf16.msra.mxu0 %v2885
        %2961 = vmatprep.subr.bf16.mxu0 0
        %2962 = vmatpush1.bf16.msra.mxu0 %v2886
        %2963 = vmatprep.subr.bf16.mxu0 0
        %2964 = vmatpush1.bf16.msra.mxu0 %v2887
        %2965 = vmatprep.subr.bf16.mxu0 0
        %2966 = vmatpush1.bf16.msra.mxu0 %v2888
        %2967 = vmatprep.subr.bf16.mxu0 0
        %2968 = vmatpush1.bf16.msra.mxu0 %v2889
        %2969 = vmatprep.subr.bf16.mxu0 0
        %2970 = vmatpush1.bf16.msra.mxu0 %v2890
        %2971 = vmatprep.subr.bf16.mxu0 0
        %2972 = vmatpush1.bf16.msra.mxu0 %v2891
        %2973 = vmatprep.subr.bf16.mxu0 0
        %2974 = vmatpush1.bf16.msra.mxu0 0
        %2975 = vmatprep.subr.bf16.mxu0 0
        %2976 = vmatpush1.bf16.msra.mxu0 0
        %2977 = vmatprep.subr.bf16.mxu0 0
        %2978 = vmatpush1.bf16.msra.mxu0 0
        %2979 = vmatprep.subr.bf16.mxu0 0
        %2980 = vmatpush1.bf16.msra.mxu0 0
        %2981 = vmatprep.subr.bf16.mxu0 0
        %2982 = vmatpush1.bf16.msra.mxu0 0
        %2983 = vmatprep.subr.bf16.mxu0 0
        %2984 = vmatpush1.bf16.msra.mxu0 0
        %2985 = vmatprep.subr.bf16.mxu0 0
        %2986 = vmatpush1.bf16.msra.mxu0 0
        %2987 = vmatprep.subr.bf16.mxu0 0
        %2988 = vmatpush1.bf16.msra.mxu0 0
        %2989 = vmatprep.mubr.bf16.mxu0 0
        %2990 = vmatmul.mubr.bf16.gmra.mrb[0].mxu0 %v2714
        %v2991 = vpop.f32.mrb[0].mxu0
        %v2992 = vadd.f32 %v2951, %v2991
        %v2993 = vpop.f32.mrb[0].mxu0
        %v2994 = vpop.f32.mrb[0].mxu0
        %v2995 = vadd.f32 %v2954, %v2994
        %v2996 = vpop.f32.mrb[0].mxu0
        %2997 = vdwg.mxu0
        %v2998 = vlaneseq
        %v2999 = vshrl.u32 %v2998, 7
        %vm3000 = vcmp.lt.s32.totalorder %v2999, 4
        %v3001 = vsel %vm3000, %v2992, -inf
        %v3002 = vsel %vm3000, %v2995, -inf
        %v3003 = vrot.slane %v3001, 4
        %v3004 = vmax.f32 %v3001, %v3003
        %v3005 = vrot.slane %v3004, 2
        %v3006 = vmax.f32 %v3004, %v3005
        %v3007 = vrot.slane %v3006, 1
        %v3008 = vmax.f32 %v3006, %v3007
        %v3009 = vrot.slane %v3002, 4
        %v3010 = vmax.f32 %v3002, %v3009
        %v3011 = vrot.slane %v3010, 2
        %v3012 = vmax.f32 %v3010, %v3011
        %v3013 = vrot.slane %v3012, 1
        %v3014 = vmax.f32 %v3012, %v3013
        %v3015 = vld [vmem:[%s4] sm:$0xff]
        %v3016 = vld [vmem:[%s4 + $0x8] sm:$0xff]
        %v3017 = vld [vmem:[%s4 + $0x10] sm:$0xff]
        %v3018 = vld [vmem:[%s4 + $0x18] sm:$0xff]
        %v3019 = vld [vmem:[%s4 + $0x20] sm:$0xff]
        %v3020 = vld [vmem:[%s4 + $0x28] sm:$0xff]
        %v3021 = vld [vmem:[%s4 + $0x30] sm:$0xff]
        %v3022 = vld [vmem:[%s4 + $0x38] sm:$0xff]
        %v3023 = vld [vmem:[%s4 + $0x40] sm:$0xff]
        %v3024 = vld [vmem:[%s4 + $0x48] sm:$0xff]
        %v3025 = vld [vmem:[%s4 + $0x50] sm:$0xff]
        %v3026 = vld [vmem:[%s4 + $0x58] sm:$0xff]
        %v3027 = vld [vmem:[%s4 + $0x60] sm:$0xff]
        %v3028 = vld [vmem:[%s4 + $0x68] sm:$0xff]
        %v3029 = vld [vmem:[%s4 + $0x70] sm:$0xff]
        %v3030 = vld [vmem:[%s4 + $0x78] sm:$0xff]
        %v3031 = vld [vmem:[#allocation4] sm:$0x1]
        %v3033 = vlaneseq
        %v3034 = vshrl.u32 %v3033, 7
        %v3035 = vsub.s32 0, %v3034
        %v3036 = vrot.slane %v3031, %v3035
        %3037 = vset.pattern.permute.xlu0 0
        %3038 = vperm.xlu0 %3037, %v3036
        %v3039 = vpop.permute.xlu0 %3038
        %vm3043 = vcmask 1041409
        %v3044 = vsel %vm3043, %v3014, %v3008
        %3046 = vmatprep.subr.mxu0 0.0
        %3047 = vmatpush1.msra.mxu0 %v3015
        %3048 = vmatprep.subr.mxu0 0.0
        %3049 = vmatpush1.msra.mxu0 %v3016
        %3050 = vmatprep.subr.mxu0 0.0
        %3051 = vmatpush1.msra.mxu0 %v3017
        %3052 = vmatprep.subr.mxu0 0.0
        %3053 = vmatpush1.msra.mxu0 %v3018
        %3054 = vmatprep.subr.mxu0 0.0
        %3055 = vmatpush1.msra.mxu0 %v3019
        %3056 = vmatprep.subr.mxu0 0.0
        %3057 = vmatpush1.msra.mxu0 %v3020
        %3058 = vmatprep.subr.mxu0 0.0
        %3059 = vmatpush1.msra.mxu0 %v3021
        %3060 = vmatprep.subr.mxu0 0.0
        %3061 = vmatpush1.msra.mxu0 %v3022
        %3062 = vmatprep.subr.mxu0 0.0
        %3063 = vmatpush1.msra.mxu0 %v3023
        %3064 = vmatprep.subr.mxu0 0.0
        %3065 = vmatpush1.msra.mxu0 %v3024
        %3066 = vmatprep.subr.mxu0 0.0
        %3067 = vmatpush1.msra.mxu0 %v3025
        %3068 = vmatprep.subr.mxu0 0.0
        %3069 = vmatpush1.msra.mxu0 %v3026
        %3070 = vmatprep.subr.mxu0 0.0
        %3071 = vmatpush1.msra.mxu0 %v3027
        %3072 = vmatprep.subr.mxu0 0.0
        %3073 = vmatpush1.msra.mxu0 %v3028
        %3074 = vmatprep.subr.mxu0 0.0
        %3075 = vmatpush1.msra.mxu0 %v3029
        %3076 = vmatprep.subr.mxu0 0.0
        %3077 = vmatpush1.msra.mxu0 %v3030
        %3078 = vmatprep.subr.mxu0 0.0
        %3079 = vmatpush1.msra.mxu0 0.0
        %3080 = vmatprep.subr.mxu0 0.0
        %3081 = vmatpush1.msra.mxu0 0.0
        %3082 = vmatprep.subr.mxu0 0.0
        %3083 = vmatpush1.msra.mxu0 0.0
        %3084 = vmatprep.subr.mxu0 0.0
        %3085 = vmatpush1.msra.mxu0 0.0
        %3086 = vmatprep.subr.mxu0 0.0
        %3087 = vmatpush1.msra.mxu0 0.0
        %3088 = vmatprep.subr.mxu0 0.0
        %3089 = vmatpush1.msra.mxu0 0.0
        %3090 = vmatprep.subr.mxu0 0.0
        %3091 = vmatpush1.msra.mxu0 0.0
        %3092 = vmatprep.subr.mxu0 0.0
        %3093 = vmatpush1.msra.mxu0 0.0
        %3094 = vmatprep.subr.mxu0 0.0
        %3095 = vmatpush1.msra.mxu0 0.0
        %3096 = vmatprep.subr.mxu0 0.0
        %3097 = vmatpush1.msra.mxu0 0.0
        %3098 = vmatprep.subr.mxu0 0.0
        %3099 = vmatpush1.msra.mxu0 0.0
        %3100 = vmatprep.subr.mxu0 0.0
        %3101 = vmatpush1.msra.mxu0 0.0
        %3102 = vmatprep.subr.mxu0 0.0
        %3103 = vmatpush1.msra.mxu0 0.0
        %3104 = vmatprep.subr.mxu0 0.0
        %3105 = vmatpush1.msra.mxu0 0.0
        %3106 = vmatprep.subr.mxu0 0.0
        %3107 = vmatpush1.msra.mxu0 0.0
        %3108 = vmatprep.subr.mxu0 0.0
        %3109 = vmatpush1.msra.mxu0 0.0
        %3110 = vmatprep.mubr.f32.mxu0 0.0
        %3111 = vmatmul.mubr.f32.gmra.mrb[0].mxu0 %v3044
        %v3112 = vpop.f32.mrb[0].mxu0
        %v3113 = vadd.f32 %v3039, %v3112
        %v3114 = vpop.f32.mrb[0].mxu0
        %3115 = vdwg.mxu0
        %vm3116 = vcmask 25600
        %3117 = vst.msk [vmem:[%s264] sm:$0x3] %vm3116, %v3113
        %s3118 = sand.u32 %s162, 1
        %s3119 = scalar_lea.sflag [#allocation7], %s3118
        %s3120 = sand.u32 %s162, 1
        %s3121 = smul.addr %s3120, 2
        %s3122 = scalar_lea.vmem [#allocation8], %s3121
        // Predicated region
        $region49: #{tpu_custom_call.1} parent=43 // pred_check
          %p3123 = pneg %p172
        $region50: #{tpu_custom_call.1} parent=43 // pred_check_branch
          %3125 = sbr.rel (%p3123) target = $region52
        $region51: #{tpu_custom_call.1} parent=43 // pred_region
          %s3127 = ssub.s32 32, 32
          %3128 = vsyncadd %s3119, %s3127
          %s3129 = smul.addr %s23, 32
          %s3130 = scalar_lea.hbm %s6, %s3129
          %s3132 = sshll.u32 %s3122, 4
          %s3133 = int_to_ptr.vmem [resolvable:$true] %s3132
          %3135 = dma.vmem_to_hbm [thread:$0]  %s3133, 32, %s3130, %s3119
        $region52: #{tpu_custom_call.1} parent=43 // pred_fallthru
          _
      $region44: #{tpu_custom_call.1} parent=5 // pred_fallthru
        _
      %p3136 = scmp.le.s32.totalorder 2, %s18
      // Predicated region
      $region53: #{tpu_custom_call.1} parent=5 // pred_check
        %p3137 = pneg %p3136
      $region54: #{tpu_custom_call.1} parent=5 // pred_check_branch
        %3139 = sbr.rel (%p3137) target = $region56
      $region55: #{tpu_custom_call.1} parent=5 // pred_region
        %s3140 = ssub.s32 %s18, 2
        // Predicated region
        $region57: #{tpu_custom_call.1} parent=55 // pred_check
          %p3141 = pneg %p178
        $region58: #{tpu_custom_call.1} parent=55 // pred_check_branch
          %3143 = sbr.rel (%p3141) target = $region60
        $region59: #{tpu_custom_call.1} parent=55 // pred_region
          %s3144 = sand.u32 %s163, 1
          %s3145 = scalar_lea.sflag [#allocation7], %s3144
          %s3146 = sand.u32 %s163, 1
          %s3147 = smul.addr %s3146, 2
          %s3148 = scalar_lea.vmem [#allocation8], %s3147
          %3149 = dma.done %s3145, 32
        $region60: #{tpu_custom_call.1} parent=55 // pred_fallthru
          _
      $region56: #{tpu_custom_call.1} parent=5 // pred_fallthru
        _
    $region6: #{tpu_custom_call.1} parent=1 // loop_footer
      %s22 = sadd.s32 1, %s18
    $region7: #{tpu_custom_call.1} parent=1 // loop_footer_branch
      %17 = sbr.rel target = $region3
    $region8: #{tpu_custom_call.1} parent=1 // loop_exit
      _
    %3150 = vsyncpa [#allocation6], 1
    %s3151 = scalar_lea.sflag [#allocation6], 1
    %3152 = vsyncpa %s3151, 1
    %3153 = vsyncpa [#allocation7], 1
    %s3154 = scalar_lea.sflag [#allocation7], 1
    %3155 = vsyncpa %s3154, 1

</llo_original>
